<compile_context>
chip_gen: v7x
topology: tpu7x:2x2x1
jax: 0.10.0
libtpu: 0.0.40
codegen_flags: <defaults>
</compile_context>

<pallas_src>
import jax
import jax.numpy as jnp
from jax.experimental import pallas as pl
from jax.experimental.pallas import tpu as pltpu  # noqa: F401  (kept for scratch/DMA variants)


# ----------------------------------------------------------------------------
# Fused Pallas kernel: layer-0 recurrence -> layer-1 recurrence -> linear head
# ----------------------------------------------------------------------------
def _fused_lstm_kernel(gx0_ref, w_hh0_ref, w_ih1_ref, w_hh1_ref, b1_ref,
                       w_lin_ref, b_lin_ref, out_ref):
    """Entire forward pass, everything resident in VMEM / vregs.

    gx0_ref : (T*B, 4H) f32   layer-0 input projection (+ fused bias), gate
                              columns permuted to [i, f, o, g]
    w_hh0   : (H, 4H)   bf16  layer-0 hidden-to-hidden weights
    w_ih1   : (H, 4H)   bf16  layer-1 input-to-hidden weights
    w_hh1   : (H, 4H)   bf16  layer-1 hidden-to-hidden weights
    b1      : (1, 4H)   f32   layer-1 fused bias (b_ih + b_hh), permuted
    w_lin   : (1, H)    f32   head weight row;  b_lin: (1, 1)
    out_ref : (B, 1)    f32
    """
    f32 = jnp.float32
    TB = gx0_ref.shape[0]
    B = out_ref.shape[0]
    T = TB // B
    H = w_hh0_ref.shape[0]

    def run_layer(gx, w_hh, collect):
        # gx: (T*B, 4H) f32 precomputed input projection (+ fused bias).
        h = jnp.zeros((B, H), f32)
        c = jnp.zeros((B, H), f32)
        hs = []
        for t in range(T):                          # static, fully unrolled
            gates = gx[t * B:(t + 1) * B, :] + jnp.dot(
                h.astype(w_hh.dtype), w_hh, preferred_element_type=f32)
            sig = jax.nn.sigmoid(gates[:, :3 * H])  # [i, f, o] in one pass
            i_g = sig[:, 0:H]
            f_g = sig[:, H:2 * H]
            o_g = sig[:, 2 * H:3 * H]
            g_g = jnp.tanh(gates[:, 3 * H:])
            c = f_g * c + i_g * g_g
            h = o_g * jnp.tanh(c)
            if collect:
                hs.append(h)
        return h, hs

    # ---- Layer 0: recurrence only (input projection was done outside) ----
    w_hh0 = w_hh0_ref[...]
    _, hs0 = run_layer(gx0_ref[...], w_hh0, collect=True)

    # ---- Layer 1 (inter-layer dropout skipped: eval-mode forward) ----
    y0 = jnp.concatenate(hs0, axis=0)               # (T*B, H) register-resident
    gx1 = jnp.dot(y0.astype(w_ih1_ref.dtype), w_ih1_ref[...],
                  preferred_element_type=f32) + b1_ref[...]
    h_last, _ = run_layer(gx1, w_hh1_ref[...], collect=False)

    # ---- Linear head: (B,H)·(H,1) as VPU multiply + lane reduction ----
    out = jnp.sum(h_last * w_lin_ref[...], axis=-1, keepdims=True) + b_lin_ref[...]
    out_ref[...] = out.astype(out_ref.dtype)


# ----------------------------------------------------------------------------
# Host-side parameter prep (run ONCE, outside the jitted forward)
# ----------------------------------------------------------------------------
def _permute_gate_cols(w):
    """Reorder 4H gate columns from PyTorch [i, f, g, o] to [i, f, o, g]."""
    i, f, g, o = jnp.split(w, 4, axis=-1)
    return jnp.concatenate([i, f, o, g], axis=-1)


def prepare_params(params, matmul_dtype=jnp.bfloat16):
    """Transpose to (in, 4H), fuse b_ih+b_hh, permute gates, cast MXU operands."""
    def prep_layer(w_ih, w_hh, b_ih, b_hh):
        return (_permute_gate_cols(w_ih.T),                    # (I|H, 4H)
                _permute_gate_cols(w_hh.T),                    # (H, 4H)
                _permute_gate_cols((b_ih + b_hh)[None, :]))    # (1, 4H)

    w_ih0, w_hh0, b0 = prep_layer(params["w_ih_l0"], params["w_hh_l0"],
                                  params["b_ih_l0"], params["b_hh_l0"])
    w_ih1, w_hh1, b1 = prep_layer(params["w_ih_l1"], params["w_hh_l1"],
                                  params["b_ih_l1"], params["b_hh_l1"])
    return {
        # layer-0 input projection stays f32 and outside the kernel (K = I = 1)
        "w_ih0": w_ih0,                                        # (I, 4H) f32
        "b0": b0,                                              # (1, 4H) f32
        # MXU operands in bf16 (f32 accumulation inside the kernel)
        "w_hh0": w_hh0.astype(matmul_dtype),
        "w_ih1": w_ih1.astype(matmul_dtype),
        "w_hh1": w_hh1.astype(matmul_dtype),
        "b1": b1,                                              # (1, 4H) f32
        "w_lin": params["w_lin"],                              # (1, H) f32 row
        "b_lin": params["b_lin"].reshape(1, 1),                # (1, 1) f32
    }


# ----------------------------------------------------------------------------
# Jitted forward (single pallas_call)
# ----------------------------------------------------------------------------
@jax.jit
def lstm_model_forward(x, kp):
    """x: (B, T, I) batch_first, like the PyTorch module. Returns (B, 1)."""
    B, T, I = x.shape
    H = kp["w_hh0"].shape[0]

    # time-major + flatten (T, B) -> T*B, then the degenerate K=I=1 layer-0
    # input projection as plain XLA (a broadcast multiply) -> lane-dense gx0.
    x_flat = jnp.transpose(x, (1, 0, 2)).reshape(T * B, I).astype(jnp.float32)
    gx0 = x_flat @ kp["w_ih0"] + kp["b0"]                      # (T*B, 4H) f32

    def full(shape):
        return pl.BlockSpec(shape, lambda: tuple(0 for _ in shape))

    cost = pl.CostEstimate(
        flops=2 * (T * B) * H * (4 * H) * 3,        # gx1 + two unrolled recurrences
        transcendentals=2 * T * B * 5 * H,          # sigmoid(3H) + 2*tanh(H) per step
        bytes_accessed=(T * B * 4 * H * 4           # gx0 (f32)
                        + 3 * H * 4 * H * 2         # three bf16 weight matrices
                        + 4 * H * 4 + H * 4 + 4     # b1, w_lin, b_lin
                        + B * 4),                   # output
    )

    return pl.pallas_call(
        _fused_lstm_kernel,
        out_shape=jax.ShapeDtypeStruct((B, 1), jnp.float32),
        grid=(),
        in_specs=[
            full((T * B, 4 * H)),
            full((H, 4 * H)), full((H, 4 * H)), full((H, 4 * H)),
            full((1, 4 * H)),
            full((1, H)), full((1, 1)),
        ],
        out_specs=full((B, 1)),
        cost_estimate=cost,
    )(gx0, kp["w_hh0"], kp["w_ih1"], kp["w_hh1"], kp["b1"],
      kp["w_lin"], kp["b_lin"])


# ----------------------------------------------------------------------------
# Pure-JAX reference (PyTorch semantics, un-permuted f32 params) for validation
# ----------------------------------------------------------------------------
def lstm_reference(x, params):
    B, T, I = x.shape
    H = params["w_hh_l0"].shape[1]

    def layer(xs, w_ih, w_hh, b_ih, b_hh):
        def step(carry, x_t):
            h, c = carry
            gates = x_t @ w_ih.T + h @ w_hh.T + b_ih + b_hh
            i, f, g, o = jnp.split(gates, 4, axis=-1)
            c = jax.nn.sigmoid(f) * c + jax.nn.sigmoid(i) * jnp.tanh(g)
            h = jax.nn.sigmoid(o) * jnp.tanh(c)
            return (h, c), h
        h0 = jnp.zeros((B, H), jnp.float32)
        c0 = jnp.zeros((B, H), jnp.float32)
        _, ys = jax.lax.scan(step, (h0, c0), xs)
        return ys

    xs = jnp.transpose(x, (1, 0, 2)).astype(jnp.float32)
    y0 = layer(xs, params["w_ih_l0"], params["w_hh_l0"],
               params["b_ih_l0"], params["b_hh_l0"])
    y1 = layer(y0, params["w_ih_l1"], params["w_hh_l1"],
               params["b_ih_l1"], params["b_hh_l1"])
    return y1[-1] @ params["w_lin"].T + params["b_lin"]


# ----------------------------------------------------------------------------
# Deterministic parameter init (PyTorch-style uniform(-1/sqrt(H), 1/sqrt(H)))
# ----------------------------------------------------------------------------
def init_params(key, input_size=1, hidden_size=128):
    H, I = hidden_size, input_size
    bound = 1.0 / jnp.sqrt(jnp.float32(H))
    keys = jax.random.split(key, 10)

    def u(k, shape):
        return jax.random.uniform(k, shape, jnp.float32, -bound, bound)

    return {
        "w_ih_l0": u(keys[0], (4 * H, I)),
        "w_hh_l0": u(keys[1], (4 * H, H)),
        "b_ih_l0": u(keys[2], (4 * H,)),
        "b_hh_l0": u(keys[3], (4 * H,)),
        "w_ih_l1": u(keys[4], (4 * H, H)),
        "w_hh_l1": u(keys[5], (4 * H, H)),
        "b_ih_l1": u(keys[6], (4 * H,)),
        "b_hh_l1": u(keys[7], (4 * H,)),
        "w_lin":   u(keys[8], (1, H)),
        "b_lin":   u(keys[9], (1,)),
    }


if __name__ == "__main__":
    key = jax.random.PRNGKey(0)
    k_param, k_x = jax.random.split(key)

    B, T, I, H = 2, 8, 1, 128
    params = init_params(k_param, input_size=I, hidden_size=H)
    kparams = prepare_params(params)          # one-time weight prep (host side)
    x = jax.random.normal(k_x, (B, T, I), dtype=jnp.float32)

    out = lstm_model_forward(x, kparams)
    jax.block_until_ready(out)
    assert out.shape == (B, 1), out.shape

    ref = lstm_reference(x, params)
    # Tolerance loosened vs. the all-f32 version because the MXU operands
    # (W_hh / W_ih1 and the recurrent LHS) are bf16; state & gates remain f32.
    assert jnp.allclose(out, ref, atol=2e-2, rtol=2e-2), (out, ref)

    print("KERNEL_OK")
</pallas_src>

<mosaic_0001>
module attributes {stable_mosaic.version = 11 : i64} {
  func.func @_fused_lstm_kernel(%arg0: memref<16x512xf32, #tpu.memory_space<vmem>>, %arg1: memref<128x512xbf16, #tpu.memory_space<vmem>>, %arg2: memref<128x512xbf16, #tpu.memory_space<vmem>>, %arg3: memref<128x512xbf16, #tpu.memory_space<vmem>>, %arg4: memref<1x512xf32, #tpu.memory_space<vmem>>, %arg5: memref<1x128xf32, #tpu.memory_space<vmem>>, %arg6: memref<1x1xf32, #tpu.memory_space<vmem>>, %arg7: memref<2x1xf32, #tpu.memory_space<vmem>>) attributes {dimension_semantics = [], scalar_prefetch = 0 : i64, scratch_operands = 0 : i64, tpu.core_type = #tpu.core_type<tc>} {
    %c0 = arith.constant 0 : index
    %c0_0 = arith.constant 0 : index
    %0 = vector.load %arg1[%c0, %c0_0] : memref<128x512xbf16, #tpu.memory_space<vmem>>, vector<128x512xbf16>
    %c0_1 = arith.constant 0 : index
    %c0_2 = arith.constant 0 : index
    %1 = vector.load %arg0[%c0_1, %c0_2] : memref<16x512xf32, #tpu.memory_space<vmem>>, vector<16x512xf32>
    %cst = arith.constant 0.000000e+00 : f32
    %2 = vector.broadcast %cst : f32 to vector<2x128xf32>
    %cst_3 = arith.constant 0.000000e+00 : f32
    %3 = vector.broadcast %cst_3 : f32 to vector<2x128xf32>
    %4 = vector.extract_strided_slice %1 {offsets = [0, 0], sizes = [2, 512], strides = [1, 1]} : vector<16x512xf32> to vector<2x512xf32>
    %5 = arith.truncf %2 : vector<2x128xf32> to vector<2x128xbf16>
    %cst_4 = arith.constant dense<0.000000e+00> : vector<2x512xf32>
    %6 = tpu.matmul %5, %0, %cst_4 {dimension_numbers = #tpu.dot_dimension_numbers<[1], [0], [0], [1], [0, 0, 1, 1], [], []>} : vector<2x128xbf16>, vector<128x512xbf16>, vector<2x512xf32> -> vector<2x512xf32>
    %7 = arith.addf %4, %6 : vector<2x512xf32>
    %8 = vector.extract_strided_slice %7 {offsets = [0, 0], sizes = [2, 384], strides = [1, 1]} : vector<2x512xf32> to vector<2x384xf32>
    %9 = arith.negf %8 : vector<2x384xf32>
    %10 = math.exp %9 : vector<2x384xf32>
    %cst_5 = arith.constant 1.000000e+00 : f32
    %11 = vector.broadcast %cst_5 : f32 to vector<2x384xf32>
    %12 = arith.addf %11, %10 : vector<2x384xf32>
    %13 = arith.divf %11, %12 : vector<2x384xf32>
    %14 = vector.extract_strided_slice %13 {offsets = [0, 0], sizes = [2, 128], strides = [1, 1]} : vector<2x384xf32> to vector<2x128xf32>
    %15 = vector.extract_strided_slice %13 {offsets = [0, 128], sizes = [2, 128], strides = [1, 1]} : vector<2x384xf32> to vector<2x128xf32>
    %16 = vector.extract_strided_slice %13 {offsets = [0, 256], sizes = [2, 128], strides = [1, 1]} : vector<2x384xf32> to vector<2x128xf32>
    %17 = vector.extract_strided_slice %7 {offsets = [0, 384], sizes = [2, 128], strides = [1, 1]} : vector<2x512xf32> to vector<2x128xf32>
    %18 = math.tanh %17 : vector<2x128xf32>
    %19 = arith.mulf %15, %3 : vector<2x128xf32>
    %20 = arith.mulf %14, %18 : vector<2x128xf32>
    %21 = arith.addf %19, %20 : vector<2x128xf32>
    %22 = math.tanh %21 : vector<2x128xf32>
    %23 = arith.mulf %16, %22 : vector<2x128xf32>
    %24 = vector.extract_strided_slice %1 {offsets = [2, 0], sizes = [2, 512], strides = [1, 1]} : vector<16x512xf32> to vector<2x512xf32>
    %25 = arith.truncf %23 : vector<2x128xf32> to vector<2x128xbf16>
    %cst_6 = arith.constant dense<0.000000e+00> : vector<2x512xf32>
    %26 = tpu.matmul %25, %0, %cst_6 {dimension_numbers = #tpu.dot_dimension_numbers<[1], [0], [0], [1], [0, 0, 1, 1], [], []>} : vector<2x128xbf16>, vector<128x512xbf16>, vector<2x512xf32> -> vector<2x512xf32>
    %27 = arith.addf %24, %26 : vector<2x512xf32>
    %28 = vector.extract_strided_slice %27 {offsets = [0, 0], sizes = [2, 384], strides = [1, 1]} : vector<2x512xf32> to vector<2x384xf32>
    %29 = arith.negf %28 : vector<2x384xf32>
    %30 = math.exp %29 : vector<2x384xf32>
    %cst_7 = arith.constant 1.000000e+00 : f32
    %31 = vector.broadcast %cst_7 : f32 to vector<2x384xf32>
    %32 = arith.addf %31, %30 : vector<2x384xf32>
    %33 = arith.divf %31, %32 : vector<2x384xf32>
    %34 = vector.extract_strided_slice %33 {offsets = [0, 0], sizes = [2, 128], strides = [1, 1]} : vector<2x384xf32> to vector<2x128xf32>
    %35 = vector.extract_strided_slice %33 {offsets = [0, 128], sizes = [2, 128], strides = [1, 1]} : vector<2x384xf32> to vector<2x128xf32>
    %36 = vector.extract_strided_slice %33 {offsets = [0, 256], sizes = [2, 128], strides = [1, 1]} : vector<2x384xf32> to vector<2x128xf32>
    %37 = vector.extract_strided_slice %27 {offsets = [0, 384], sizes = [2, 128], strides = [1, 1]} : vector<2x512xf32> to vector<2x128xf32>
    %38 = math.tanh %37 : vector<2x128xf32>
    %39 = arith.mulf %35, %21 : vector<2x128xf32>
    %40 = arith.mulf %34, %38 : vector<2x128xf32>
    %41 = arith.addf %39, %40 : vector<2x128xf32>
    %42 = math.tanh %41 : vector<2x128xf32>
    %43 = arith.mulf %36, %42 : vector<2x128xf32>
    %44 = vector.extract_strided_slice %1 {offsets = [4, 0], sizes = [2, 512], strides = [1, 1]} : vector<16x512xf32> to vector<2x512xf32>
    %45 = arith.truncf %43 : vector<2x128xf32> to vector<2x128xbf16>
    %cst_8 = arith.constant dense<0.000000e+00> : vector<2x512xf32>
    %46 = tpu.matmul %45, %0, %cst_8 {dimension_numbers = #tpu.dot_dimension_numbers<[1], [0], [0], [1], [0, 0, 1, 1], [], []>} : vector<2x128xbf16>, vector<128x512xbf16>, vector<2x512xf32> -> vector<2x512xf32>
    %47 = arith.addf %44, %46 : vector<2x512xf32>
    %48 = vector.extract_strided_slice %47 {offsets = [0, 0], sizes = [2, 384], strides = [1, 1]} : vector<2x512xf32> to vector<2x384xf32>
    %49 = arith.negf %48 : vector<2x384xf32>
    %50 = math.exp %49 : vector<2x384xf32>
    %cst_9 = arith.constant 1.000000e+00 : f32
    %51 = vector.broadcast %cst_9 : f32 to vector<2x384xf32>
    %52 = arith.addf %51, %50 : vector<2x384xf32>
    %53 = arith.divf %51, %52 : vector<2x384xf32>
    %54 = vector.extract_strided_slice %53 {offsets = [0, 0], sizes = [2, 128], strides = [1, 1]} : vector<2x384xf32> to vector<2x128xf32>
    %55 = vector.extract_strided_slice %53 {offsets = [0, 128], sizes = [2, 128], strides = [1, 1]} : vector<2x384xf32> to vector<2x128xf32>
    %56 = vector.extract_strided_slice %53 {offsets = [0, 256], sizes = [2, 128], strides = [1, 1]} : vector<2x384xf32> to vector<2x128xf32>
    %57 = vector.extract_strided_slice %47 {offsets = [0, 384], sizes = [2, 128], strides = [1, 1]} : vector<2x512xf32> to vector<2x128xf32>
    %58 = math.tanh %57 : vector<2x128xf32>
    %59 = arith.mulf %55, %41 : vector<2x128xf32>
    %60 = arith.mulf %54, %58 : vector<2x128xf32>
    %61 = arith.addf %59, %60 : vector<2x128xf32>
    %62 = math.tanh %61 : vector<2x128xf32>
    %63 = arith.mulf %56, %62 : vector<2x128xf32>
    %64 = vector.extract_strided_slice %1 {offsets = [6, 0], sizes = [2, 512], strides = [1, 1]} : vector<16x512xf32> to vector<2x512xf32>
    %65 = arith.truncf %63 : vector<2x128xf32> to vector<2x128xbf16>
    %cst_10 = arith.constant dense<0.000000e+00> : vector<2x512xf32>
    %66 = tpu.matmul %65, %0, %cst_10 {dimension_numbers = #tpu.dot_dimension_numbers<[1], [0], [0], [1], [0, 0, 1, 1], [], []>} : vector<2x128xbf16>, vector<128x512xbf16>, vector<2x512xf32> -> vector<2x512xf32>
    %67 = arith.addf %64, %66 : vector<2x512xf32>
    %68 = vector.extract_strided_slice %67 {offsets = [0, 0], sizes = [2, 384], strides = [1, 1]} : vector<2x512xf32> to vector<2x384xf32>
    %69 = arith.negf %68 : vector<2x384xf32>
    %70 = math.exp %69 : vector<2x384xf32>
    %cst_11 = arith.constant 1.000000e+00 : f32
    %71 = vector.broadcast %cst_11 : f32 to vector<2x384xf32>
    %72 = arith.addf %71, %70 : vector<2x384xf32>
    %73 = arith.divf %71, %72 : vector<2x384xf32>
    %74 = vector.extract_strided_slice %73 {offsets = [0, 0], sizes = [2, 128], strides = [1, 1]} : vector<2x384xf32> to vector<2x128xf32>
    %75 = vector.extract_strided_slice %73 {offsets = [0, 128], sizes = [2, 128], strides = [1, 1]} : vector<2x384xf32> to vector<2x128xf32>
    %76 = vector.extract_strided_slice %73 {offsets = [0, 256], sizes = [2, 128], strides = [1, 1]} : vector<2x384xf32> to vector<2x128xf32>
    %77 = vector.extract_strided_slice %67 {offsets = [0, 384], sizes = [2, 128], strides = [1, 1]} : vector<2x512xf32> to vector<2x128xf32>
    %78 = math.tanh %77 : vector<2x128xf32>
    %79 = arith.mulf %75, %61 : vector<2x128xf32>
    %80 = arith.mulf %74, %78 : vector<2x128xf32>
    %81 = arith.addf %79, %80 : vector<2x128xf32>
    %82 = math.tanh %81 : vector<2x128xf32>
    %83 = arith.mulf %76, %82 : vector<2x128xf32>
    %84 = vector.extract_strided_slice %1 {offsets = [8, 0], sizes = [2, 512], strides = [1, 1]} : vector<16x512xf32> to vector<2x512xf32>
    %85 = arith.truncf %83 : vector<2x128xf32> to vector<2x128xbf16>
    %cst_12 = arith.constant dense<0.000000e+00> : vector<2x512xf32>
    %86 = tpu.matmul %85, %0, %cst_12 {dimension_numbers = #tpu.dot_dimension_numbers<[1], [0], [0], [1], [0, 0, 1, 1], [], []>} : vector<2x128xbf16>, vector<128x512xbf16>, vector<2x512xf32> -> vector<2x512xf32>
    %87 = arith.addf %84, %86 : vector<2x512xf32>
    %88 = vector.extract_strided_slice %87 {offsets = [0, 0], sizes = [2, 384], strides = [1, 1]} : vector<2x512xf32> to vector<2x384xf32>
    %89 = arith.negf %88 : vector<2x384xf32>
    %90 = math.exp %89 : vector<2x384xf32>
    %cst_13 = arith.constant 1.000000e+00 : f32
    %91 = vector.broadcast %cst_13 : f32 to vector<2x384xf32>
    %92 = arith.addf %91, %90 : vector<2x384xf32>
    %93 = arith.divf %91, %92 : vector<2x384xf32>
    %94 = vector.extract_strided_slice %93 {offsets = [0, 0], sizes = [2, 128], strides = [1, 1]} : vector<2x384xf32> to vector<2x128xf32>
    %95 = vector.extract_strided_slice %93 {offsets = [0, 128], sizes = [2, 128], strides = [1, 1]} : vector<2x384xf32> to vector<2x128xf32>
    %96 = vector.extract_strided_slice %93 {offsets = [0, 256], sizes = [2, 128], strides = [1, 1]} : vector<2x384xf32> to vector<2x128xf32>
    %97 = vector.extract_strided_slice %87 {offsets = [0, 384], sizes = [2, 128], strides = [1, 1]} : vector<2x512xf32> to vector<2x128xf32>
    %98 = math.tanh %97 : vector<2x128xf32>
    %99 = arith.mulf %95, %81 : vector<2x128xf32>
    %100 = arith.mulf %94, %98 : vector<2x128xf32>
    %101 = arith.addf %99, %100 : vector<2x128xf32>
    %102 = math.tanh %101 : vector<2x128xf32>
    %103 = arith.mulf %96, %102 : vector<2x128xf32>
    %104 = vector.extract_strided_slice %1 {offsets = [10, 0], sizes = [2, 512], strides = [1, 1]} : vector<16x512xf32> to vector<2x512xf32>
    %105 = arith.truncf %103 : vector<2x128xf32> to vector<2x128xbf16>
    %cst_14 = arith.constant dense<0.000000e+00> : vector<2x512xf32>
    %106 = tpu.matmul %105, %0, %cst_14 {dimension_numbers = #tpu.dot_dimension_numbers<[1], [0], [0], [1], [0, 0, 1, 1], [], []>} : vector<2x128xbf16>, vector<128x512xbf16>, vector<2x512xf32> -> vector<2x512xf32>
    %107 = arith.addf %104, %106 : vector<2x512xf32>
    %108 = vector.extract_strided_slice %107 {offsets = [0, 0], sizes = [2, 384], strides = [1, 1]} : vector<2x512xf32> to vector<2x384xf32>
    %109 = arith.negf %108 : vector<2x384xf32>
    %110 = math.exp %109 : vector<2x384xf32>
    %cst_15 = arith.constant 1.000000e+00 : f32
    %111 = vector.broadcast %cst_15 : f32 to vector<2x384xf32>
    %112 = arith.addf %111, %110 : vector<2x384xf32>
    %113 = arith.divf %111, %112 : vector<2x384xf32>
    %114 = vector.extract_strided_slice %113 {offsets = [0, 0], sizes = [2, 128], strides = [1, 1]} : vector<2x384xf32> to vector<2x128xf32>
    %115 = vector.extract_strided_slice %113 {offsets = [0, 128], sizes = [2, 128], strides = [1, 1]} : vector<2x384xf32> to vector<2x128xf32>
    %116 = vector.extract_strided_slice %113 {offsets = [0, 256], sizes = [2, 128], strides = [1, 1]} : vector<2x384xf32> to vector<2x128xf32>
    %117 = vector.extract_strided_slice %107 {offsets = [0, 384], sizes = [2, 128], strides = [1, 1]} : vector<2x512xf32> to vector<2x128xf32>
    %118 = math.tanh %117 : vector<2x128xf32>
    %119 = arith.mulf %115, %101 : vector<2x128xf32>
    %120 = arith.mulf %114, %118 : vector<2x128xf32>
    %121 = arith.addf %119, %120 : vector<2x128xf32>
    %122 = math.tanh %121 : vector<2x128xf32>
    %123 = arith.mulf %116, %122 : vector<2x128xf32>
    %124 = vector.extract_strided_slice %1 {offsets = [12, 0], sizes = [2, 512], strides = [1, 1]} : vector<16x512xf32> to vector<2x512xf32>
    %125 = arith.truncf %123 : vector<2x128xf32> to vector<2x128xbf16>
    %cst_16 = arith.constant dense<0.000000e+00> : vector<2x512xf32>
    %126 = tpu.matmul %125, %0, %cst_16 {dimension_numbers = #tpu.dot_dimension_numbers<[1], [0], [0], [1], [0, 0, 1, 1], [], []>} : vector<2x128xbf16>, vector<128x512xbf16>, vector<2x512xf32> -> vector<2x512xf32>
    %127 = arith.addf %124, %126 : vector<2x512xf32>
    %128 = vector.extract_strided_slice %127 {offsets = [0, 0], sizes = [2, 384], strides = [1, 1]} : vector<2x512xf32> to vector<2x384xf32>
    %129 = arith.negf %128 : vector<2x384xf32>
    %130 = math.exp %129 : vector<2x384xf32>
    %cst_17 = arith.constant 1.000000e+00 : f32
    %131 = vector.broadcast %cst_17 : f32 to vector<2x384xf32>
    %132 = arith.addf %131, %130 : vector<2x384xf32>
    %133 = arith.divf %131, %132 : vector<2x384xf32>
    %134 = vector.extract_strided_slice %133 {offsets = [0, 0], sizes = [2, 128], strides = [1, 1]} : vector<2x384xf32> to vector<2x128xf32>
    %135 = vector.extract_strided_slice %133 {offsets = [0, 128], sizes = [2, 128], strides = [1, 1]} : vector<2x384xf32> to vector<2x128xf32>
    %136 = vector.extract_strided_slice %133 {offsets = [0, 256], sizes = [2, 128], strides = [1, 1]} : vector<2x384xf32> to vector<2x128xf32>
    %137 = vector.extract_strided_slice %127 {offsets = [0, 384], sizes = [2, 128], strides = [1, 1]} : vector<2x512xf32> to vector<2x128xf32>
    %138 = math.tanh %137 : vector<2x128xf32>
    %139 = arith.mulf %135, %121 : vector<2x128xf32>
    %140 = arith.mulf %134, %138 : vector<2x128xf32>
    %141 = arith.addf %139, %140 : vector<2x128xf32>
    %142 = math.tanh %141 : vector<2x128xf32>
    %143 = arith.mulf %136, %142 : vector<2x128xf32>
    %144 = vector.extract_strided_slice %1 {offsets = [14, 0], sizes = [2, 512], strides = [1, 1]} : vector<16x512xf32> to vector<2x512xf32>
    %145 = arith.truncf %143 : vector<2x128xf32> to vector<2x128xbf16>
    %cst_18 = arith.constant dense<0.000000e+00> : vector<2x512xf32>
    %146 = tpu.matmul %145, %0, %cst_18 {dimension_numbers = #tpu.dot_dimension_numbers<[1], [0], [0], [1], [0, 0, 1, 1], [], []>} : vector<2x128xbf16>, vector<128x512xbf16>, vector<2x512xf32> -> vector<2x512xf32>
    %147 = arith.addf %144, %146 : vector<2x512xf32>
    %148 = vector.extract_strided_slice %147 {offsets = [0, 0], sizes = [2, 384], strides = [1, 1]} : vector<2x512xf32> to vector<2x384xf32>
    %149 = arith.negf %148 : vector<2x384xf32>
    %150 = math.exp %149 : vector<2x384xf32>
    %cst_19 = arith.constant 1.000000e+00 : f32
    %151 = vector.broadcast %cst_19 : f32 to vector<2x384xf32>
    %152 = arith.addf %151, %150 : vector<2x384xf32>
    %153 = arith.divf %151, %152 : vector<2x384xf32>
    %154 = vector.extract_strided_slice %153 {offsets = [0, 0], sizes = [2, 128], strides = [1, 1]} : vector<2x384xf32> to vector<2x128xf32>
    %155 = vector.extract_strided_slice %153 {offsets = [0, 128], sizes = [2, 128], strides = [1, 1]} : vector<2x384xf32> to vector<2x128xf32>
    %156 = vector.extract_strided_slice %153 {offsets = [0, 256], sizes = [2, 128], strides = [1, 1]} : vector<2x384xf32> to vector<2x128xf32>
    %157 = vector.extract_strided_slice %147 {offsets = [0, 384], sizes = [2, 128], strides = [1, 1]} : vector<2x512xf32> to vector<2x128xf32>
    %158 = math.tanh %157 : vector<2x128xf32>
    %159 = arith.mulf %155, %141 : vector<2x128xf32>
    %160 = arith.mulf %154, %158 : vector<2x128xf32>
    %161 = arith.addf %159, %160 : vector<2x128xf32>
    %162 = math.tanh %161 : vector<2x128xf32>
    %163 = arith.mulf %156, %162 : vector<2x128xf32>
    %164 = tpu.concatenate %23, %43, %63, %83, %103, %123, %143, %163 in 0 : vector<2x128xf32>, vector<2x128xf32>, vector<2x128xf32>, vector<2x128xf32>, vector<2x128xf32>, vector<2x128xf32>, vector<2x128xf32>, vector<2x128xf32> -> vector<16x128xf32>
    %165 = arith.truncf %164 : vector<16x128xf32> to vector<16x128xbf16>
    %c0_20 = arith.constant 0 : index
    %c0_21 = arith.constant 0 : index
    %166 = vector.load %arg2[%c0_20, %c0_21] : memref<128x512xbf16, #tpu.memory_space<vmem>>, vector<128x512xbf16>
    %cst_22 = arith.constant dense<0.000000e+00> : vector<16x512xf32>
    %167 = tpu.matmul %165, %166, %cst_22 {dimension_numbers = #tpu.dot_dimension_numbers<[1], [0], [0], [1], [0, 0, 1, 1], [], []>} : vector<16x128xbf16>, vector<128x512xbf16>, vector<16x512xf32> -> vector<16x512xf32>
    %c0_23 = arith.constant 0 : index
    %c0_24 = arith.constant 0 : index
    %168 = vector.load %arg4[%c0_23, %c0_24] : memref<1x512xf32, #tpu.memory_space<vmem>>, vector<1x512xf32>
    %169 = vector.broadcast %168 : vector<1x512xf32> to vector<16x512xf32>
    %170 = arith.addf %167, %169 : vector<16x512xf32>
    %c0_25 = arith.constant 0 : index
    %c0_26 = arith.constant 0 : index
    %171 = vector.load %arg3[%c0_25, %c0_26] : memref<128x512xbf16, #tpu.memory_space<vmem>>, vector<128x512xbf16>
    %cst_27 = arith.constant 0.000000e+00 : f32
    %172 = vector.broadcast %cst_27 : f32 to vector<2x128xf32>
    %cst_28 = arith.constant 0.000000e+00 : f32
    %173 = vector.broadcast %cst_28 : f32 to vector<2x128xf32>
    %174 = vector.extract_strided_slice %170 {offsets = [0, 0], sizes = [2, 512], strides = [1, 1]} : vector<16x512xf32> to vector<2x512xf32>
    %175 = arith.truncf %172 : vector<2x128xf32> to vector<2x128xbf16>
    %cst_29 = arith.constant dense<0.000000e+00> : vector<2x512xf32>
    %176 = tpu.matmul %175, %171, %cst_29 {dimension_numbers = #tpu.dot_dimension_numbers<[1], [0], [0], [1], [0, 0, 1, 1], [], []>} : vector<2x128xbf16>, vector<128x512xbf16>, vector<2x512xf32> -> vector<2x512xf32>
    %177 = arith.addf %174, %176 : vector<2x512xf32>
    %178 = vector.extract_strided_slice %177 {offsets = [0, 0], sizes = [2, 384], strides = [1, 1]} : vector<2x512xf32> to vector<2x384xf32>
    %179 = arith.negf %178 : vector<2x384xf32>
    %180 = math.exp %179 : vector<2x384xf32>
    %cst_30 = arith.constant 1.000000e+00 : f32
    %181 = vector.broadcast %cst_30 : f32 to vector<2x384xf32>
    %182 = arith.addf %181, %180 : vector<2x384xf32>
    %183 = arith.divf %181, %182 : vector<2x384xf32>
    %184 = vector.extract_strided_slice %183 {offsets = [0, 0], sizes = [2, 128], strides = [1, 1]} : vector<2x384xf32> to vector<2x128xf32>
    %185 = vector.extract_strided_slice %183 {offsets = [0, 128], sizes = [2, 128], strides = [1, 1]} : vector<2x384xf32> to vector<2x128xf32>
    %186 = vector.extract_strided_slice %183 {offsets = [0, 256], sizes = [2, 128], strides = [1, 1]} : vector<2x384xf32> to vector<2x128xf32>
    %187 = vector.extract_strided_slice %177 {offsets = [0, 384], sizes = [2, 128], strides = [1, 1]} : vector<2x512xf32> to vector<2x128xf32>
    %188 = math.tanh %187 : vector<2x128xf32>
    %189 = arith.mulf %185, %173 : vector<2x128xf32>
    %190 = arith.mulf %184, %188 : vector<2x128xf32>
    %191 = arith.addf %189, %190 : vector<2x128xf32>
    %192 = math.tanh %191 : vector<2x128xf32>
    %193 = arith.mulf %186, %192 : vector<2x128xf32>
    %194 = vector.extract_strided_slice %170 {offsets = [2, 0], sizes = [2, 512], strides = [1, 1]} : vector<16x512xf32> to vector<2x512xf32>
    %195 = arith.truncf %193 : vector<2x128xf32> to vector<2x128xbf16>
    %cst_31 = arith.constant dense<0.000000e+00> : vector<2x512xf32>
    %196 = tpu.matmul %195, %171, %cst_31 {dimension_numbers = #tpu.dot_dimension_numbers<[1], [0], [0], [1], [0, 0, 1, 1], [], []>} : vector<2x128xbf16>, vector<128x512xbf16>, vector<2x512xf32> -> vector<2x512xf32>
    %197 = arith.addf %194, %196 : vector<2x512xf32>
    %198 = vector.extract_strided_slice %197 {offsets = [0, 0], sizes = [2, 384], strides = [1, 1]} : vector<2x512xf32> to vector<2x384xf32>
    %199 = arith.negf %198 : vector<2x384xf32>
    %200 = math.exp %199 : vector<2x384xf32>
    %cst_32 = arith.constant 1.000000e+00 : f32
    %201 = vector.broadcast %cst_32 : f32 to vector<2x384xf32>
    %202 = arith.addf %201, %200 : vector<2x384xf32>
    %203 = arith.divf %201, %202 : vector<2x384xf32>
    %204 = vector.extract_strided_slice %203 {offsets = [0, 0], sizes = [2, 128], strides = [1, 1]} : vector<2x384xf32> to vector<2x128xf32>
    %205 = vector.extract_strided_slice %203 {offsets = [0, 128], sizes = [2, 128], strides = [1, 1]} : vector<2x384xf32> to vector<2x128xf32>
    %206 = vector.extract_strided_slice %203 {offsets = [0, 256], sizes = [2, 128], strides = [1, 1]} : vector<2x384xf32> to vector<2x128xf32>
    %207 = vector.extract_strided_slice %197 {offsets = [0, 384], sizes = [2, 128], strides = [1, 1]} : vector<2x512xf32> to vector<2x128xf32>
    %208 = math.tanh %207 : vector<2x128xf32>
    %209 = arith.mulf %205, %191 : vector<2x128xf32>
    %210 = arith.mulf %204, %208 : vector<2x128xf32>
    %211 = arith.addf %209, %210 : vector<2x128xf32>
    %212 = math.tanh %211 : vector<2x128xf32>
    %213 = arith.mulf %206, %212 : vector<2x128xf32>
    %214 = vector.extract_strided_slice %170 {offsets = [4, 0], sizes = [2, 512], strides = [1, 1]} : vector<16x512xf32> to vector<2x512xf32>
    %215 = arith.truncf %213 : vector<2x128xf32> to vector<2x128xbf16>
    %cst_33 = arith.constant dense<0.000000e+00> : vector<2x512xf32>
    %216 = tpu.matmul %215, %171, %cst_33 {dimension_numbers = #tpu.dot_dimension_numbers<[1], [0], [0], [1], [0, 0, 1, 1], [], []>} : vector<2x128xbf16>, vector<128x512xbf16>, vector<2x512xf32> -> vector<2x512xf32>
    %217 = arith.addf %214, %216 : vector<2x512xf32>
    %218 = vector.extract_strided_slice %217 {offsets = [0, 0], sizes = [2, 384], strides = [1, 1]} : vector<2x512xf32> to vector<2x384xf32>
    %219 = arith.negf %218 : vector<2x384xf32>
    %220 = math.exp %219 : vector<2x384xf32>
    %cst_34 = arith.constant 1.000000e+00 : f32
    %221 = vector.broadcast %cst_34 : f32 to vector<2x384xf32>
    %222 = arith.addf %221, %220 : vector<2x384xf32>
    %223 = arith.divf %221, %222 : vector<2x384xf32>
    %224 = vector.extract_strided_slice %223 {offsets = [0, 0], sizes = [2, 128], strides = [1, 1]} : vector<2x384xf32> to vector<2x128xf32>
    %225 = vector.extract_strided_slice %223 {offsets = [0, 128], sizes = [2, 128], strides = [1, 1]} : vector<2x384xf32> to vector<2x128xf32>
    %226 = vector.extract_strided_slice %223 {offsets = [0, 256], sizes = [2, 128], strides = [1, 1]} : vector<2x384xf32> to vector<2x128xf32>
    %227 = vector.extract_strided_slice %217 {offsets = [0, 384], sizes = [2, 128], strides = [1, 1]} : vector<2x512xf32> to vector<2x128xf32>
    %228 = math.tanh %227 : vector<2x128xf32>
    %229 = arith.mulf %225, %211 : vector<2x128xf32>
    %230 = arith.mulf %224, %228 : vector<2x128xf32>
    %231 = arith.addf %229, %230 : vector<2x128xf32>
    %232 = math.tanh %231 : vector<2x128xf32>
    %233 = arith.mulf %226, %232 : vector<2x128xf32>
    %234 = vector.extract_strided_slice %170 {offsets = [6, 0], sizes = [2, 512], strides = [1, 1]} : vector<16x512xf32> to vector<2x512xf32>
    %235 = arith.truncf %233 : vector<2x128xf32> to vector<2x128xbf16>
    %cst_35 = arith.constant dense<0.000000e+00> : vector<2x512xf32>
    %236 = tpu.matmul %235, %171, %cst_35 {dimension_numbers = #tpu.dot_dimension_numbers<[1], [0], [0], [1], [0, 0, 1, 1], [], []>} : vector<2x128xbf16>, vector<128x512xbf16>, vector<2x512xf32> -> vector<2x512xf32>
    %237 = arith.addf %234, %236 : vector<2x512xf32>
    %238 = vector.extract_strided_slice %237 {offsets = [0, 0], sizes = [2, 384], strides = [1, 1]} : vector<2x512xf32> to vector<2x384xf32>
    %239 = arith.negf %238 : vector<2x384xf32>
    %240 = math.exp %239 : vector<2x384xf32>
    %cst_36 = arith.constant 1.000000e+00 : f32
    %241 = vector.broadcast %cst_36 : f32 to vector<2x384xf32>
    %242 = arith.addf %241, %240 : vector<2x384xf32>
    %243 = arith.divf %241, %242 : vector<2x384xf32>
    %244 = vector.extract_strided_slice %243 {offsets = [0, 0], sizes = [2, 128], strides = [1, 1]} : vector<2x384xf32> to vector<2x128xf32>
    %245 = vector.extract_strided_slice %243 {offsets = [0, 128], sizes = [2, 128], strides = [1, 1]} : vector<2x384xf32> to vector<2x128xf32>
    %246 = vector.extract_strided_slice %243 {offsets = [0, 256], sizes = [2, 128], strides = [1, 1]} : vector<2x384xf32> to vector<2x128xf32>
    %247 = vector.extract_strided_slice %237 {offsets = [0, 384], sizes = [2, 128], strides = [1, 1]} : vector<2x512xf32> to vector<2x128xf32>
    %248 = math.tanh %247 : vector<2x128xf32>
    %249 = arith.mulf %245, %231 : vector<2x128xf32>
    %250 = arith.mulf %244, %248 : vector<2x128xf32>
    %251 = arith.addf %249, %250 : vector<2x128xf32>
    %252 = math.tanh %251 : vector<2x128xf32>
    %253 = arith.mulf %246, %252 : vector<2x128xf32>
    %254 = vector.extract_strided_slice %170 {offsets = [8, 0], sizes = [2, 512], strides = [1, 1]} : vector<16x512xf32> to vector<2x512xf32>
    %255 = arith.truncf %253 : vector<2x128xf32> to vector<2x128xbf16>
    %cst_37 = arith.constant dense<0.000000e+00> : vector<2x512xf32>
    %256 = tpu.matmul %255, %171, %cst_37 {dimension_numbers = #tpu.dot_dimension_numbers<[1], [0], [0], [1], [0, 0, 1, 1], [], []>} : vector<2x128xbf16>, vector<128x512xbf16>, vector<2x512xf32> -> vector<2x512xf32>
    %257 = arith.addf %254, %256 : vector<2x512xf32>
    %258 = vector.extract_strided_slice %257 {offsets = [0, 0], sizes = [2, 384], strides = [1, 1]} : vector<2x512xf32> to vector<2x384xf32>
    %259 = arith.negf %258 : vector<2x384xf32>
    %260 = math.exp %259 : vector<2x384xf32>
    %cst_38 = arith.constant 1.000000e+00 : f32
    %261 = vector.broadcast %cst_38 : f32 to vector<2x384xf32>
    %262 = arith.addf %261, %260 : vector<2x384xf32>
    %263 = arith.divf %261, %262 : vector<2x384xf32>
    %264 = vector.extract_strided_slice %263 {offsets = [0, 0], sizes = [2, 128], strides = [1, 1]} : vector<2x384xf32> to vector<2x128xf32>
    %265 = vector.extract_strided_slice %263 {offsets = [0, 128], sizes = [2, 128], strides = [1, 1]} : vector<2x384xf32> to vector<2x128xf32>
    %266 = vector.extract_strided_slice %263 {offsets = [0, 256], sizes = [2, 128], strides = [1, 1]} : vector<2x384xf32> to vector<2x128xf32>
    %267 = vector.extract_strided_slice %257 {offsets = [0, 384], sizes = [2, 128], strides = [1, 1]} : vector<2x512xf32> to vector<2x128xf32>
    %268 = math.tanh %267 : vector<2x128xf32>
    %269 = arith.mulf %265, %251 : vector<2x128xf32>
    %270 = arith.mulf %264, %268 : vector<2x128xf32>
    %271 = arith.addf %269, %270 : vector<2x128xf32>
    %272 = math.tanh %271 : vector<2x128xf32>
    %273 = arith.mulf %266, %272 : vector<2x128xf32>
    %274 = vector.extract_strided_slice %170 {offsets = [10, 0], sizes = [2, 512], strides = [1, 1]} : vector<16x512xf32> to vector<2x512xf32>
    %275 = arith.truncf %273 : vector<2x128xf32> to vector<2x128xbf16>
    %cst_39 = arith.constant dense<0.000000e+00> : vector<2x512xf32>
    %276 = tpu.matmul %275, %171, %cst_39 {dimension_numbers = #tpu.dot_dimension_numbers<[1], [0], [0], [1], [0, 0, 1, 1], [], []>} : vector<2x128xbf16>, vector<128x512xbf16>, vector<2x512xf32> -> vector<2x512xf32>
    %277 = arith.addf %274, %276 : vector<2x512xf32>
    %278 = vector.extract_strided_slice %277 {offsets = [0, 0], sizes = [2, 384], strides = [1, 1]} : vector<2x512xf32> to vector<2x384xf32>
    %279 = arith.negf %278 : vector<2x384xf32>
    %280 = math.exp %279 : vector<2x384xf32>
    %cst_40 = arith.constant 1.000000e+00 : f32
    %281 = vector.broadcast %cst_40 : f32 to vector<2x384xf32>
    %282 = arith.addf %281, %280 : vector<2x384xf32>
    %283 = arith.divf %281, %282 : vector<2x384xf32>
    %284 = vector.extract_strided_slice %283 {offsets = [0, 0], sizes = [2, 128], strides = [1, 1]} : vector<2x384xf32> to vector<2x128xf32>
    %285 = vector.extract_strided_slice %283 {offsets = [0, 128], sizes = [2, 128], strides = [1, 1]} : vector<2x384xf32> to vector<2x128xf32>
    %286 = vector.extract_strided_slice %283 {offsets = [0, 256], sizes = [2, 128], strides = [1, 1]} : vector<2x384xf32> to vector<2x128xf32>
    %287 = vector.extract_strided_slice %277 {offsets = [0, 384], sizes = [2, 128], strides = [1, 1]} : vector<2x512xf32> to vector<2x128xf32>
    %288 = math.tanh %287 : vector<2x128xf32>
    %289 = arith.mulf %285, %271 : vector<2x128xf32>
    %290 = arith.mulf %284, %288 : vector<2x128xf32>
    %291 = arith.addf %289, %290 : vector<2x128xf32>
    %292 = math.tanh %291 : vector<2x128xf32>
    %293 = arith.mulf %286, %292 : vector<2x128xf32>
    %294 = vector.extract_strided_slice %170 {offsets = [12, 0], sizes = [2, 512], strides = [1, 1]} : vector<16x512xf32> to vector<2x512xf32>
    %295 = arith.truncf %293 : vector<2x128xf32> to vector<2x128xbf16>
    %cst_41 = arith.constant dense<0.000000e+00> : vector<2x512xf32>
    %296 = tpu.matmul %295, %171, %cst_41 {dimension_numbers = #tpu.dot_dimension_numbers<[1], [0], [0], [1], [0, 0, 1, 1], [], []>} : vector<2x128xbf16>, vector<128x512xbf16>, vector<2x512xf32> -> vector<2x512xf32>
    %297 = arith.addf %294, %296 : vector<2x512xf32>
    %298 = vector.extract_strided_slice %297 {offsets = [0, 0], sizes = [2, 384], strides = [1, 1]} : vector<2x512xf32> to vector<2x384xf32>
    %299 = arith.negf %298 : vector<2x384xf32>
    %300 = math.exp %299 : vector<2x384xf32>
    %cst_42 = arith.constant 1.000000e+00 : f32
    %301 = vector.broadcast %cst_42 : f32 to vector<2x384xf32>
    %302 = arith.addf %301, %300 : vector<2x384xf32>
    %303 = arith.divf %301, %302 : vector<2x384xf32>
    %304 = vector.extract_strided_slice %303 {offsets = [0, 0], sizes = [2, 128], strides = [1, 1]} : vector<2x384xf32> to vector<2x128xf32>
    %305 = vector.extract_strided_slice %303 {offsets = [0, 128], sizes = [2, 128], strides = [1, 1]} : vector<2x384xf32> to vector<2x128xf32>
    %306 = vector.extract_strided_slice %303 {offsets = [0, 256], sizes = [2, 128], strides = [1, 1]} : vector<2x384xf32> to vector<2x128xf32>
    %307 = vector.extract_strided_slice %297 {offsets = [0, 384], sizes = [2, 128], strides = [1, 1]} : vector<2x512xf32> to vector<2x128xf32>
    %308 = math.tanh %307 : vector<2x128xf32>
    %309 = arith.mulf %305, %291 : vector<2x128xf32>
    %310 = arith.mulf %304, %308 : vector<2x128xf32>
    %311 = arith.addf %309, %310 : vector<2x128xf32>
    %312 = math.tanh %311 : vector<2x128xf32>
    %313 = arith.mulf %306, %312 : vector<2x128xf32>
    %314 = vector.extract_strided_slice %170 {offsets = [14, 0], sizes = [2, 512], strides = [1, 1]} : vector<16x512xf32> to vector<2x512xf32>
    %315 = arith.truncf %313 : vector<2x128xf32> to vector<2x128xbf16>
    %cst_43 = arith.constant dense<0.000000e+00> : vector<2x512xf32>
    %316 = tpu.matmul %315, %171, %cst_43 {dimension_numbers = #tpu.dot_dimension_numbers<[1], [0], [0], [1], [0, 0, 1, 1], [], []>} : vector<2x128xbf16>, vector<128x512xbf16>, vector<2x512xf32> -> vector<2x512xf32>
    %317 = arith.addf %314, %316 : vector<2x512xf32>
    %318 = vector.extract_strided_slice %317 {offsets = [0, 0], sizes = [2, 384], strides = [1, 1]} : vector<2x512xf32> to vector<2x384xf32>
    %319 = arith.negf %318 : vector<2x384xf32>
    %320 = math.exp %319 : vector<2x384xf32>
    %cst_44 = arith.constant 1.000000e+00 : f32
    %321 = vector.broadcast %cst_44 : f32 to vector<2x384xf32>
    %322 = arith.addf %321, %320 : vector<2x384xf32>
    %323 = arith.divf %321, %322 : vector<2x384xf32>
    %324 = vector.extract_strided_slice %323 {offsets = [0, 0], sizes = [2, 128], strides = [1, 1]} : vector<2x384xf32> to vector<2x128xf32>
    %325 = vector.extract_strided_slice %323 {offsets = [0, 128], sizes = [2, 128], strides = [1, 1]} : vector<2x384xf32> to vector<2x128xf32>
    %326 = vector.extract_strided_slice %323 {offsets = [0, 256], sizes = [2, 128], strides = [1, 1]} : vector<2x384xf32> to vector<2x128xf32>
    %327 = vector.extract_strided_slice %317 {offsets = [0, 384], sizes = [2, 128], strides = [1, 1]} : vector<2x512xf32> to vector<2x128xf32>
    %328 = math.tanh %327 : vector<2x128xf32>
    %329 = arith.mulf %325, %311 : vector<2x128xf32>
    %330 = arith.mulf %324, %328 : vector<2x128xf32>
    %331 = arith.addf %329, %330 : vector<2x128xf32>
    %332 = math.tanh %331 : vector<2x128xf32>
    %333 = arith.mulf %326, %332 : vector<2x128xf32>
    %c0_45 = arith.constant 0 : index
    %c0_46 = arith.constant 0 : index
    %334 = vector.load %arg5[%c0_45, %c0_46] : memref<1x128xf32, #tpu.memory_space<vmem>>, vector<1x128xf32>
    %335 = vector.broadcast %334 : vector<1x128xf32> to vector<2x128xf32>
    %336 = arith.mulf %333, %335 : vector<2x128xf32>
    %cst_47 = arith.constant dense<0.000000e+00> : vector<2xf32>
    %337 = vector.multi_reduction <add>, %336, %cst_47 [1] : vector<2x128xf32> to vector<2xf32>
    %338 = vector.shape_cast %337 : vector<2xf32> to vector<2x1xf32>
    %c0_48 = arith.constant 0 : index
    %c0_49 = arith.constant 0 : index
    %339 = vector.load %arg6[%c0_48, %c0_49] : memref<1x1xf32, #tpu.memory_space<vmem>>, vector<1x1xf32>
    %340 = vector.broadcast %339 : vector<1x1xf32> to vector<2x1xf32>
    %341 = arith.addf %338, %340 : vector<2x1xf32>
    %c0_50 = arith.constant 0 : index
    %c0_51 = arith.constant 0 : index
    %342 = vector.load %arg7[%c0_50, %c0_51] : memref<2x1xf32, #tpu.memory_space<vmem>>, vector<2x1xf32>
    tpu.vector_store %arg7[%c0_50, %c0_51], %341 {strides = array<i32>} : memref<2x1xf32, #tpu.memory_space<vmem>>, vector<2x1xf32>,
    return
  }
}

</mosaic_0001>

<llo_original>
// kernel: lstm_model_forward.1
$region0: #{lstm_model_forward.1}
  #allocation0 [shape = 'u32[]', space=smem, size = 0x4, offset = 0x4, fixed_abs, tag = 'smem constant byte address 0x4 - core index']
  #allocation1 [shape = 'u32[144,128]{1,0:T(1,128)}', space=vmem, size = 0x12000, scoped, tag = 'internal scratch']
  #allocation2 [shape = 'f32[1,1]{1,0:T(1,128)S(1)}', space=vmem, size = 0x200, scoped, tag = 'scoped memory for lstm_model_forward.1']
  %s0 = inlined_call_operand.vmem [shape: f32[16,512], index: 0, kind: input, shape index: {}]
  %s1 = inlined_call_operand.hbm [shape: bf16[128,512], index: 1, kind: input, shape index: {}]
  %s2 = inlined_call_operand.hbm [shape: bf16[128,512], index: 2, kind: input, shape index: {}]
  %s3 = inlined_call_operand.hbm [shape: bf16[128,512], index: 3, kind: input, shape index: {}]
  %s4 = inlined_call_operand.vmem [shape: f32[1,512], index: 4, kind: input, shape index: {}]
  %s5 = inlined_call_operand.vmem [shape: f32[1,128], index: 5, kind: input, shape index: {}]
  %s6 = inlined_call_operand.<no memory space> [shape: f32[1,1], index: 6, kind: input, shape index: {}]
  %s7 = inlined_call_operand.vmem [shape: f32[2,1], index: 7, kind: output, shape index: {}]
  %s8 = sld [smem:[#allocation0]]
  $region50: #{lstm_model_forward.1} parent=0
    _
  %s10 = ssub.s32 1, %s8
  %s11 = scalar_select 0, %s10, %s8
  %v12 = vstv %s6
  %13 = vst [vmem:[#allocation2] sm:$0x1] %v12
  $region1: #{lstm_model_forward.1} parent=0
    #allocation3 [shape = 'u8[131072]{0}', space=vmem, size = 0x20000, scoped, tag = 'input window, operand 1, single buffered']
    #allocation4 [shape = 's32[1]{0}', space=sflag, size = 0x4, scoped, tag = 'scoped memory for lstm_model_forward.1']
    #allocation5 [shape = 'u8[131072]{0}', space=vmem, size = 0x20000, scoped, tag = 'input window, operand 2, single buffered']
    #allocation6 [shape = 's32[1]{0}', space=sflag, size = 0x4, scoped, tag = 'scoped memory for lstm_model_forward.1']
    #allocation7 [shape = 'u8[131072]{0}', space=vmem, size = 0x20000, scoped, tag = 'input window, operand 3, single buffered']
    %14 = vsyncpa [#allocation4], 0
    %15 = vsyncpa [#allocation6], 0
    // Predicated region
    $region2: #{lstm_model_forward.1} parent=1 // pred_check
      _
    $region3: #{lstm_model_forward.1} parent=1 // pred_check_branch
      %17 = sbr.rel (0) target = $region5
    $region4: #{lstm_model_forward.1} parent=1 // pred_region
      _
    $region5: #{lstm_model_forward.1} parent=1 // pred_fallthru
      _
    // Predicated region
    $region6: #{lstm_model_forward.1} parent=1 // pred_check
      _
    $region7: #{lstm_model_forward.1} parent=1 // pred_check_branch
      %19 = sbr.rel (0) target = $region9
    $region8: #{lstm_model_forward.1} parent=1 // pred_region
      %s21 = ssub.s32 4096, 4096
      %22 = vsyncadd [#allocation4], %s21
      %s23 = sshll.u32 [#allocation3], 4
      %s24 = int_to_ptr.vmem [resolvable:$true] %s23
      %29 = dma.hbm_to_vmem [thread:$0]  %s1, 4096, %s24, [#allocation4], 256, 256, 16
    $region9: #{lstm_model_forward.1} parent=1 // pred_fallthru
      _
    // Predicated region
    $region10: #{lstm_model_forward.1} parent=1 // pred_check
      _
    $region11: #{lstm_model_forward.1} parent=1 // pred_check_branch
      %31 = sbr.rel (0) target = $region13
    $region12: #{lstm_model_forward.1} parent=1 // pred_region
      %s33 = ssub.s32 4096, 4096
      %34 = vsyncadd [#allocation6], %s33
      %s35 = sshll.u32 [#allocation5], 4
      %s36 = int_to_ptr.vmem [resolvable:$true] %s35
      %41 = dma.hbm_to_vmem [thread:$0]  %s2, 4096, %s36, [#allocation6], 256, 256, 16
    $region13: #{lstm_model_forward.1} parent=1 // pred_fallthru
      _
    // Predicated region
    $region14: #{lstm_model_forward.1} parent=1 // pred_check
      _
    $region15: #{lstm_model_forward.1} parent=1 // pred_check_branch
      %43 = sbr.rel (0) target = $region17
    $region16: #{lstm_model_forward.1} parent=1 // pred_region
      %s45 = ssub.s32 4096, 4096
      %46 = vsyncadd [#allocation6], %s45
      %s47 = sshll.u32 [#allocation7], 4
      %s48 = int_to_ptr.vmem [resolvable:$true] %s47
      %53 = dma.hbm_to_vmem [thread:$0]  %s3, 4096, %s48, [#allocation6], 256, 256, 16
    $region17: #{lstm_model_forward.1} parent=1 // pred_fallthru
      _
    // Predicated region
    $region18: #{lstm_model_forward.1} parent=1 // pred_check
      _
    $region19: #{lstm_model_forward.1} parent=1 // pred_check_branch
      %55 = sbr.rel (0) target = $region21
    $region20: #{lstm_model_forward.1} parent=1 // pred_region
      _
    $region21: #{lstm_model_forward.1} parent=1 // pred_fallthru
      _
    // Predicated region
    $region22: #{lstm_model_forward.1} parent=1 // pred_check
      _
    $region23: #{lstm_model_forward.1} parent=1 // pred_check_branch
      %57 = sbr.rel (0) target = $region25
    $region24: #{lstm_model_forward.1} parent=1 // pred_region
      _
    $region25: #{lstm_model_forward.1} parent=1 // pred_fallthru
      _
    // Predicated region
    $region26: #{lstm_model_forward.1} parent=1 // pred_check
      _
    $region27: #{lstm_model_forward.1} parent=1 // pred_check_branch
      %59 = sbr.rel (0) target = $region29
    $region28: #{lstm_model_forward.1} parent=1 // pred_region
      _
    $region29: #{lstm_model_forward.1} parent=1 // pred_fallthru
      _
    // Predicated region
    $region30: #{lstm_model_forward.1} parent=1 // pred_check
      _
    $region31: #{lstm_model_forward.1} parent=1 // pred_check_branch
      %61 = sbr.rel (0) target = $region33
    $region32: #{lstm_model_forward.1} parent=1 // pred_region
      %62 = dma.done [#allocation4], 4096
    $region33: #{lstm_model_forward.1} parent=1 // pred_fallthru
      _
    // Predicated region
    $region34: #{lstm_model_forward.1} parent=1 // pred_check
      _
    $region35: #{lstm_model_forward.1} parent=1 // pred_check_branch
      %64 = sbr.rel (0) target = $region37
    $region36: #{lstm_model_forward.1} parent=1 // pred_region
      %65 = dma.done [#allocation6], 4096
    $region37: #{lstm_model_forward.1} parent=1 // pred_fallthru
      _
    // Predicated region
    $region38: #{lstm_model_forward.1} parent=1 // pred_check
      _
    $region39: #{lstm_model_forward.1} parent=1 // pred_check_branch
      %67 = sbr.rel (0) target = $region41
    $region40: #{lstm_model_forward.1} parent=1 // pred_region
      %68 = dma.done [#allocation6], 4096
    $region41: #{lstm_model_forward.1} parent=1 // pred_fallthru
      _
    %v70 = vld [vmem:[#allocation3] sm:$0xff]
    %v71 = vld [vmem:[#allocation3 + $0x8] sm:$0xff]
    %v72 = vld [vmem:[#allocation3 + $0x10] sm:$0xff]
    %v73 = vld [vmem:[#allocation3 + $0x18] sm:$0xff]
    %v74 = vld [vmem:[#allocation3 + $0x20] sm:$0xff]
    %v75 = vld [vmem:[#allocation3 + $0x28] sm:$0xff]
    %v76 = vld [vmem:[#allocation3 + $0x30] sm:$0xff]
    %v77 = vld [vmem:[#allocation3 + $0x38] sm:$0xff]
    %v78 = vld [vmem:[#allocation3 + $0x40] sm:$0xff]
    %v79 = vld [vmem:[#allocation3 + $0x48] sm:$0xff]
    %v80 = vld [vmem:[#allocation3 + $0x50] sm:$0xff]
    %v81 = vld [vmem:[#allocation3 + $0x58] sm:$0xff]
    %v82 = vld [vmem:[#allocation3 + $0x60] sm:$0xff]
    %v83 = vld [vmem:[#allocation3 + $0x68] sm:$0xff]
    %v84 = vld [vmem:[#allocation3 + $0x70] sm:$0xff]
    %v85 = vld [vmem:[#allocation3 + $0x78] sm:$0xff]
    %v86 = vld [vmem:[#allocation3 + $0x80] sm:$0xff]
    %v87 = vld [vmem:[#allocation3 + $0x88] sm:$0xff]
    %v88 = vld [vmem:[#allocation3 + $0x90] sm:$0xff]
    %v89 = vld [vmem:[#allocation3 + $0x98] sm:$0xff]
    %v90 = vld [vmem:[#allocation3 + $0xa0] sm:$0xff]
    %v91 = vld [vmem:[#allocation3 + $0xa8] sm:$0xff]
    %v92 = vld [vmem:[#allocation3 + $0xb0] sm:$0xff]
    %v93 = vld [vmem:[#allocation3 + $0xb8] sm:$0xff]
    %v94 = vld [vmem:[#allocation3 + $0xc0] sm:$0xff]
    %v95 = vld [vmem:[#allocation3 + $0xc8] sm:$0xff]
    %v96 = vld [vmem:[#allocation3 + $0xd0] sm:$0xff]
    %v97 = vld [vmem:[#allocation3 + $0xd8] sm:$0xff]
    %v98 = vld [vmem:[#allocation3 + $0xe0] sm:$0xff]
    %v99 = vld [vmem:[#allocation3 + $0xe8] sm:$0xff]
    %v100 = vld [vmem:[#allocation3 + $0xf0] sm:$0xff]
    %v101 = vld [vmem:[#allocation3 + $0xf8] sm:$0xff]
    %v102 = vld [vmem:[%s0] sm:$0xff]
    %v103 = vld [vmem:[%s0 + $0x8] sm:$0xff]
    %v104 = vld [vmem:[%s0 + $0x10] sm:$0xff]
    %v105 = vld [vmem:[%s0 + $0x18] sm:$0xff]
    %v106 = vld [vmem:[%s0 + $0x20] sm:$0xff]
    %v107 = vld [vmem:[%s0 + $0x28] sm:$0xff]
    %v108 = vld [vmem:[%s0 + $0x30] sm:$0xff]
    %v109 = vld [vmem:[%s0 + $0x38] sm:$0xff]
    %v142 = vunpack.c.l.b16 %v70
    %v143 = vunpack.c.h.b16 %v70
    %v144 = vunpack.c.l.b16 %v71
    %v145 = vunpack.c.h.b16 %v71
    %v146 = vunpack.c.l.b16 %v72
    %v147 = vunpack.c.h.b16 %v72
    %v148 = vunpack.c.l.b16 %v73
    %v149 = vunpack.c.h.b16 %v73
    %v150 = vunpack.c.l.b16 %v74
    %v151 = vunpack.c.h.b16 %v74
    %v152 = vunpack.c.l.b16 %v75
    %v153 = vunpack.c.h.b16 %v75
    %v154 = vunpack.c.l.b16 %v76
    %v155 = vunpack.c.h.b16 %v76
    %v156 = vunpack.c.l.b16 %v77
    %v157 = vunpack.c.h.b16 %v77
    %v158 = vunpack.c.l.b16 %v78
    %v159 = vunpack.c.h.b16 %v78
    %v160 = vunpack.c.l.b16 %v79
    %v161 = vunpack.c.h.b16 %v79
    %v162 = vunpack.c.l.b16 %v80
    %v163 = vunpack.c.h.b16 %v80
    %v164 = vunpack.c.l.b16 %v81
    %v165 = vunpack.c.h.b16 %v81
    %v166 = vunpack.c.l.b16 %v82
    %v167 = vunpack.c.h.b16 %v82
    %v168 = vunpack.c.l.b16 %v83
    %v169 = vunpack.c.h.b16 %v83
    %v170 = vunpack.c.l.b16 %v84
    %v171 = vunpack.c.h.b16 %v84
    %v172 = vunpack.c.l.b16 %v85
    %v173 = vunpack.c.h.b16 %v85
    %v174 = vunpack.c.l.b16 %v86
    %v175 = vunpack.c.h.b16 %v86
    %v176 = vunpack.c.l.b16 %v87
    %v177 = vunpack.c.h.b16 %v87
    %v178 = vunpack.c.l.b16 %v88
    %v179 = vunpack.c.h.b16 %v88
    %v180 = vunpack.c.l.b16 %v89
    %v181 = vunpack.c.h.b16 %v89
    %v182 = vunpack.c.l.b16 %v90
    %v183 = vunpack.c.h.b16 %v90
    %v184 = vunpack.c.l.b16 %v91
    %v185 = vunpack.c.h.b16 %v91
    %v186 = vunpack.c.l.b16 %v92
    %v187 = vunpack.c.h.b16 %v92
    %v188 = vunpack.c.l.b16 %v93
    %v189 = vunpack.c.h.b16 %v93
    %v190 = vunpack.c.l.b16 %v94
    %v191 = vunpack.c.h.b16 %v94
    %v192 = vunpack.c.l.b16 %v95
    %v193 = vunpack.c.h.b16 %v95
    %v194 = vunpack.c.l.b16 %v96
    %v195 = vunpack.c.h.b16 %v96
    %v196 = vunpack.c.l.b16 %v97
    %v197 = vunpack.c.h.b16 %v97
    %v198 = vunpack.c.l.b16 %v98
    %v199 = vunpack.c.h.b16 %v98
    %v200 = vunpack.c.l.b16 %v99
    %v201 = vunpack.c.h.b16 %v99
    %v202 = vunpack.c.l.b16 %v100
    %v203 = vunpack.c.h.b16 %v100
    %v204 = vunpack.c.l.b16 %v101
    %v205 = vunpack.c.h.b16 %v101
    %v206 = vpack.c.b16 %v146, %v142
    %v207 = vpack.c.b16 %v147, %v143
    %v208 = vpack.c.b16 %v148, %v144
    %v209 = vpack.c.b16 %v149, %v145
    %v210 = vpack.c.b16 %v154, %v150
    %v211 = vpack.c.b16 %v155, %v151
    %v212 = vpack.c.b16 %v156, %v152
    %v213 = vpack.c.b16 %v157, %v153
    %v214 = vpack.c.b16 %v162, %v158
    %v215 = vpack.c.b16 %v163, %v159
    %v216 = vpack.c.b16 %v164, %v160
    %v217 = vpack.c.b16 %v165, %v161
    %v218 = vpack.c.b16 %v170, %v166
    %v219 = vpack.c.b16 %v171, %v167
    %v220 = vpack.c.b16 %v172, %v168
    %v221 = vpack.c.b16 %v173, %v169
    %v222 = vpack.c.b16 %v178, %v174
    %v223 = vpack.c.b16 %v179, %v175
    %v224 = vpack.c.b16 %v180, %v176
    %v225 = vpack.c.b16 %v181, %v177
    %v226 = vpack.c.b16 %v186, %v182
    %v227 = vpack.c.b16 %v187, %v183
    %v228 = vpack.c.b16 %v188, %v184
    %v229 = vpack.c.b16 %v189, %v185
    %v230 = vpack.c.b16 %v194, %v190
    %v231 = vpack.c.b16 %v195, %v191
    %v232 = vpack.c.b16 %v196, %v192
    %v233 = vpack.c.b16 %v197, %v193
    %v234 = vpack.c.b16 %v202, %v198
    %v235 = vpack.c.b16 %v203, %v199
    %v236 = vpack.c.b16 %v204, %v200
    %v237 = vpack.c.b16 %v205, %v201
    %270 = vmatprep.subr.bf16.mxu0 %v207
    %271 = vmatpush1.bf16.msra.mxu0 %v206
    %272 = vmatprep.subr.bf16.mxu0 %v211
    %273 = vmatpush1.bf16.msra.mxu0 %v210
    %274 = vmatprep.subr.bf16.mxu0 %v215
    %275 = vmatpush1.bf16.msra.mxu0 %v214
    %276 = vmatprep.subr.bf16.mxu0 %v219
    %277 = vmatpush1.bf16.msra.mxu0 %v218
    %278 = vmatprep.subr.bf16.mxu0 %v223
    %279 = vmatpush1.bf16.msra.mxu0 %v222
    %280 = vmatprep.subr.bf16.mxu0 %v227
    %281 = vmatpush1.bf16.msra.mxu0 %v226
    %282 = vmatprep.subr.bf16.mxu0 %v231
    %283 = vmatpush1.bf16.msra.mxu0 %v230
    %284 = vmatprep.subr.bf16.mxu0 %v235
    %285 = vmatpush1.bf16.msra.mxu0 %v234
    %286 = vmatprep.subr.bf16.mxu0 0
    %287 = vmatpush1.bf16.msra.mxu0 0
    %288 = vmatprep.subr.bf16.mxu0 0
    %289 = vmatpush1.bf16.msra.mxu0 0
    %290 = vmatprep.subr.bf16.mxu0 0
    %291 = vmatpush1.bf16.msra.mxu0 0
    %292 = vmatprep.subr.bf16.mxu0 0
    %293 = vmatpush1.bf16.msra.mxu0 0
    %294 = vmatprep.subr.bf16.mxu0 0
    %295 = vmatpush1.bf16.msra.mxu0 0
    %296 = vmatprep.subr.bf16.mxu0 0
    %297 = vmatpush1.bf16.msra.mxu0 0
    %298 = vmatprep.subr.bf16.mxu0 0
    %299 = vmatpush1.bf16.msra.mxu0 0
    %300 = vmatprep.subr.bf16.mxu0 0
    %301 = vmatpush1.bf16.msra.mxu0 0
    %302 = vmatprep.mubr.bf16.mxu0 0
    %303 = vmatmul.mubr.bf16.gmra.mrb[0].mxu0 0
    %v304 = vpop.f32.mrb[0].mxu0
    %v305 = vadd.f32 0.0, %v304
    %v306 = vpop.f32.mrb[0].mxu0
    %v307 = vadd.f32 0.0, %v306
    %v308 = vpop.f32.mrb[0].mxu0
    %v309 = vpop.f32.mrb[0].mxu0
    %310 = vdwg.mxu0
    %311 = vmatprep.subr.bf16.mxu0 %v209
    %312 = vmatpush1.bf16.msra.mxu0 %v208
    %313 = vmatprep.subr.bf16.mxu0 %v213
    %314 = vmatpush1.bf16.msra.mxu0 %v212
    %315 = vmatprep.subr.bf16.mxu0 %v217
    %316 = vmatpush1.bf16.msra.mxu0 %v216
    %317 = vmatprep.subr.bf16.mxu0 %v221
    %318 = vmatpush1.bf16.msra.mxu0 %v220
    %319 = vmatprep.subr.bf16.mxu0 %v225
    %320 = vmatpush1.bf16.msra.mxu0 %v224
    %321 = vmatprep.subr.bf16.mxu0 %v229
    %322 = vmatpush1.bf16.msra.mxu0 %v228
    %323 = vmatprep.subr.bf16.mxu0 %v233
    %324 = vmatpush1.bf16.msra.mxu0 %v232
    %325 = vmatprep.subr.bf16.mxu0 %v237
    %326 = vmatpush1.bf16.msra.mxu0 %v236
    %327 = vmatprep.subr.bf16.mxu0 0
    %328 = vmatpush1.bf16.msra.mxu0 0
    %329 = vmatprep.subr.bf16.mxu0 0
    %330 = vmatpush1.bf16.msra.mxu0 0
    %331 = vmatprep.subr.bf16.mxu0 0
    %332 = vmatpush1.bf16.msra.mxu0 0
    %333 = vmatprep.subr.bf16.mxu0 0
    %334 = vmatpush1.bf16.msra.mxu0 0
    %335 = vmatprep.subr.bf16.mxu0 0
    %336 = vmatpush1.bf16.msra.mxu0 0
    %337 = vmatprep.subr.bf16.mxu0 0
    %338 = vmatpush1.bf16.msra.mxu0 0
    %339 = vmatprep.subr.bf16.mxu0 0
    %340 = vmatpush1.bf16.msra.mxu0 0
    %341 = vmatprep.subr.bf16.mxu0 0
    %342 = vmatpush1.bf16.msra.mxu0 0
    %343 = vmatprep.mubr.bf16.mxu0 0
    %344 = vmatmul.mubr.bf16.gmra.mrb[0].mxu0 0
    %v345 = vpop.f32.mrb[0].mxu0
    %v346 = vadd.f32 0.0, %v345
    %v347 = vpop.f32.mrb[0].mxu0
    %v348 = vadd.f32 0.0, %v347
    %v349 = vpop.f32.mrb[0].mxu0
    %v350 = vpop.f32.mrb[0].mxu0
    %351 = vdwg.mxu0
    %v352 = vadd.f32 %v102, %v305
    %v353 = vadd.f32 %v103, %v307
    %v354 = vadd.f32 %v104, %v346
    %v355 = vadd.f32 %v105, %v348
    %v356 = vxor.u32 %v352, 2147483648
    %v357 = vxor.u32 %v353, 2147483648
    %v358 = vxor.u32 %v354, 2147483648
    %v359 = vmul.f32 %v356, 1.442695
    %v360 = vpow.pop %v359
    %v361 = vmul.f32 %v357, 1.442695
    %v362 = vpow.pop %v361
    %v363 = vmul.f32 %v358, 1.442695
    %v364 = vpow.pop %v363
    %v365 = vadd.f32 %v360, 1.0
    %v366 = vadd.f32 %v362, 1.0
    %v367 = vadd.f32 %v364, 1.0
    %v368 = vrcp.pop %v365
    %v369 = vmul.f32 1.0, %v368
    %v370 = vrcp.pop %v366
    %v371 = vmul.f32 1.0, %v370
    %v372 = vrcp.pop %v367
    %v373 = vmul.f32 1.0, %v372
    %v374 = vtanh.pop %v355
    %v375 = vmul.f32 %v371, 0.0
    %v376 = vmul.f32 %v369, %v374
    %v377 = vadd.f32 %v375, %v376
    %v378 = vtanh.pop %v377
    %v379 = vmul.f32 %v373, %v378
    %v380 = vpack.c.bf16 %v379, %v379
    %381 = vmatprep.subr.bf16.mxu0 %v207
    %382 = vmatpush1.bf16.msra.mxu0 %v206
    %383 = vmatprep.subr.bf16.mxu0 %v211
    %384 = vmatpush1.bf16.msra.mxu0 %v210
    %385 = vmatprep.subr.bf16.mxu0 %v215
    %386 = vmatpush1.bf16.msra.mxu0 %v214
    %387 = vmatprep.subr.bf16.mxu0 %v219
    %388 = vmatpush1.bf16.msra.mxu0 %v218
    %389 = vmatprep.subr.bf16.mxu0 %v223
    %390 = vmatpush1.bf16.msra.mxu0 %v222
    %391 = vmatprep.subr.bf16.mxu0 %v227
    %392 = vmatpush1.bf16.msra.mxu0 %v226
    %393 = vmatprep.subr.bf16.mxu0 %v231
    %394 = vmatpush1.bf16.msra.mxu0 %v230
    %395 = vmatprep.subr.bf16.mxu0 %v235
    %396 = vmatpush1.bf16.msra.mxu0 %v234
    %397 = vmatprep.subr.bf16.mxu0 0
    %398 = vmatpush1.bf16.msra.mxu0 0
    %399 = vmatprep.subr.bf16.mxu0 0
    %400 = vmatpush1.bf16.msra.mxu0 0
    %401 = vmatprep.subr.bf16.mxu0 0
    %402 = vmatpush1.bf16.msra.mxu0 0
    %403 = vmatprep.subr.bf16.mxu0 0
    %404 = vmatpush1.bf16.msra.mxu0 0
    %405 = vmatprep.subr.bf16.mxu0 0
    %406 = vmatpush1.bf16.msra.mxu0 0
    %407 = vmatprep.subr.bf16.mxu0 0
    %408 = vmatpush1.bf16.msra.mxu0 0
    %409 = vmatprep.subr.bf16.mxu0 0
    %410 = vmatpush1.bf16.msra.mxu0 0
    %411 = vmatprep.subr.bf16.mxu0 0
    %412 = vmatpush1.bf16.msra.mxu0 0
    %413 = vmatprep.mubr.bf16.mxu0 0
    %414 = vmatmul.mubr.bf16.gmra.mrb[0].mxu0 %v380
    %v415 = vpop.f32.mrb[0].mxu0
    %v416 = vadd.f32 0.0, %v415
    %v417 = vpop.f32.mrb[0].mxu0
    %v418 = vadd.f32 0.0, %v417
    %v419 = vpop.f32.mrb[0].mxu0
    %v420 = vpop.f32.mrb[0].mxu0
    %421 = vdwg.mxu0
    %422 = vmatprep.subr.bf16.mxu0 %v209
    %423 = vmatpush1.bf16.msra.mxu0 %v208
    %424 = vmatprep.subr.bf16.mxu0 %v213
    %425 = vmatpush1.bf16.msra.mxu0 %v212
    %426 = vmatprep.subr.bf16.mxu0 %v217
    %427 = vmatpush1.bf16.msra.mxu0 %v216
    %428 = vmatprep.subr.bf16.mxu0 %v221
    %429 = vmatpush1.bf16.msra.mxu0 %v220
    %430 = vmatprep.subr.bf16.mxu0 %v225
    %431 = vmatpush1.bf16.msra.mxu0 %v224
    %432 = vmatprep.subr.bf16.mxu0 %v229
    %433 = vmatpush1.bf16.msra.mxu0 %v228
    %434 = vmatprep.subr.bf16.mxu0 %v233
    %435 = vmatpush1.bf16.msra.mxu0 %v232
    %436 = vmatprep.subr.bf16.mxu0 %v237
    %437 = vmatpush1.bf16.msra.mxu0 %v236
    %438 = vmatprep.subr.bf16.mxu0 0
    %439 = vmatpush1.bf16.msra.mxu0 0
    %440 = vmatprep.subr.bf16.mxu0 0
    %441 = vmatpush1.bf16.msra.mxu0 0
    %442 = vmatprep.subr.bf16.mxu0 0
    %443 = vmatpush1.bf16.msra.mxu0 0
    %444 = vmatprep.subr.bf16.mxu0 0
    %445 = vmatpush1.bf16.msra.mxu0 0
    %446 = vmatprep.subr.bf16.mxu0 0
    %447 = vmatpush1.bf16.msra.mxu0 0
    %448 = vmatprep.subr.bf16.mxu0 0
    %449 = vmatpush1.bf16.msra.mxu0 0
    %450 = vmatprep.subr.bf16.mxu0 0
    %451 = vmatpush1.bf16.msra.mxu0 0
    %452 = vmatprep.subr.bf16.mxu0 0
    %453 = vmatpush1.bf16.msra.mxu0 0
    %454 = vmatprep.mubr.bf16.mxu0 0
    %455 = vmatmul.mubr.bf16.gmra.mrb[0].mxu0 %v380
    %v456 = vpop.f32.mrb[0].mxu0
    %v457 = vadd.f32 0.0, %v456
    %v458 = vpop.f32.mrb[0].mxu0
    %v459 = vadd.f32 0.0, %v458
    %v460 = vpop.f32.mrb[0].mxu0
    %v461 = vpop.f32.mrb[0].mxu0
    %462 = vdwg.mxu0
    %v467 = vrot.slane %v416, 6
    %v468 = vrot.slane %v418, 6
    %v469 = vrot.slane %v457, 6
    %v470 = vrot.slane %v459, 6
    %v475 = vadd.f32 %v102, %v467
    %v476 = vadd.f32 %v103, %v468
    %v477 = vadd.f32 %v104, %v469
    %v478 = vadd.f32 %v105, %v470
    %v479 = vxor.u32 %v475, 2147483648
    %v480 = vxor.u32 %v476, 2147483648
    %v481 = vxor.u32 %v477, 2147483648
    %v482 = vmul.f32 %v479, 1.442695
    %v483 = vpow.pop %v482
    %v484 = vmul.f32 %v480, 1.442695
    %v485 = vpow.pop %v484
    %v486 = vmul.f32 %v481, 1.442695
    %v487 = vpow.pop %v486
    %v488 = vadd.f32 %v483, 1.0
    %v489 = vadd.f32 %v485, 1.0
    %v490 = vadd.f32 %v487, 1.0
    %v491 = vrcp.pop %v488
    %v492 = vmul.f32 1.0, %v491
    %v493 = vrcp.pop %v489
    %v494 = vmul.f32 1.0, %v493
    %v495 = vrcp.pop %v490
    %v496 = vmul.f32 1.0, %v495
    %v497 = vtanh.pop %v478
    %v499 = vrot.slane %v377, 6
    %v501 = vmul.f32 %v494, %v499
    %v502 = vmul.f32 %v492, %v497
    %v503 = vadd.f32 %v501, %v502
    %v504 = vtanh.pop %v503
    %v505 = vmul.f32 %v496, %v504
    %v506 = vpack.c.bf16 %v505, %v505
    %v508 = vrot.slane %v506, 1
    %510 = vmatprep.subr.bf16.mxu0 %v207
    %511 = vmatpush1.bf16.msra.mxu0 %v206
    %512 = vmatprep.subr.bf16.mxu0 %v211
    %513 = vmatpush1.bf16.msra.mxu0 %v210
    %514 = vmatprep.subr.bf16.mxu0 %v215
    %515 = vmatpush1.bf16.msra.mxu0 %v214
    %516 = vmatprep.subr.bf16.mxu0 %v219
    %517 = vmatpush1.bf16.msra.mxu0 %v218
    %518 = vmatprep.subr.bf16.mxu0 %v223
    %519 = vmatpush1.bf16.msra.mxu0 %v222
    %520 = vmatprep.subr.bf16.mxu0 %v227
    %521 = vmatpush1.bf16.msra.mxu0 %v226
    %522 = vmatprep.subr.bf16.mxu0 %v231
    %523 = vmatpush1.bf16.msra.mxu0 %v230
    %524 = vmatprep.subr.bf16.mxu0 %v235
    %525 = vmatpush1.bf16.msra.mxu0 %v234
    %526 = vmatprep.subr.bf16.mxu0 0
    %527 = vmatpush1.bf16.msra.mxu0 0
    %528 = vmatprep.subr.bf16.mxu0 0
    %529 = vmatpush1.bf16.msra.mxu0 0
    %530 = vmatprep.subr.bf16.mxu0 0
    %531 = vmatpush1.bf16.msra.mxu0 0
    %532 = vmatprep.subr.bf16.mxu0 0
    %533 = vmatpush1.bf16.msra.mxu0 0
    %534 = vmatprep.subr.bf16.mxu0 0
    %535 = vmatpush1.bf16.msra.mxu0 0
    %536 = vmatprep.subr.bf16.mxu0 0
    %537 = vmatpush1.bf16.msra.mxu0 0
    %538 = vmatprep.subr.bf16.mxu0 0
    %539 = vmatpush1.bf16.msra.mxu0 0
    %540 = vmatprep.subr.bf16.mxu0 0
    %541 = vmatpush1.bf16.msra.mxu0 0
    %542 = vmatprep.mubr.bf16.mxu0 0
    %543 = vmatmul.mubr.bf16.gmra.mrb[0].mxu0 %v508
    %v544 = vpop.f32.mrb[0].mxu0
    %v545 = vadd.f32 0.0, %v544
    %v546 = vpop.f32.mrb[0].mxu0
    %v547 = vadd.f32 0.0, %v546
    %v548 = vpop.f32.mrb[0].mxu0
    %v549 = vpop.f32.mrb[0].mxu0
    %550 = vdwg.mxu0
    %551 = vmatprep.subr.bf16.mxu0 %v209
    %552 = vmatpush1.bf16.msra.mxu0 %v208
    %553 = vmatprep.subr.bf16.mxu0 %v213
    %554 = vmatpush1.bf16.msra.mxu0 %v212
    %555 = vmatprep.subr.bf16.mxu0 %v217
    %556 = vmatpush1.bf16.msra.mxu0 %v216
    %557 = vmatprep.subr.bf16.mxu0 %v221
    %558 = vmatpush1.bf16.msra.mxu0 %v220
    %559 = vmatprep.subr.bf16.mxu0 %v225
    %560 = vmatpush1.bf16.msra.mxu0 %v224
    %561 = vmatprep.subr.bf16.mxu0 %v229
    %562 = vmatpush1.bf16.msra.mxu0 %v228
    %563 = vmatprep.subr.bf16.mxu0 %v233
    %564 = vmatpush1.bf16.msra.mxu0 %v232
    %565 = vmatprep.subr.bf16.mxu0 %v237
    %566 = vmatpush1.bf16.msra.mxu0 %v236
    %567 = vmatprep.subr.bf16.mxu0 0
    %568 = vmatpush1.bf16.msra.mxu0 0
    %569 = vmatprep.subr.bf16.mxu0 0
    %570 = vmatpush1.bf16.msra.mxu0 0
    %571 = vmatprep.subr.bf16.mxu0 0
    %572 = vmatpush1.bf16.msra.mxu0 0
    %573 = vmatprep.subr.bf16.mxu0 0
    %574 = vmatpush1.bf16.msra.mxu0 0
    %575 = vmatprep.subr.bf16.mxu0 0
    %576 = vmatpush1.bf16.msra.mxu0 0
    %577 = vmatprep.subr.bf16.mxu0 0
    %578 = vmatpush1.bf16.msra.mxu0 0
    %579 = vmatprep.subr.bf16.mxu0 0
    %580 = vmatpush1.bf16.msra.mxu0 0
    %581 = vmatprep.subr.bf16.mxu0 0
    %582 = vmatpush1.bf16.msra.mxu0 0
    %583 = vmatprep.mubr.bf16.mxu0 0
    %584 = vmatmul.mubr.bf16.gmra.mrb[0].mxu0 %v508
    %v585 = vpop.f32.mrb[0].mxu0
    %v586 = vadd.f32 0.0, %v585
    %v587 = vpop.f32.mrb[0].mxu0
    %v588 = vadd.f32 0.0, %v587
    %v589 = vpop.f32.mrb[0].mxu0
    %v590 = vpop.f32.mrb[0].mxu0
    %591 = vdwg.mxu0
    %v596 = vrot.slane %v545, 4
    %v597 = vrot.slane %v547, 4
    %v598 = vrot.slane %v586, 4
    %v599 = vrot.slane %v588, 4
    %v604 = vadd.f32 %v102, %v596
    %v605 = vadd.f32 %v103, %v597
    %v606 = vadd.f32 %v104, %v598
    %v607 = vadd.f32 %v105, %v599
    %v608 = vxor.u32 %v604, 2147483648
    %v609 = vxor.u32 %v605, 2147483648
    %v610 = vxor.u32 %v606, 2147483648
    %v611 = vmul.f32 %v608, 1.442695
    %v612 = vpow.pop %v611
    %v613 = vmul.f32 %v609, 1.442695
    %v614 = vpow.pop %v613
    %v615 = vmul.f32 %v610, 1.442695
    %v616 = vpow.pop %v615
    %v617 = vadd.f32 %v612, 1.0
    %v618 = vadd.f32 %v614, 1.0
    %v619 = vadd.f32 %v616, 1.0
    %v620 = vrcp.pop %v617
    %v621 = vmul.f32 1.0, %v620
    %v622 = vrcp.pop %v618
    %v623 = vmul.f32 1.0, %v622
    %v624 = vrcp.pop %v619
    %v625 = vmul.f32 1.0, %v624
    %v626 = vtanh.pop %v607
    %v628 = vrot.slane %v503, 6
    %v630 = vmul.f32 %v623, %v628
    %v631 = vmul.f32 %v621, %v626
    %v632 = vadd.f32 %v630, %v631
    %v633 = vtanh.pop %v632
    %v634 = vmul.f32 %v625, %v633
    %v635 = vpack.c.bf16 %v634, %v634
    %v637 = vrot.slane %v635, 2
    %639 = vmatprep.subr.bf16.mxu0 %v207
    %640 = vmatpush1.bf16.msra.mxu0 %v206
    %641 = vmatprep.subr.bf16.mxu0 %v211
    %642 = vmatpush1.bf16.msra.mxu0 %v210
    %643 = vmatprep.subr.bf16.mxu0 %v215
    %644 = vmatpush1.bf16.msra.mxu0 %v214
    %645 = vmatprep.subr.bf16.mxu0 %v219
    %646 = vmatpush1.bf16.msra.mxu0 %v218
    %647 = vmatprep.subr.bf16.mxu0 %v223
    %648 = vmatpush1.bf16.msra.mxu0 %v222
    %649 = vmatprep.subr.bf16.mxu0 %v227
    %650 = vmatpush1.bf16.msra.mxu0 %v226
    %651 = vmatprep.subr.bf16.mxu0 %v231
    %652 = vmatpush1.bf16.msra.mxu0 %v230
    %653 = vmatprep.subr.bf16.mxu0 %v235
    %654 = vmatpush1.bf16.msra.mxu0 %v234
    %655 = vmatprep.subr.bf16.mxu0 0
    %656 = vmatpush1.bf16.msra.mxu0 0
    %657 = vmatprep.subr.bf16.mxu0 0
    %658 = vmatpush1.bf16.msra.mxu0 0
    %659 = vmatprep.subr.bf16.mxu0 0
    %660 = vmatpush1.bf16.msra.mxu0 0
    %661 = vmatprep.subr.bf16.mxu0 0
    %662 = vmatpush1.bf16.msra.mxu0 0
    %663 = vmatprep.subr.bf16.mxu0 0
    %664 = vmatpush1.bf16.msra.mxu0 0
    %665 = vmatprep.subr.bf16.mxu0 0
    %666 = vmatpush1.bf16.msra.mxu0 0
    %667 = vmatprep.subr.bf16.mxu0 0
    %668 = vmatpush1.bf16.msra.mxu0 0
    %669 = vmatprep.subr.bf16.mxu0 0
    %670 = vmatpush1.bf16.msra.mxu0 0
    %671 = vmatprep.mubr.bf16.mxu0 0
    %672 = vmatmul.mubr.bf16.gmra.mrb[0].mxu0 %v637
    %v673 = vpop.f32.mrb[0].mxu0
    %v674 = vadd.f32 0.0, %v673
    %v675 = vpop.f32.mrb[0].mxu0
    %v676 = vadd.f32 0.0, %v675
    %v677 = vpop.f32.mrb[0].mxu0
    %v678 = vpop.f32.mrb[0].mxu0
    %679 = vdwg.mxu0
    %680 = vmatprep.subr.bf16.mxu0 %v209
    %681 = vmatpush1.bf16.msra.mxu0 %v208
    %682 = vmatprep.subr.bf16.mxu0 %v213
    %683 = vmatpush1.bf16.msra.mxu0 %v212
    %684 = vmatprep.subr.bf16.mxu0 %v217
    %685 = vmatpush1.bf16.msra.mxu0 %v216
    %686 = vmatprep.subr.bf16.mxu0 %v221
    %687 = vmatpush1.bf16.msra.mxu0 %v220
    %688 = vmatprep.subr.bf16.mxu0 %v225
    %689 = vmatpush1.bf16.msra.mxu0 %v224
    %690 = vmatprep.subr.bf16.mxu0 %v229
    %691 = vmatpush1.bf16.msra.mxu0 %v228
    %692 = vmatprep.subr.bf16.mxu0 %v233
    %693 = vmatpush1.bf16.msra.mxu0 %v232
    %694 = vmatprep.subr.bf16.mxu0 %v237
    %695 = vmatpush1.bf16.msra.mxu0 %v236
    %696 = vmatprep.subr.bf16.mxu0 0
    %697 = vmatpush1.bf16.msra.mxu0 0
    %698 = vmatprep.subr.bf16.mxu0 0
    %699 = vmatpush1.bf16.msra.mxu0 0
    %700 = vmatprep.subr.bf16.mxu0 0
    %701 = vmatpush1.bf16.msra.mxu0 0
    %702 = vmatprep.subr.bf16.mxu0 0
    %703 = vmatpush1.bf16.msra.mxu0 0
    %704 = vmatprep.subr.bf16.mxu0 0
    %705 = vmatpush1.bf16.msra.mxu0 0
    %706 = vmatprep.subr.bf16.mxu0 0
    %707 = vmatpush1.bf16.msra.mxu0 0
    %708 = vmatprep.subr.bf16.mxu0 0
    %709 = vmatpush1.bf16.msra.mxu0 0
    %710 = vmatprep.subr.bf16.mxu0 0
    %711 = vmatpush1.bf16.msra.mxu0 0
    %712 = vmatprep.mubr.bf16.mxu0 0
    %713 = vmatmul.mubr.bf16.gmra.mrb[0].mxu0 %v637
    %v714 = vpop.f32.mrb[0].mxu0
    %v715 = vadd.f32 0.0, %v714
    %v716 = vpop.f32.mrb[0].mxu0
    %v717 = vadd.f32 0.0, %v716
    %v718 = vpop.f32.mrb[0].mxu0
    %v719 = vpop.f32.mrb[0].mxu0
    %720 = vdwg.mxu0
    %v725 = vrot.slane %v674, 2
    %v726 = vrot.slane %v676, 2
    %v727 = vrot.slane %v715, 2
    %v728 = vrot.slane %v717, 2
    %v733 = vadd.f32 %v102, %v725
    %v734 = vadd.f32 %v103, %v726
    %v735 = vadd.f32 %v104, %v727
    %v736 = vadd.f32 %v105, %v728
    %v737 = vxor.u32 %v733, 2147483648
    %v738 = vxor.u32 %v734, 2147483648
    %v739 = vxor.u32 %v735, 2147483648
    %v740 = vmul.f32 %v737, 1.442695
    %v741 = vpow.pop %v740
    %v742 = vmul.f32 %v738, 1.442695
    %v743 = vpow.pop %v742
    %v744 = vmul.f32 %v739, 1.442695
    %v745 = vpow.pop %v744
    %v746 = vadd.f32 %v741, 1.0
    %v747 = vadd.f32 %v743, 1.0
    %v748 = vadd.f32 %v745, 1.0
    %v749 = vrcp.pop %v746
    %v750 = vmul.f32 1.0, %v749
    %v751 = vrcp.pop %v747
    %v752 = vmul.f32 1.0, %v751
    %v753 = vrcp.pop %v748
    %v754 = vmul.f32 1.0, %v753
    %v755 = vtanh.pop %v736
    %v757 = vrot.slane %v632, 6
    %v759 = vmul.f32 %v752, %v757
    %v760 = vmul.f32 %v750, %v755
    %v761 = vadd.f32 %v759, %v760
    %v762 = vtanh.pop %v761
    %v763 = vmul.f32 %v754, %v762
    %v764 = vpack.c.bf16 %v763, %v763
    %v766 = vrot.slane %v764, 3
    %768 = vmatprep.subr.bf16.mxu0 %v207
    %769 = vmatpush1.bf16.msra.mxu0 %v206
    %770 = vmatprep.subr.bf16.mxu0 %v211
    %771 = vmatpush1.bf16.msra.mxu0 %v210
    %772 = vmatprep.subr.bf16.mxu0 %v215
    %773 = vmatpush1.bf16.msra.mxu0 %v214
    %774 = vmatprep.subr.bf16.mxu0 %v219
    %775 = vmatpush1.bf16.msra.mxu0 %v218
    %776 = vmatprep.subr.bf16.mxu0 %v223
    %777 = vmatpush1.bf16.msra.mxu0 %v222
    %778 = vmatprep.subr.bf16.mxu0 %v227
    %779 = vmatpush1.bf16.msra.mxu0 %v226
    %780 = vmatprep.subr.bf16.mxu0 %v231
    %781 = vmatpush1.bf16.msra.mxu0 %v230
    %782 = vmatprep.subr.bf16.mxu0 %v235
    %783 = vmatpush1.bf16.msra.mxu0 %v234
    %784 = vmatprep.subr.bf16.mxu0 0
    %785 = vmatpush1.bf16.msra.mxu0 0
    %786 = vmatprep.subr.bf16.mxu0 0
    %787 = vmatpush1.bf16.msra.mxu0 0
    %788 = vmatprep.subr.bf16.mxu0 0
    %789 = vmatpush1.bf16.msra.mxu0 0
    %790 = vmatprep.subr.bf16.mxu0 0
    %791 = vmatpush1.bf16.msra.mxu0 0
    %792 = vmatprep.subr.bf16.mxu0 0
    %793 = vmatpush1.bf16.msra.mxu0 0
    %794 = vmatprep.subr.bf16.mxu0 0
    %795 = vmatpush1.bf16.msra.mxu0 0
    %796 = vmatprep.subr.bf16.mxu0 0
    %797 = vmatpush1.bf16.msra.mxu0 0
    %798 = vmatprep.subr.bf16.mxu0 0
    %799 = vmatpush1.bf16.msra.mxu0 0
    %800 = vmatprep.mubr.bf16.mxu0 0
    %801 = vmatmul.mubr.bf16.gmra.mrb[0].mxu0 %v766
    %v802 = vpop.f32.mrb[0].mxu0
    %v803 = vadd.f32 0.0, %v802
    %v804 = vpop.f32.mrb[0].mxu0
    %v805 = vadd.f32 0.0, %v804
    %v806 = vpop.f32.mrb[0].mxu0
    %v807 = vpop.f32.mrb[0].mxu0
    %808 = vdwg.mxu0
    %809 = vmatprep.subr.bf16.mxu0 %v209
    %810 = vmatpush1.bf16.msra.mxu0 %v208
    %811 = vmatprep.subr.bf16.mxu0 %v213
    %812 = vmatpush1.bf16.msra.mxu0 %v212
    %813 = vmatprep.subr.bf16.mxu0 %v217
    %814 = vmatpush1.bf16.msra.mxu0 %v216
    %815 = vmatprep.subr.bf16.mxu0 %v221
    %816 = vmatpush1.bf16.msra.mxu0 %v220
    %817 = vmatprep.subr.bf16.mxu0 %v225
    %818 = vmatpush1.bf16.msra.mxu0 %v224
    %819 = vmatprep.subr.bf16.mxu0 %v229
    %820 = vmatpush1.bf16.msra.mxu0 %v228
    %821 = vmatprep.subr.bf16.mxu0 %v233
    %822 = vmatpush1.bf16.msra.mxu0 %v232
    %823 = vmatprep.subr.bf16.mxu0 %v237
    %824 = vmatpush1.bf16.msra.mxu0 %v236
    %825 = vmatprep.subr.bf16.mxu0 0
    %826 = vmatpush1.bf16.msra.mxu0 0
    %827 = vmatprep.subr.bf16.mxu0 0
    %828 = vmatpush1.bf16.msra.mxu0 0
    %829 = vmatprep.subr.bf16.mxu0 0
    %830 = vmatpush1.bf16.msra.mxu0 0
    %831 = vmatprep.subr.bf16.mxu0 0
    %832 = vmatpush1.bf16.msra.mxu0 0
    %833 = vmatprep.subr.bf16.mxu0 0
    %834 = vmatpush1.bf16.msra.mxu0 0
    %835 = vmatprep.subr.bf16.mxu0 0
    %836 = vmatpush1.bf16.msra.mxu0 0
    %837 = vmatprep.subr.bf16.mxu0 0
    %838 = vmatpush1.bf16.msra.mxu0 0
    %839 = vmatprep.subr.bf16.mxu0 0
    %840 = vmatpush1.bf16.msra.mxu0 0
    %841 = vmatprep.mubr.bf16.mxu0 0
    %842 = vmatmul.mubr.bf16.gmra.mrb[0].mxu0 %v766
    %v843 = vpop.f32.mrb[0].mxu0
    %v844 = vadd.f32 0.0, %v843
    %v845 = vpop.f32.mrb[0].mxu0
    %v846 = vadd.f32 0.0, %v845
    %v847 = vpop.f32.mrb[0].mxu0
    %v848 = vpop.f32.mrb[0].mxu0
    %849 = vdwg.mxu0
    %v850 = vadd.f32 %v106, %v803
    %v851 = vadd.f32 %v107, %v805
    %v852 = vadd.f32 %v108, %v844
    %v853 = vadd.f32 %v109, %v846
    %v854 = vxor.u32 %v850, 2147483648
    %v855 = vxor.u32 %v851, 2147483648
    %v856 = vxor.u32 %v852, 2147483648
    %v857 = vmul.f32 %v854, 1.442695
    %v858 = vpow.pop %v857
    %v859 = vmul.f32 %v855, 1.442695
    %v860 = vpow.pop %v859
    %v861 = vmul.f32 %v856, 1.442695
    %v862 = vpow.pop %v861
    %v863 = vadd.f32 %v858, 1.0
    %v864 = vadd.f32 %v860, 1.0
    %v865 = vadd.f32 %v862, 1.0
    %v866 = vrcp.pop %v863
    %v867 = vmul.f32 1.0, %v866
    %v868 = vrcp.pop %v864
    %v869 = vmul.f32 1.0, %v868
    %v870 = vrcp.pop %v865
    %v871 = vmul.f32 1.0, %v870
    %v872 = vtanh.pop %v853
    %v874 = vrot.slane %v761, 6
    %v876 = vmul.f32 %v869, %v874
    %v877 = vmul.f32 %v867, %v872
    %v878 = vadd.f32 %v876, %v877
    %v879 = vtanh.pop %v878
    %v880 = vmul.f32 %v871, %v879
    %v881 = vpack.c.bf16 %v880, %v880
    %882 = vmatprep.subr.bf16.mxu0 %v207
    %883 = vmatpush1.bf16.msra.mxu0 %v206
    %884 = vmatprep.subr.bf16.mxu0 %v211
    %885 = vmatpush1.bf16.msra.mxu0 %v210
    %886 = vmatprep.subr.bf16.mxu0 %v215
    %887 = vmatpush1.bf16.msra.mxu0 %v214
    %888 = vmatprep.subr.bf16.mxu0 %v219
    %889 = vmatpush1.bf16.msra.mxu0 %v218
    %890 = vmatprep.subr.bf16.mxu0 %v223
    %891 = vmatpush1.bf16.msra.mxu0 %v222
    %892 = vmatprep.subr.bf16.mxu0 %v227
    %893 = vmatpush1.bf16.msra.mxu0 %v226
    %894 = vmatprep.subr.bf16.mxu0 %v231
    %895 = vmatpush1.bf16.msra.mxu0 %v230
    %896 = vmatprep.subr.bf16.mxu0 %v235
    %897 = vmatpush1.bf16.msra.mxu0 %v234
    %898 = vmatprep.subr.bf16.mxu0 0
    %899 = vmatpush1.bf16.msra.mxu0 0
    %900 = vmatprep.subr.bf16.mxu0 0
    %901 = vmatpush1.bf16.msra.mxu0 0
    %902 = vmatprep.subr.bf16.mxu0 0
    %903 = vmatpush1.bf16.msra.mxu0 0
    %904 = vmatprep.subr.bf16.mxu0 0
    %905 = vmatpush1.bf16.msra.mxu0 0
    %906 = vmatprep.subr.bf16.mxu0 0
    %907 = vmatpush1.bf16.msra.mxu0 0
    %908 = vmatprep.subr.bf16.mxu0 0
    %909 = vmatpush1.bf16.msra.mxu0 0
    %910 = vmatprep.subr.bf16.mxu0 0
    %911 = vmatpush1.bf16.msra.mxu0 0
    %912 = vmatprep.subr.bf16.mxu0 0
    %913 = vmatpush1.bf16.msra.mxu0 0
    %914 = vmatprep.mubr.bf16.mxu0 0
    %915 = vmatmul.mubr.bf16.gmra.mrb[0].mxu0 %v881
    %v916 = vpop.f32.mrb[0].mxu0
    %v917 = vadd.f32 0.0, %v916
    %v918 = vpop.f32.mrb[0].mxu0
    %v919 = vadd.f32 0.0, %v918
    %v920 = vpop.f32.mrb[0].mxu0
    %v921 = vpop.f32.mrb[0].mxu0
    %922 = vdwg.mxu0
    %923 = vmatprep.subr.bf16.mxu0 %v209
    %924 = vmatpush1.bf16.msra.mxu0 %v208
    %925 = vmatprep.subr.bf16.mxu0 %v213
    %926 = vmatpush1.bf16.msra.mxu0 %v212
    %927 = vmatprep.subr.bf16.mxu0 %v217
    %928 = vmatpush1.bf16.msra.mxu0 %v216
    %929 = vmatprep.subr.bf16.mxu0 %v221
    %930 = vmatpush1.bf16.msra.mxu0 %v220
    %931 = vmatprep.subr.bf16.mxu0 %v225
    %932 = vmatpush1.bf16.msra.mxu0 %v224
    %933 = vmatprep.subr.bf16.mxu0 %v229
    %934 = vmatpush1.bf16.msra.mxu0 %v228
    %935 = vmatprep.subr.bf16.mxu0 %v233
    %936 = vmatpush1.bf16.msra.mxu0 %v232
    %937 = vmatprep.subr.bf16.mxu0 %v237
    %938 = vmatpush1.bf16.msra.mxu0 %v236
    %939 = vmatprep.subr.bf16.mxu0 0
    %940 = vmatpush1.bf16.msra.mxu0 0
    %941 = vmatprep.subr.bf16.mxu0 0
    %942 = vmatpush1.bf16.msra.mxu0 0
    %943 = vmatprep.subr.bf16.mxu0 0
    %944 = vmatpush1.bf16.msra.mxu0 0
    %945 = vmatprep.subr.bf16.mxu0 0
    %946 = vmatpush1.bf16.msra.mxu0 0
    %947 = vmatprep.subr.bf16.mxu0 0
    %948 = vmatpush1.bf16.msra.mxu0 0
    %949 = vmatprep.subr.bf16.mxu0 0
    %950 = vmatpush1.bf16.msra.mxu0 0
    %951 = vmatprep.subr.bf16.mxu0 0
    %952 = vmatpush1.bf16.msra.mxu0 0
    %953 = vmatprep.subr.bf16.mxu0 0
    %954 = vmatpush1.bf16.msra.mxu0 0
    %955 = vmatprep.mubr.bf16.mxu0 0
    %956 = vmatmul.mubr.bf16.gmra.mrb[0].mxu0 %v881
    %v957 = vpop.f32.mrb[0].mxu0
    %v958 = vadd.f32 0.0, %v957
    %v959 = vpop.f32.mrb[0].mxu0
    %v960 = vadd.f32 0.0, %v959
    %v961 = vpop.f32.mrb[0].mxu0
    %v962 = vpop.f32.mrb[0].mxu0
    %963 = vdwg.mxu0
    %v968 = vrot.slane %v917, 6
    %v969 = vrot.slane %v919, 6
    %v970 = vrot.slane %v958, 6
    %v971 = vrot.slane %v960, 6
    %v976 = vadd.f32 %v106, %v968
    %v977 = vadd.f32 %v107, %v969
    %v978 = vadd.f32 %v108, %v970
    %v979 = vadd.f32 %v109, %v971
    %v980 = vxor.u32 %v976, 2147483648
    %v981 = vxor.u32 %v977, 2147483648
    %v982 = vxor.u32 %v978, 2147483648
    %v983 = vmul.f32 %v980, 1.442695
    %v984 = vpow.pop %v983
    %v985 = vmul.f32 %v981, 1.442695
    %v986 = vpow.pop %v985
    %v987 = vmul.f32 %v982, 1.442695
    %v988 = vpow.pop %v987
    %v989 = vadd.f32 %v984, 1.0
    %v990 = vadd.f32 %v986, 1.0
    %v991 = vadd.f32 %v988, 1.0
    %v992 = vrcp.pop %v989
    %v993 = vmul.f32 1.0, %v992
    %v994 = vrcp.pop %v990
    %v995 = vmul.f32 1.0, %v994
    %v996 = vrcp.pop %v991
    %v997 = vmul.f32 1.0, %v996
    %v998 = vtanh.pop %v979
    %v1000 = vrot.slane %v878, 6
    %v1002 = vmul.f32 %v995, %v1000
    %v1003 = vmul.f32 %v993, %v998
    %v1004 = vadd.f32 %v1002, %v1003
    %v1005 = vtanh.pop %v1004
    %v1006 = vmul.f32 %v997, %v1005
    %v1007 = vpack.c.bf16 %v1006, %v1006
    %v1009 = vrot.slane %v1007, 1
    %1011 = vmatprep.subr.bf16.mxu0 %v207
    %1012 = vmatpush1.bf16.msra.mxu0 %v206
    %1013 = vmatprep.subr.bf16.mxu0 %v211
    %1014 = vmatpush1.bf16.msra.mxu0 %v210
    %1015 = vmatprep.subr.bf16.mxu0 %v215
    %1016 = vmatpush1.bf16.msra.mxu0 %v214
    %1017 = vmatprep.subr.bf16.mxu0 %v219
    %1018 = vmatpush1.bf16.msra.mxu0 %v218
    %1019 = vmatprep.subr.bf16.mxu0 %v223
    %1020 = vmatpush1.bf16.msra.mxu0 %v222
    %1021 = vmatprep.subr.bf16.mxu0 %v227
    %1022 = vmatpush1.bf16.msra.mxu0 %v226
    %1023 = vmatprep.subr.bf16.mxu0 %v231
    %1024 = vmatpush1.bf16.msra.mxu0 %v230
    %1025 = vmatprep.subr.bf16.mxu0 %v235
    %1026 = vmatpush1.bf16.msra.mxu0 %v234
    %1027 = vmatprep.subr.bf16.mxu0 0
    %1028 = vmatpush1.bf16.msra.mxu0 0
    %1029 = vmatprep.subr.bf16.mxu0 0
    %1030 = vmatpush1.bf16.msra.mxu0 0
    %1031 = vmatprep.subr.bf16.mxu0 0
    %1032 = vmatpush1.bf16.msra.mxu0 0
    %1033 = vmatprep.subr.bf16.mxu0 0
    %1034 = vmatpush1.bf16.msra.mxu0 0
    %1035 = vmatprep.subr.bf16.mxu0 0
    %1036 = vmatpush1.bf16.msra.mxu0 0
    %1037 = vmatprep.subr.bf16.mxu0 0
    %1038 = vmatpush1.bf16.msra.mxu0 0
    %1039 = vmatprep.subr.bf16.mxu0 0
    %1040 = vmatpush1.bf16.msra.mxu0 0
    %1041 = vmatprep.subr.bf16.mxu0 0
    %1042 = vmatpush1.bf16.msra.mxu0 0
    %1043 = vmatprep.mubr.bf16.mxu0 0
    %1044 = vmatmul.mubr.bf16.gmra.mrb[0].mxu0 %v1009
    %v1045 = vpop.f32.mrb[0].mxu0
    %v1046 = vadd.f32 0.0, %v1045
    %v1047 = vpop.f32.mrb[0].mxu0
    %v1048 = vadd.f32 0.0, %v1047
    %v1049 = vpop.f32.mrb[0].mxu0
    %v1050 = vpop.f32.mrb[0].mxu0
    %1051 = vdwg.mxu0
    %1052 = vmatprep.subr.bf16.mxu0 %v209
    %1053 = vmatpush1.bf16.msra.mxu0 %v208
    %1054 = vmatprep.subr.bf16.mxu0 %v213
    %1055 = vmatpush1.bf16.msra.mxu0 %v212
    %1056 = vmatprep.subr.bf16.mxu0 %v217
    %1057 = vmatpush1.bf16.msra.mxu0 %v216
    %1058 = vmatprep.subr.bf16.mxu0 %v221
    %1059 = vmatpush1.bf16.msra.mxu0 %v220
    %1060 = vmatprep.subr.bf16.mxu0 %v225
    %1061 = vmatpush1.bf16.msra.mxu0 %v224
    %1062 = vmatprep.subr.bf16.mxu0 %v229
    %1063 = vmatpush1.bf16.msra.mxu0 %v228
    %1064 = vmatprep.subr.bf16.mxu0 %v233
    %1065 = vmatpush1.bf16.msra.mxu0 %v232
    %1066 = vmatprep.subr.bf16.mxu0 %v237
    %1067 = vmatpush1.bf16.msra.mxu0 %v236
    %1068 = vmatprep.subr.bf16.mxu0 0
    %1069 = vmatpush1.bf16.msra.mxu0 0
    %1070 = vmatprep.subr.bf16.mxu0 0
    %1071 = vmatpush1.bf16.msra.mxu0 0
    %1072 = vmatprep.subr.bf16.mxu0 0
    %1073 = vmatpush1.bf16.msra.mxu0 0
    %1074 = vmatprep.subr.bf16.mxu0 0
    %1075 = vmatpush1.bf16.msra.mxu0 0
    %1076 = vmatprep.subr.bf16.mxu0 0
    %1077 = vmatpush1.bf16.msra.mxu0 0
    %1078 = vmatprep.subr.bf16.mxu0 0
    %1079 = vmatpush1.bf16.msra.mxu0 0
    %1080 = vmatprep.subr.bf16.mxu0 0
    %1081 = vmatpush1.bf16.msra.mxu0 0
    %1082 = vmatprep.subr.bf16.mxu0 0
    %1083 = vmatpush1.bf16.msra.mxu0 0
    %1084 = vmatprep.mubr.bf16.mxu0 0
    %1085 = vmatmul.mubr.bf16.gmra.mrb[0].mxu0 %v1009
    %v1086 = vpop.f32.mrb[0].mxu0
    %v1087 = vadd.f32 0.0, %v1086
    %v1088 = vpop.f32.mrb[0].mxu0
    %v1089 = vadd.f32 0.0, %v1088
    %v1090 = vpop.f32.mrb[0].mxu0
    %v1091 = vpop.f32.mrb[0].mxu0
    %1092 = vdwg.mxu0
    %v1097 = vrot.slane %v1046, 4
    %v1098 = vrot.slane %v1048, 4
    %v1099 = vrot.slane %v1087, 4
    %v1100 = vrot.slane %v1089, 4
    %v1105 = vadd.f32 %v106, %v1097
    %v1106 = vadd.f32 %v107, %v1098
    %v1107 = vadd.f32 %v108, %v1099
    %v1108 = vadd.f32 %v109, %v1100
    %v1109 = vxor.u32 %v1105, 2147483648
    %v1110 = vxor.u32 %v1106, 2147483648
    %v1111 = vxor.u32 %v1107, 2147483648
    %v1112 = vmul.f32 %v1109, 1.442695
    %v1113 = vpow.pop %v1112
    %v1114 = vmul.f32 %v1110, 1.442695
    %v1115 = vpow.pop %v1114
    %v1116 = vmul.f32 %v1111, 1.442695
    %v1117 = vpow.pop %v1116
    %v1118 = vadd.f32 %v1113, 1.0
    %v1119 = vadd.f32 %v1115, 1.0
    %v1120 = vadd.f32 %v1117, 1.0
    %v1121 = vrcp.pop %v1118
    %v1122 = vmul.f32 1.0, %v1121
    %v1123 = vrcp.pop %v1119
    %v1124 = vmul.f32 1.0, %v1123
    %v1125 = vrcp.pop %v1120
    %v1126 = vmul.f32 1.0, %v1125
    %v1127 = vtanh.pop %v1108
    %v1129 = vrot.slane %v1004, 6
    %v1131 = vmul.f32 %v1124, %v1129
    %v1132 = vmul.f32 %v1122, %v1127
    %v1133 = vadd.f32 %v1131, %v1132
    %v1134 = vtanh.pop %v1133
    %v1135 = vmul.f32 %v1126, %v1134
    %v1136 = vpack.c.bf16 %v1135, %v1135
    %v1138 = vrot.slane %v1136, 2
    %1140 = vmatprep.subr.bf16.mxu0 %v207
    %1141 = vmatpush1.bf16.msra.mxu0 %v206
    %1142 = vmatprep.subr.bf16.mxu0 %v211
    %1143 = vmatpush1.bf16.msra.mxu0 %v210
    %1144 = vmatprep.subr.bf16.mxu0 %v215
    %1145 = vmatpush1.bf16.msra.mxu0 %v214
    %1146 = vmatprep.subr.bf16.mxu0 %v219
    %1147 = vmatpush1.bf16.msra.mxu0 %v218
    %1148 = vmatprep.subr.bf16.mxu0 %v223
    %1149 = vmatpush1.bf16.msra.mxu0 %v222
    %1150 = vmatprep.subr.bf16.mxu0 %v227
    %1151 = vmatpush1.bf16.msra.mxu0 %v226
    %1152 = vmatprep.subr.bf16.mxu0 %v231
    %1153 = vmatpush1.bf16.msra.mxu0 %v230
    %1154 = vmatprep.subr.bf16.mxu0 %v235
    %1155 = vmatpush1.bf16.msra.mxu0 %v234
    %1156 = vmatprep.subr.bf16.mxu0 0
    %1157 = vmatpush1.bf16.msra.mxu0 0
    %1158 = vmatprep.subr.bf16.mxu0 0
    %1159 = vmatpush1.bf16.msra.mxu0 0
    %1160 = vmatprep.subr.bf16.mxu0 0
    %1161 = vmatpush1.bf16.msra.mxu0 0
    %1162 = vmatprep.subr.bf16.mxu0 0
    %1163 = vmatpush1.bf16.msra.mxu0 0
    %1164 = vmatprep.subr.bf16.mxu0 0
    %1165 = vmatpush1.bf16.msra.mxu0 0
    %1166 = vmatprep.subr.bf16.mxu0 0
    %1167 = vmatpush1.bf16.msra.mxu0 0
    %1168 = vmatprep.subr.bf16.mxu0 0
    %1169 = vmatpush1.bf16.msra.mxu0 0
    %1170 = vmatprep.subr.bf16.mxu0 0
    %1171 = vmatpush1.bf16.msra.mxu0 0
    %1172 = vmatprep.mubr.bf16.mxu0 0
    %1173 = vmatmul.mubr.bf16.gmra.mrb[0].mxu0 %v1138
    %v1174 = vpop.f32.mrb[0].mxu0
    %v1175 = vadd.f32 0.0, %v1174
    %v1176 = vpop.f32.mrb[0].mxu0
    %v1177 = vadd.f32 0.0, %v1176
    %v1178 = vpop.f32.mrb[0].mxu0
    %v1179 = vpop.f32.mrb[0].mxu0
    %1180 = vdwg.mxu0
    %1181 = vmatprep.subr.bf16.mxu0 %v209
    %1182 = vmatpush1.bf16.msra.mxu0 %v208
    %1183 = vmatprep.subr.bf16.mxu0 %v213
    %1184 = vmatpush1.bf16.msra.mxu0 %v212
    %1185 = vmatprep.subr.bf16.mxu0 %v217
    %1186 = vmatpush1.bf16.msra.mxu0 %v216
    %1187 = vmatprep.subr.bf16.mxu0 %v221
    %1188 = vmatpush1.bf16.msra.mxu0 %v220
    %1189 = vmatprep.subr.bf16.mxu0 %v225
    %1190 = vmatpush1.bf16.msra.mxu0 %v224
    %1191 = vmatprep.subr.bf16.mxu0 %v229
    %1192 = vmatpush1.bf16.msra.mxu0 %v228
    %1193 = vmatprep.subr.bf16.mxu0 %v233
    %1194 = vmatpush1.bf16.msra.mxu0 %v232
    %1195 = vmatprep.subr.bf16.mxu0 %v237
    %1196 = vmatpush1.bf16.msra.mxu0 %v236
    %1197 = vmatprep.subr.bf16.mxu0 0
    %1198 = vmatpush1.bf16.msra.mxu0 0
    %1199 = vmatprep.subr.bf16.mxu0 0
    %1200 = vmatpush1.bf16.msra.mxu0 0
    %1201 = vmatprep.subr.bf16.mxu0 0
    %1202 = vmatpush1.bf16.msra.mxu0 0
    %1203 = vmatprep.subr.bf16.mxu0 0
    %1204 = vmatpush1.bf16.msra.mxu0 0
    %1205 = vmatprep.subr.bf16.mxu0 0
    %1206 = vmatpush1.bf16.msra.mxu0 0
    %1207 = vmatprep.subr.bf16.mxu0 0
    %1208 = vmatpush1.bf16.msra.mxu0 0
    %1209 = vmatprep.subr.bf16.mxu0 0
    %1210 = vmatpush1.bf16.msra.mxu0 0
    %1211 = vmatprep.subr.bf16.mxu0 0
    %1212 = vmatpush1.bf16.msra.mxu0 0
    %1213 = vmatprep.mubr.bf16.mxu0 0
    %1214 = vmatmul.mubr.bf16.gmra.mrb[0].mxu0 %v1138
    %v1215 = vpop.f32.mrb[0].mxu0
    %v1216 = vadd.f32 0.0, %v1215
    %v1217 = vpop.f32.mrb[0].mxu0
    %v1218 = vadd.f32 0.0, %v1217
    %v1219 = vpop.f32.mrb[0].mxu0
    %v1220 = vpop.f32.mrb[0].mxu0
    %1221 = vdwg.mxu0
    %v1226 = vrot.slane %v1175, 2
    %v1227 = vrot.slane %v1177, 2
    %v1228 = vrot.slane %v1216, 2
    %v1229 = vrot.slane %v1218, 2
    %v1234 = vadd.f32 %v106, %v1226
    %v1235 = vadd.f32 %v107, %v1227
    %v1236 = vadd.f32 %v108, %v1228
    %v1237 = vadd.f32 %v109, %v1229
    %v1238 = vxor.u32 %v1234, 2147483648
    %v1239 = vxor.u32 %v1235, 2147483648
    %v1240 = vxor.u32 %v1236, 2147483648
    %v1241 = vmul.f32 %v1238, 1.442695
    %v1242 = vpow.pop %v1241
    %v1243 = vmul.f32 %v1239, 1.442695
    %v1244 = vpow.pop %v1243
    %v1245 = vmul.f32 %v1240, 1.442695
    %v1246 = vpow.pop %v1245
    %v1247 = vadd.f32 %v1242, 1.0
    %v1248 = vadd.f32 %v1244, 1.0
    %v1249 = vadd.f32 %v1246, 1.0
    %v1250 = vrcp.pop %v1247
    %v1251 = vmul.f32 1.0, %v1250
    %v1252 = vrcp.pop %v1248
    %v1253 = vmul.f32 1.0, %v1252
    %v1254 = vrcp.pop %v1249
    %v1255 = vmul.f32 1.0, %v1254
    %v1256 = vtanh.pop %v1237
    %v1258 = vrot.slane %v1133, 6
    %v1260 = vmul.f32 %v1253, %v1258
    %v1261 = vmul.f32 %v1251, %v1256
    %v1262 = vadd.f32 %v1260, %v1261
    %v1263 = vtanh.pop %v1262
    %v1264 = vmul.f32 %v1255, %v1263
    %vm1265 = vcmask 1041408
    %v1266 = vsel %vm1265, %v379, %v505
    %vm1267 = vcmask 1043456
    %v1268 = vsel %vm1267, %v1266, %v634
    %vm1269 = vcmask 1045504
    %v1270 = vsel %vm1269, %v1268, %v763
    %v1271 = vsel %vm1265, %v880, %v1006
    %v1272 = vsel %vm1267, %v1271, %v1135
    %v1273 = vsel %vm1269, %v1272, %v1264
    %v1274 = vpack.c.bf16 %v1273, %v1270
    %v1275 = vld [vmem:[#allocation5] sm:$0xff]
    %v1276 = vld [vmem:[#allocation5 + $0x8] sm:$0xff]
    %v1277 = vld [vmem:[#allocation5 + $0x10] sm:$0xff]
    %v1278 = vld [vmem:[#allocation5 + $0x18] sm:$0xff]
    %v1279 = vld [vmem:[#allocation5 + $0x20] sm:$0xff]
    %v1280 = vld [vmem:[#allocation5 + $0x28] sm:$0xff]
    %v1281 = vld [vmem:[#allocation5 + $0x30] sm:$0xff]
    %v1282 = vld [vmem:[#allocation5 + $0x38] sm:$0xff]
    %v1283 = vld [vmem:[#allocation5 + $0x40] sm:$0xff]
    %v1284 = vld [vmem:[#allocation5 + $0x48] sm:$0xff]
    %v1285 = vld [vmem:[#allocation5 + $0x50] sm:$0xff]
    %v1286 = vld [vmem:[#allocation5 + $0x58] sm:$0xff]
    %v1287 = vld [vmem:[#allocation5 + $0x60] sm:$0xff]
    %v1288 = vld [vmem:[#allocation5 + $0x68] sm:$0xff]
    %v1289 = vld [vmem:[#allocation5 + $0x70] sm:$0xff]
    %v1290 = vld [vmem:[#allocation5 + $0x78] sm:$0xff]
    %v1291 = vld [vmem:[#allocation5 + $0x80] sm:$0xff]
    %v1292 = vld [vmem:[#allocation5 + $0x88] sm:$0xff]
    %v1293 = vld [vmem:[#allocation5 + $0x90] sm:$0xff]
    %v1294 = vld [vmem:[#allocation5 + $0x98] sm:$0xff]
    %v1295 = vld [vmem:[#allocation5 + $0xa0] sm:$0xff]
    %v1296 = vld [vmem:[#allocation5 + $0xa8] sm:$0xff]
    %v1297 = vld [vmem:[#allocation5 + $0xb0] sm:$0xff]
    %v1298 = vld [vmem:[#allocation5 + $0xb8] sm:$0xff]
    %v1299 = vld [vmem:[#allocation5 + $0xc0] sm:$0xff]
    %v1300 = vld [vmem:[#allocation5 + $0xc8] sm:$0xff]
    %v1301 = vld [vmem:[#allocation5 + $0xd0] sm:$0xff]
    %v1302 = vld [vmem:[#allocation5 + $0xd8] sm:$0xff]
    %v1303 = vld [vmem:[#allocation5 + $0xe0] sm:$0xff]
    %v1304 = vld [vmem:[#allocation5 + $0xe8] sm:$0xff]
    %v1305 = vld [vmem:[#allocation5 + $0xf0] sm:$0xff]
    %v1306 = vld [vmem:[#allocation5 + $0xf8] sm:$0xff]
    %v1307 = vld [vmem:[%s4] sm:$0xf]
    %v1309 = vlaneseq
    %v1310 = vshrl.u32 %v1309, 7
    %v1311 = vsub.s32 0, %v1310
    %v1312 = vrot.slane %v1307, %v1311
    %v1313 = vlaneseq
    %v1314 = vshrl.u32 %v1313, 7
    %v1315 = vsub.s32 1, %v1314
    %v1316 = vrot.slane %v1307, %v1315
    %v1317 = vlaneseq
    %v1318 = vshrl.u32 %v1317, 7
    %v1319 = vsub.s32 2, %v1318
    %v1320 = vrot.slane %v1307, %v1319
    %v1321 = vlaneseq
    %v1322 = vshrl.u32 %v1321, 7
    %v1323 = vsub.s32 3, %v1322
    %v1324 = vrot.slane %v1307, %v1323
    %v1361 = vunpack.c.l.b16 %v1275
    %v1362 = vunpack.c.h.b16 %v1275
    %v1363 = vunpack.c.l.b16 %v1276
    %v1364 = vunpack.c.h.b16 %v1276
    %v1365 = vunpack.c.l.b16 %v1277
    %v1366 = vunpack.c.h.b16 %v1277
    %v1367 = vunpack.c.l.b16 %v1278
    %v1368 = vunpack.c.h.b16 %v1278
    %v1369 = vunpack.c.l.b16 %v1279
    %v1370 = vunpack.c.h.b16 %v1279
    %v1371 = vunpack.c.l.b16 %v1280
    %v1372 = vunpack.c.h.b16 %v1280
    %v1373 = vunpack.c.l.b16 %v1281
    %v1374 = vunpack.c.h.b16 %v1281
    %v1375 = vunpack.c.l.b16 %v1282
    %v1376 = vunpack.c.h.b16 %v1282
    %v1377 = vunpack.c.l.b16 %v1283
    %v1378 = vunpack.c.h.b16 %v1283
    %v1379 = vunpack.c.l.b16 %v1284
    %v1380 = vunpack.c.h.b16 %v1284
    %v1381 = vunpack.c.l.b16 %v1285
    %v1382 = vunpack.c.h.b16 %v1285
    %v1383 = vunpack.c.l.b16 %v1286
    %v1384 = vunpack.c.h.b16 %v1286
    %v1385 = vunpack.c.l.b16 %v1287
    %v1386 = vunpack.c.h.b16 %v1287
    %v1387 = vunpack.c.l.b16 %v1288
    %v1388 = vunpack.c.h.b16 %v1288
    %v1389 = vunpack.c.l.b16 %v1289
    %v1390 = vunpack.c.h.b16 %v1289
    %v1391 = vunpack.c.l.b16 %v1290
    %v1392 = vunpack.c.h.b16 %v1290
    %v1393 = vunpack.c.l.b16 %v1291
    %v1394 = vunpack.c.h.b16 %v1291
    %v1395 = vunpack.c.l.b16 %v1292
    %v1396 = vunpack.c.h.b16 %v1292
    %v1397 = vunpack.c.l.b16 %v1293
    %v1398 = vunpack.c.h.b16 %v1293
    %v1399 = vunpack.c.l.b16 %v1294
    %v1400 = vunpack.c.h.b16 %v1294
    %v1401 = vunpack.c.l.b16 %v1295
    %v1402 = vunpack.c.h.b16 %v1295
    %v1403 = vunpack.c.l.b16 %v1296
    %v1404 = vunpack.c.h.b16 %v1296
    %v1405 = vunpack.c.l.b16 %v1297
    %v1406 = vunpack.c.h.b16 %v1297
    %v1407 = vunpack.c.l.b16 %v1298
    %v1408 = vunpack.c.h.b16 %v1298
    %v1409 = vunpack.c.l.b16 %v1299
    %v1410 = vunpack.c.h.b16 %v1299
    %v1411 = vunpack.c.l.b16 %v1300
    %v1412 = vunpack.c.h.b16 %v1300
    %v1413 = vunpack.c.l.b16 %v1301
    %v1414 = vunpack.c.h.b16 %v1301
    %v1415 = vunpack.c.l.b16 %v1302
    %v1416 = vunpack.c.h.b16 %v1302
    %v1417 = vunpack.c.l.b16 %v1303
    %v1418 = vunpack.c.h.b16 %v1303
    %v1419 = vunpack.c.l.b16 %v1304
    %v1420 = vunpack.c.h.b16 %v1304
    %v1421 = vunpack.c.l.b16 %v1305
    %v1422 = vunpack.c.h.b16 %v1305
    %v1423 = vunpack.c.l.b16 %v1306
    %v1424 = vunpack.c.h.b16 %v1306
    %v1425 = vpack.c.b16 %v1365, %v1361
    %v1426 = vpack.c.b16 %v1366, %v1362
    %v1427 = vpack.c.b16 %v1367, %v1363
    %v1428 = vpack.c.b16 %v1368, %v1364
    %v1429 = vpack.c.b16 %v1373, %v1369
    %v1430 = vpack.c.b16 %v1374, %v1370
    %v1431 = vpack.c.b16 %v1375, %v1371
    %v1432 = vpack.c.b16 %v1376, %v1372
    %v1433 = vpack.c.b16 %v1381, %v1377
    %v1434 = vpack.c.b16 %v1382, %v1378
    %v1435 = vpack.c.b16 %v1383, %v1379
    %v1436 = vpack.c.b16 %v1384, %v1380
    %v1437 = vpack.c.b16 %v1389, %v1385
    %v1438 = vpack.c.b16 %v1390, %v1386
    %v1439 = vpack.c.b16 %v1391, %v1387
    %v1440 = vpack.c.b16 %v1392, %v1388
    %v1441 = vpack.c.b16 %v1397, %v1393
    %v1442 = vpack.c.b16 %v1398, %v1394
    %v1443 = vpack.c.b16 %v1399, %v1395
    %v1444 = vpack.c.b16 %v1400, %v1396
    %v1445 = vpack.c.b16 %v1405, %v1401
    %v1446 = vpack.c.b16 %v1406, %v1402
    %v1447 = vpack.c.b16 %v1407, %v1403
    %v1448 = vpack.c.b16 %v1408, %v1404
    %v1449 = vpack.c.b16 %v1413, %v1409
    %v1450 = vpack.c.b16 %v1414, %v1410
    %v1451 = vpack.c.b16 %v1415, %v1411
    %v1452 = vpack.c.b16 %v1416, %v1412
    %v1453 = vpack.c.b16 %v1421, %v1417
    %v1454 = vpack.c.b16 %v1422, %v1418
    %v1455 = vpack.c.b16 %v1423, %v1419
    %v1456 = vpack.c.b16 %v1424, %v1420
    %1489 = vmatprep.subr.bf16.mxu0 %v1426
    %1490 = vmatpush1.bf16.msra.mxu0 %v1425
    %1491 = vmatprep.subr.bf16.mxu0 %v1430
    %1492 = vmatpush1.bf16.msra.mxu0 %v1429
    %1493 = vmatprep.subr.bf16.mxu0 %v1434
    %1494 = vmatpush1.bf16.msra.mxu0 %v1433
    %1495 = vmatprep.subr.bf16.mxu0 %v1438
    %1496 = vmatpush1.bf16.msra.mxu0 %v1437
    %1497 = vmatprep.subr.bf16.mxu0 %v1442
    %1498 = vmatpush1.bf16.msra.mxu0 %v1441
    %1499 = vmatprep.subr.bf16.mxu0 %v1446
    %1500 = vmatpush1.bf16.msra.mxu0 %v1445
    %1501 = vmatprep.subr.bf16.mxu0 %v1450
    %1502 = vmatpush1.bf16.msra.mxu0 %v1449
    %1503 = vmatprep.subr.bf16.mxu0 %v1454
    %1504 = vmatpush1.bf16.msra.mxu0 %v1453
    %1505 = vmatprep.subr.bf16.mxu0 0
    %1506 = vmatpush1.bf16.msra.mxu0 0
    %1507 = vmatprep.subr.bf16.mxu0 0
    %1508 = vmatpush1.bf16.msra.mxu0 0
    %1509 = vmatprep.subr.bf16.mxu0 0
    %1510 = vmatpush1.bf16.msra.mxu0 0
    %1511 = vmatprep.subr.bf16.mxu0 0
    %1512 = vmatpush1.bf16.msra.mxu0 0
    %1513 = vmatprep.subr.bf16.mxu0 0
    %1514 = vmatpush1.bf16.msra.mxu0 0
    %1515 = vmatprep.subr.bf16.mxu0 0
    %1516 = vmatpush1.bf16.msra.mxu0 0
    %1517 = vmatprep.subr.bf16.mxu0 0
    %1518 = vmatpush1.bf16.msra.mxu0 0
    %1519 = vmatprep.subr.bf16.mxu0 0
    %1520 = vmatpush1.bf16.msra.mxu0 0
    %1521 = vmatprep.mubr.bf16.mxu0 0
    %1522 = vmatmul.mubr.bf16.gmra.mrb[0].mxu0 %v1274
    %v1523 = vpop.f32.mrb[0].mxu0
    %v1524 = vadd.f32 %v1312, %v1523
    %v1525 = vpop.f32.mrb[0].mxu0
    %v1526 = vadd.f32 %v1316, %v1525
    %v1527 = vpop.f32.mrb[0].mxu0
    %v1528 = vadd.f32 %v1312, %v1527
    %v1529 = vpop.f32.mrb[0].mxu0
    %v1530 = vadd.f32 %v1316, %v1529
    %1531 = vdwg.mxu0
    %1532 = vmatprep.subr.bf16.mxu0 %v1428
    %1533 = vmatpush1.bf16.msra.mxu0 %v1427
    %1534 = vmatprep.subr.bf16.mxu0 %v1432
    %1535 = vmatpush1.bf16.msra.mxu0 %v1431
    %1536 = vmatprep.subr.bf16.mxu0 %v1436
    %1537 = vmatpush1.bf16.msra.mxu0 %v1435
    %1538 = vmatprep.subr.bf16.mxu0 %v1440
    %1539 = vmatpush1.bf16.msra.mxu0 %v1439
    %1540 = vmatprep.subr.bf16.mxu0 %v1444
    %1541 = vmatpush1.bf16.msra.mxu0 %v1443
    %1542 = vmatprep.subr.bf16.mxu0 %v1448
    %1543 = vmatpush1.bf16.msra.mxu0 %v1447
    %1544 = vmatprep.subr.bf16.mxu0 %v1452
    %1545 = vmatpush1.bf16.msra.mxu0 %v1451
    %1546 = vmatprep.subr.bf16.mxu0 %v1456
    %1547 = vmatpush1.bf16.msra.mxu0 %v1455
    %1548 = vmatprep.subr.bf16.mxu0 0
    %1549 = vmatpush1.bf16.msra.mxu0 0
    %1550 = vmatprep.subr.bf16.mxu0 0
    %1551 = vmatpush1.bf16.msra.mxu0 0
    %1552 = vmatprep.subr.bf16.mxu0 0
    %1553 = vmatpush1.bf16.msra.mxu0 0
    %1554 = vmatprep.subr.bf16.mxu0 0
    %1555 = vmatpush1.bf16.msra.mxu0 0
    %1556 = vmatprep.subr.bf16.mxu0 0
    %1557 = vmatpush1.bf16.msra.mxu0 0
    %1558 = vmatprep.subr.bf16.mxu0 0
    %1559 = vmatpush1.bf16.msra.mxu0 0
    %1560 = vmatprep.subr.bf16.mxu0 0
    %1561 = vmatpush1.bf16.msra.mxu0 0
    %1562 = vmatprep.subr.bf16.mxu0 0
    %1563 = vmatpush1.bf16.msra.mxu0 0
    %1564 = vmatprep.mubr.bf16.mxu0 0
    %1565 = vmatmul.mubr.bf16.gmra.mrb[0].mxu0 %v1274
    %v1566 = vpop.f32.mrb[0].mxu0
    %v1567 = vadd.f32 %v1320, %v1566
    %v1568 = vpop.f32.mrb[0].mxu0
    %v1569 = vadd.f32 %v1324, %v1568
    %v1570 = vpop.f32.mrb[0].mxu0
    %v1571 = vadd.f32 %v1320, %v1570
    %v1572 = vpop.f32.mrb[0].mxu0
    %v1573 = vadd.f32 %v1324, %v1572
    %1574 = vdwg.mxu0
    %v1575 = vld [vmem:[#allocation7] sm:$0xff]
    %v1576 = vld [vmem:[#allocation7 + $0x8] sm:$0xff]
    %v1577 = vld [vmem:[#allocation7 + $0x10] sm:$0xff]
    %v1578 = vld [vmem:[#allocation7 + $0x18] sm:$0xff]
    %v1579 = vld [vmem:[#allocation7 + $0x20] sm:$0xff]
    %v1580 = vld [vmem:[#allocation7 + $0x28] sm:$0xff]
    %v1581 = vld [vmem:[#allocation7 + $0x30] sm:$0xff]
    %v1582 = vld [vmem:[#allocation7 + $0x38] sm:$0xff]
    %v1583 = vld [vmem:[#allocation7 + $0x40] sm:$0xff]
    %v1584 = vld [vmem:[#allocation7 + $0x48] sm:$0xff]
    %v1585 = vld [vmem:[#allocation7 + $0x50] sm:$0xff]
    %v1586 = vld [vmem:[#allocation7 + $0x58] sm:$0xff]
    %v1587 = vld [vmem:[#allocation7 + $0x60] sm:$0xff]
    %v1588 = vld [vmem:[#allocation7 + $0x68] sm:$0xff]
    %v1589 = vld [vmem:[#allocation7 + $0x70] sm:$0xff]
    %v1590 = vld [vmem:[#allocation7 + $0x78] sm:$0xff]
    %v1591 = vld [vmem:[#allocation7 + $0x80] sm:$0xff]
    %v1592 = vld [vmem:[#allocation7 + $0x88] sm:$0xff]
    %v1593 = vld [vmem:[#allocation7 + $0x90] sm:$0xff]
    %v1594 = vld [vmem:[#allocation7 + $0x98] sm:$0xff]
    %v1595 = vld [vmem:[#allocation7 + $0xa0] sm:$0xff]
    %v1596 = vld [vmem:[#allocation7 + $0xa8] sm:$0xff]
    %v1597 = vld [vmem:[#allocation7 + $0xb0] sm:$0xff]
    %v1598 = vld [vmem:[#allocation7 + $0xb8] sm:$0xff]
    %v1599 = vld [vmem:[#allocation7 + $0xc0] sm:$0xff]
    %v1600 = vld [vmem:[#allocation7 + $0xc8] sm:$0xff]
    %v1601 = vld [vmem:[#allocation7 + $0xd0] sm:$0xff]
    %v1602 = vld [vmem:[#allocation7 + $0xd8] sm:$0xff]
    %v1603 = vld [vmem:[#allocation7 + $0xe0] sm:$0xff]
    %v1604 = vld [vmem:[#allocation7 + $0xe8] sm:$0xff]
    %v1605 = vld [vmem:[#allocation7 + $0xf0] sm:$0xff]
    %v1606 = vld [vmem:[#allocation7 + $0xf8] sm:$0xff]
    %v1639 = vunpack.c.l.b16 %v1575
    %v1640 = vunpack.c.h.b16 %v1575
    %v1641 = vunpack.c.l.b16 %v1576
    %v1642 = vunpack.c.h.b16 %v1576
    %v1643 = vunpack.c.l.b16 %v1577
    %v1644 = vunpack.c.h.b16 %v1577
    %v1645 = vunpack.c.l.b16 %v1578
    %v1646 = vunpack.c.h.b16 %v1578
    %v1647 = vunpack.c.l.b16 %v1579
    %v1648 = vunpack.c.h.b16 %v1579
    %v1649 = vunpack.c.l.b16 %v1580
    %v1650 = vunpack.c.h.b16 %v1580
    %v1651 = vunpack.c.l.b16 %v1581
    %v1652 = vunpack.c.h.b16 %v1581
    %v1653 = vunpack.c.l.b16 %v1582
    %v1654 = vunpack.c.h.b16 %v1582
    %v1655 = vunpack.c.l.b16 %v1583
    %v1656 = vunpack.c.h.b16 %v1583
    %v1657 = vunpack.c.l.b16 %v1584
    %v1658 = vunpack.c.h.b16 %v1584
    %v1659 = vunpack.c.l.b16 %v1585
    %v1660 = vunpack.c.h.b16 %v1585
    %v1661 = vunpack.c.l.b16 %v1586
    %v1662 = vunpack.c.h.b16 %v1586
    %v1663 = vunpack.c.l.b16 %v1587
    %v1664 = vunpack.c.h.b16 %v1587
    %v1665 = vunpack.c.l.b16 %v1588
    %v1666 = vunpack.c.h.b16 %v1588
    %v1667 = vunpack.c.l.b16 %v1589
    %v1668 = vunpack.c.h.b16 %v1589
    %v1669 = vunpack.c.l.b16 %v1590
    %v1670 = vunpack.c.h.b16 %v1590
    %v1671 = vunpack.c.l.b16 %v1591
    %v1672 = vunpack.c.h.b16 %v1591
    %v1673 = vunpack.c.l.b16 %v1592
    %v1674 = vunpack.c.h.b16 %v1592
    %v1675 = vunpack.c.l.b16 %v1593
    %v1676 = vunpack.c.h.b16 %v1593
    %v1677 = vunpack.c.l.b16 %v1594
    %v1678 = vunpack.c.h.b16 %v1594
    %v1679 = vunpack.c.l.b16 %v1595
    %v1680 = vunpack.c.h.b16 %v1595
    %v1681 = vunpack.c.l.b16 %v1596
    %v1682 = vunpack.c.h.b16 %v1596
    %v1683 = vunpack.c.l.b16 %v1597
    %v1684 = vunpack.c.h.b16 %v1597
    %v1685 = vunpack.c.l.b16 %v1598
    %v1686 = vunpack.c.h.b16 %v1598
    %v1687 = vunpack.c.l.b16 %v1599
    %v1688 = vunpack.c.h.b16 %v1599
    %v1689 = vunpack.c.l.b16 %v1600
    %v1690 = vunpack.c.h.b16 %v1600
    %v1691 = vunpack.c.l.b16 %v1601
    %v1692 = vunpack.c.h.b16 %v1601
    %v1693 = vunpack.c.l.b16 %v1602
    %v1694 = vunpack.c.h.b16 %v1602
    %v1695 = vunpack.c.l.b16 %v1603
    %v1696 = vunpack.c.h.b16 %v1603
    %v1697 = vunpack.c.l.b16 %v1604
    %v1698 = vunpack.c.h.b16 %v1604
    %v1699 = vunpack.c.l.b16 %v1605
    %v1700 = vunpack.c.h.b16 %v1605
    %v1701 = vunpack.c.l.b16 %v1606
    %v1702 = vunpack.c.h.b16 %v1606
    %v1703 = vpack.c.b16 %v1643, %v1639
    %v1704 = vpack.c.b16 %v1644, %v1640
    %v1705 = vpack.c.b16 %v1645, %v1641
    %v1706 = vpack.c.b16 %v1646, %v1642
    %v1707 = vpack.c.b16 %v1651, %v1647
    %v1708 = vpack.c.b16 %v1652, %v1648
    %v1709 = vpack.c.b16 %v1653, %v1649
    %v1710 = vpack.c.b16 %v1654, %v1650
    %v1711 = vpack.c.b16 %v1659, %v1655
    %v1712 = vpack.c.b16 %v1660, %v1656
    %v1713 = vpack.c.b16 %v1661, %v1657
    %v1714 = vpack.c.b16 %v1662, %v1658
    %v1715 = vpack.c.b16 %v1667, %v1663
    %v1716 = vpack.c.b16 %v1668, %v1664
    %v1717 = vpack.c.b16 %v1669, %v1665
    %v1718 = vpack.c.b16 %v1670, %v1666
    %v1719 = vpack.c.b16 %v1675, %v1671
    %v1720 = vpack.c.b16 %v1676, %v1672
    %v1721 = vpack.c.b16 %v1677, %v1673
    %v1722 = vpack.c.b16 %v1678, %v1674
    %v1723 = vpack.c.b16 %v1683, %v1679
    %v1724 = vpack.c.b16 %v1684, %v1680
    %v1725 = vpack.c.b16 %v1685, %v1681
    %v1726 = vpack.c.b16 %v1686, %v1682
    %v1727 = vpack.c.b16 %v1691, %v1687
    %v1728 = vpack.c.b16 %v1692, %v1688
    %v1729 = vpack.c.b16 %v1693, %v1689
    %v1730 = vpack.c.b16 %v1694, %v1690
    %v1731 = vpack.c.b16 %v1699, %v1695
    %v1732 = vpack.c.b16 %v1700, %v1696
    %v1733 = vpack.c.b16 %v1701, %v1697
    %v1734 = vpack.c.b16 %v1702, %v1698
    %1767 = vmatprep.subr.bf16.mxu0 %v1704
    %1768 = vmatpush1.bf16.msra.mxu0 %v1703
    %1769 = vmatprep.subr.bf16.mxu0 %v1708
    %1770 = vmatpush1.bf16.msra.mxu0 %v1707
    %1771 = vmatprep.subr.bf16.mxu0 %v1712
    %1772 = vmatpush1.bf16.msra.mxu0 %v1711
    %1773 = vmatprep.subr.bf16.mxu0 %v1716
    %1774 = vmatpush1.bf16.msra.mxu0 %v1715
    %1775 = vmatprep.subr.bf16.mxu0 %v1720
    %1776 = vmatpush1.bf16.msra.mxu0 %v1719
    %1777 = vmatprep.subr.bf16.mxu0 %v1724
    %1778 = vmatpush1.bf16.msra.mxu0 %v1723
    %1779 = vmatprep.subr.bf16.mxu0 %v1728
    %1780 = vmatpush1.bf16.msra.mxu0 %v1727
    %1781 = vmatprep.subr.bf16.mxu0 %v1732
    %1782 = vmatpush1.bf16.msra.mxu0 %v1731
    %1783 = vmatprep.subr.bf16.mxu0 0
    %1784 = vmatpush1.bf16.msra.mxu0 0
    %1785 = vmatprep.subr.bf16.mxu0 0
    %1786 = vmatpush1.bf16.msra.mxu0 0
    %1787 = vmatprep.subr.bf16.mxu0 0
    %1788 = vmatpush1.bf16.msra.mxu0 0
    %1789 = vmatprep.subr.bf16.mxu0 0
    %1790 = vmatpush1.bf16.msra.mxu0 0
    %1791 = vmatprep.subr.bf16.mxu0 0
    %1792 = vmatpush1.bf16.msra.mxu0 0
    %1793 = vmatprep.subr.bf16.mxu0 0
    %1794 = vmatpush1.bf16.msra.mxu0 0
    %1795 = vmatprep.subr.bf16.mxu0 0
    %1796 = vmatpush1.bf16.msra.mxu0 0
    %1797 = vmatprep.subr.bf16.mxu0 0
    %1798 = vmatpush1.bf16.msra.mxu0 0
    %1799 = vmatprep.mubr.bf16.mxu0 0
    %1800 = vmatmul.mubr.bf16.gmra.mrb[0].mxu0 0
    %v1801 = vpop.f32.mrb[0].mxu0
    %v1802 = vadd.f32 0.0, %v1801
    %v1803 = vpop.f32.mrb[0].mxu0
    %v1804 = vadd.f32 0.0, %v1803
    %v1805 = vpop.f32.mrb[0].mxu0
    %v1806 = vpop.f32.mrb[0].mxu0
    %1807 = vdwg.mxu0
    %1808 = vmatprep.subr.bf16.mxu0 %v1706
    %1809 = vmatpush1.bf16.msra.mxu0 %v1705
    %1810 = vmatprep.subr.bf16.mxu0 %v1710
    %1811 = vmatpush1.bf16.msra.mxu0 %v1709
    %1812 = vmatprep.subr.bf16.mxu0 %v1714
    %1813 = vmatpush1.bf16.msra.mxu0 %v1713
    %1814 = vmatprep.subr.bf16.mxu0 %v1718
    %1815 = vmatpush1.bf16.msra.mxu0 %v1717
    %1816 = vmatprep.subr.bf16.mxu0 %v1722
    %1817 = vmatpush1.bf16.msra.mxu0 %v1721
    %1818 = vmatprep.subr.bf16.mxu0 %v1726
    %1819 = vmatpush1.bf16.msra.mxu0 %v1725
    %1820 = vmatprep.subr.bf16.mxu0 %v1730
    %1821 = vmatpush1.bf16.msra.mxu0 %v1729
    %1822 = vmatprep.subr.bf16.mxu0 %v1734
    %1823 = vmatpush1.bf16.msra.mxu0 %v1733
    %1824 = vmatprep.subr.bf16.mxu0 0
    %1825 = vmatpush1.bf16.msra.mxu0 0
    %1826 = vmatprep.subr.bf16.mxu0 0
    %1827 = vmatpush1.bf16.msra.mxu0 0
    %1828 = vmatprep.subr.bf16.mxu0 0
    %1829 = vmatpush1.bf16.msra.mxu0 0
    %1830 = vmatprep.subr.bf16.mxu0 0
    %1831 = vmatpush1.bf16.msra.mxu0 0
    %1832 = vmatprep.subr.bf16.mxu0 0
    %1833 = vmatpush1.bf16.msra.mxu0 0
    %1834 = vmatprep.subr.bf16.mxu0 0
    %1835 = vmatpush1.bf16.msra.mxu0 0
    %1836 = vmatprep.subr.bf16.mxu0 0
    %1837 = vmatpush1.bf16.msra.mxu0 0
    %1838 = vmatprep.subr.bf16.mxu0 0
    %1839 = vmatpush1.bf16.msra.mxu0 0
    %1840 = vmatprep.mubr.bf16.mxu0 0
    %1841 = vmatmul.mubr.bf16.gmra.mrb[0].mxu0 0
    %v1842 = vpop.f32.mrb[0].mxu0
    %v1843 = vadd.f32 0.0, %v1842
    %v1844 = vpop.f32.mrb[0].mxu0
    %v1845 = vadd.f32 0.0, %v1844
    %v1846 = vpop.f32.mrb[0].mxu0
    %v1847 = vpop.f32.mrb[0].mxu0
    %1848 = vdwg.mxu0
    %v1849 = vadd.f32 %v1524, %v1802
    %v1850 = vadd.f32 %v1526, %v1804
    %v1851 = vadd.f32 %v1567, %v1843
    %v1852 = vadd.f32 %v1569, %v1845
    %v1853 = vxor.u32 %v1849, 2147483648
    %v1854 = vxor.u32 %v1850, 2147483648
    %v1855 = vxor.u32 %v1851, 2147483648
    %v1856 = vmul.f32 %v1853, 1.442695
    %v1857 = vpow.pop %v1856
    %v1858 = vmul.f32 %v1854, 1.442695
    %v1859 = vpow.pop %v1858
    %v1860 = vmul.f32 %v1855, 1.442695
    %v1861 = vpow.pop %v1860
    %v1862 = vadd.f32 %v1857, 1.0
    %v1863 = vadd.f32 %v1859, 1.0
    %v1864 = vadd.f32 %v1861, 1.0
    %v1865 = vrcp.pop %v1862
    %v1866 = vmul.f32 1.0, %v1865
    %v1867 = vrcp.pop %v1863
    %v1868 = vmul.f32 1.0, %v1867
    %v1869 = vrcp.pop %v1864
    %v1870 = vmul.f32 1.0, %v1869
    %v1871 = vtanh.pop %v1852
    %v1872 = vmul.f32 %v1868, 0.0
    %v1873 = vmul.f32 %v1866, %v1871
    %v1874 = vadd.f32 %v1872, %v1873
    %v1875 = vtanh.pop %v1874
    %v1876 = vmul.f32 %v1870, %v1875
    %v1877 = vpack.c.bf16 %v1876, %v1876
    %1878 = vmatprep.subr.bf16.mxu0 %v1704
    %1879 = vmatpush1.bf16.msra.mxu0 %v1703
    %1880 = vmatprep.subr.bf16.mxu0 %v1708
    %1881 = vmatpush1.bf16.msra.mxu0 %v1707
    %1882 = vmatprep.subr.bf16.mxu0 %v1712
    %1883 = vmatpush1.bf16.msra.mxu0 %v1711
    %1884 = vmatprep.subr.bf16.mxu0 %v1716
    %1885 = vmatpush1.bf16.msra.mxu0 %v1715
    %1886 = vmatprep.subr.bf16.mxu0 %v1720
    %1887 = vmatpush1.bf16.msra.mxu0 %v1719
    %1888 = vmatprep.subr.bf16.mxu0 %v1724
    %1889 = vmatpush1.bf16.msra.mxu0 %v1723
    %1890 = vmatprep.subr.bf16.mxu0 %v1728
    %1891 = vmatpush1.bf16.msra.mxu0 %v1727
    %1892 = vmatprep.subr.bf16.mxu0 %v1732
    %1893 = vmatpush1.bf16.msra.mxu0 %v1731
    %1894 = vmatprep.subr.bf16.mxu0 0
    %1895 = vmatpush1.bf16.msra.mxu0 0
    %1896 = vmatprep.subr.bf16.mxu0 0
    %1897 = vmatpush1.bf16.msra.mxu0 0
    %1898 = vmatprep.subr.bf16.mxu0 0
    %1899 = vmatpush1.bf16.msra.mxu0 0
    %1900 = vmatprep.subr.bf16.mxu0 0
    %1901 = vmatpush1.bf16.msra.mxu0 0
    %1902 = vmatprep.subr.bf16.mxu0 0
    %1903 = vmatpush1.bf16.msra.mxu0 0
    %1904 = vmatprep.subr.bf16.mxu0 0
    %1905 = vmatpush1.bf16.msra.mxu0 0
    %1906 = vmatprep.subr.bf16.mxu0 0
    %1907 = vmatpush1.bf16.msra.mxu0 0
    %1908 = vmatprep.subr.bf16.mxu0 0
    %1909 = vmatpush1.bf16.msra.mxu0 0
    %1910 = vmatprep.mubr.bf16.mxu0 0
    %1911 = vmatmul.mubr.bf16.gmra.mrb[0].mxu0 %v1877
    %v1912 = vpop.f32.mrb[0].mxu0
    %v1913 = vadd.f32 0.0, %v1912
    %v1914 = vpop.f32.mrb[0].mxu0
    %v1915 = vadd.f32 0.0, %v1914
    %v1916 = vpop.f32.mrb[0].mxu0
    %v1917 = vpop.f32.mrb[0].mxu0
    %1918 = vdwg.mxu0
    %1919 = vmatprep.subr.bf16.mxu0 %v1706
    %1920 = vmatpush1.bf16.msra.mxu0 %v1705
    %1921 = vmatprep.subr.bf16.mxu0 %v1710
    %1922 = vmatpush1.bf16.msra.mxu0 %v1709
    %1923 = vmatprep.subr.bf16.mxu0 %v1714
    %1924 = vmatpush1.bf16.msra.mxu0 %v1713
    %1925 = vmatprep.subr.bf16.mxu0 %v1718
    %1926 = vmatpush1.bf16.msra.mxu0 %v1717
    %1927 = vmatprep.subr.bf16.mxu0 %v1722
    %1928 = vmatpush1.bf16.msra.mxu0 %v1721
    %1929 = vmatprep.subr.bf16.mxu0 %v1726
    %1930 = vmatpush1.bf16.msra.mxu0 %v1725
    %1931 = vmatprep.subr.bf16.mxu0 %v1730
    %1932 = vmatpush1.bf16.msra.mxu0 %v1729
    %1933 = vmatprep.subr.bf16.mxu0 %v1734
    %1934 = vmatpush1.bf16.msra.mxu0 %v1733
    %1935 = vmatprep.subr.bf16.mxu0 0
    %1936 = vmatpush1.bf16.msra.mxu0 0
    %1937 = vmatprep.subr.bf16.mxu0 0
    %1938 = vmatpush1.bf16.msra.mxu0 0
    %1939 = vmatprep.subr.bf16.mxu0 0
    %1940 = vmatpush1.bf16.msra.mxu0 0
    %1941 = vmatprep.subr.bf16.mxu0 0
    %1942 = vmatpush1.bf16.msra.mxu0 0
    %1943 = vmatprep.subr.bf16.mxu0 0
    %1944 = vmatpush1.bf16.msra.mxu0 0
    %1945 = vmatprep.subr.bf16.mxu0 0
    %1946 = vmatpush1.bf16.msra.mxu0 0
    %1947 = vmatprep.subr.bf16.mxu0 0
    %1948 = vmatpush1.bf16.msra.mxu0 0
    %1949 = vmatprep.subr.bf16.mxu0 0
    %1950 = vmatpush1.bf16.msra.mxu0 0
    %1951 = vmatprep.mubr.bf16.mxu0 0
    %1952 = vmatmul.mubr.bf16.gmra.mrb[0].mxu0 %v1877
    %v1953 = vpop.f32.mrb[0].mxu0
    %v1954 = vadd.f32 0.0, %v1953
    %v1955 = vpop.f32.mrb[0].mxu0
    %v1956 = vadd.f32 0.0, %v1955
    %v1957 = vpop.f32.mrb[0].mxu0
    %v1958 = vpop.f32.mrb[0].mxu0
    %1959 = vdwg.mxu0
    %v1964 = vrot.slane %v1913, 6
    %v1965 = vrot.slane %v1915, 6
    %v1966 = vrot.slane %v1954, 6
    %v1967 = vrot.slane %v1956, 6
    %v1972 = vadd.f32 %v1524, %v1964
    %v1973 = vadd.f32 %v1526, %v1965
    %v1974 = vadd.f32 %v1567, %v1966
    %v1975 = vadd.f32 %v1569, %v1967
    %v1976 = vxor.u32 %v1972, 2147483648
    %v1977 = vxor.u32 %v1973, 2147483648
    %v1978 = vxor.u32 %v1974, 2147483648
    %v1979 = vmul.f32 %v1976, 1.442695
    %v1980 = vpow.pop %v1979
    %v1981 = vmul.f32 %v1977, 1.442695
    %v1982 = vpow.pop %v1981
    %v1983 = vmul.f32 %v1978, 1.442695
    %v1984 = vpow.pop %v1983
    %v1985 = vadd.f32 %v1980, 1.0
    %v1986 = vadd.f32 %v1982, 1.0
    %v1987 = vadd.f32 %v1984, 1.0
    %v1988 = vrcp.pop %v1985
    %v1989 = vmul.f32 1.0, %v1988
    %v1990 = vrcp.pop %v1986
    %v1991 = vmul.f32 1.0, %v1990
    %v1992 = vrcp.pop %v1987
    %v1993 = vmul.f32 1.0, %v1992
    %v1994 = vtanh.pop %v1975
    %v1996 = vrot.slane %v1874, 6
    %v1998 = vmul.f32 %v1991, %v1996
    %v1999 = vmul.f32 %v1989, %v1994
    %v2000 = vadd.f32 %v1998, %v1999
    %v2001 = vtanh.pop %v2000
    %v2002 = vmul.f32 %v1993, %v2001
    %v2003 = vpack.c.bf16 %v2002, %v2002
    %v2005 = vrot.slane %v2003, 1
    %2007 = vmatprep.subr.bf16.mxu0 %v1704
    %2008 = vmatpush1.bf16.msra.mxu0 %v1703
    %2009 = vmatprep.subr.bf16.mxu0 %v1708
    %2010 = vmatpush1.bf16.msra.mxu0 %v1707
    %2011 = vmatprep.subr.bf16.mxu0 %v1712
    %2012 = vmatpush1.bf16.msra.mxu0 %v1711
    %2013 = vmatprep.subr.bf16.mxu0 %v1716
    %2014 = vmatpush1.bf16.msra.mxu0 %v1715
    %2015 = vmatprep.subr.bf16.mxu0 %v1720
    %2016 = vmatpush1.bf16.msra.mxu0 %v1719
    %2017 = vmatprep.subr.bf16.mxu0 %v1724
    %2018 = vmatpush1.bf16.msra.mxu0 %v1723
    %2019 = vmatprep.subr.bf16.mxu0 %v1728
    %2020 = vmatpush1.bf16.msra.mxu0 %v1727
    %2021 = vmatprep.subr.bf16.mxu0 %v1732
    %2022 = vmatpush1.bf16.msra.mxu0 %v1731
    %2023 = vmatprep.subr.bf16.mxu0 0
    %2024 = vmatpush1.bf16.msra.mxu0 0
    %2025 = vmatprep.subr.bf16.mxu0 0
    %2026 = vmatpush1.bf16.msra.mxu0 0
    %2027 = vmatprep.subr.bf16.mxu0 0
    %2028 = vmatpush1.bf16.msra.mxu0 0
    %2029 = vmatprep.subr.bf16.mxu0 0
    %2030 = vmatpush1.bf16.msra.mxu0 0
    %2031 = vmatprep.subr.bf16.mxu0 0
    %2032 = vmatpush1.bf16.msra.mxu0 0
    %2033 = vmatprep.subr.bf16.mxu0 0
    %2034 = vmatpush1.bf16.msra.mxu0 0
    %2035 = vmatprep.subr.bf16.mxu0 0
    %2036 = vmatpush1.bf16.msra.mxu0 0
    %2037 = vmatprep.subr.bf16.mxu0 0
    %2038 = vmatpush1.bf16.msra.mxu0 0
    %2039 = vmatprep.mubr.bf16.mxu0 0
    %2040 = vmatmul.mubr.bf16.gmra.mrb[0].mxu0 %v2005
    %v2041 = vpop.f32.mrb[0].mxu0
    %v2042 = vadd.f32 0.0, %v2041
    %v2043 = vpop.f32.mrb[0].mxu0
    %v2044 = vadd.f32 0.0, %v2043
    %v2045 = vpop.f32.mrb[0].mxu0
    %v2046 = vpop.f32.mrb[0].mxu0
    %2047 = vdwg.mxu0
    %2048 = vmatprep.subr.bf16.mxu0 %v1706
    %2049 = vmatpush1.bf16.msra.mxu0 %v1705
    %2050 = vmatprep.subr.bf16.mxu0 %v1710
    %2051 = vmatpush1.bf16.msra.mxu0 %v1709
    %2052 = vmatprep.subr.bf16.mxu0 %v1714
    %2053 = vmatpush1.bf16.msra.mxu0 %v1713
    %2054 = vmatprep.subr.bf16.mxu0 %v1718
    %2055 = vmatpush1.bf16.msra.mxu0 %v1717
    %2056 = vmatprep.subr.bf16.mxu0 %v1722
    %2057 = vmatpush1.bf16.msra.mxu0 %v1721
    %2058 = vmatprep.subr.bf16.mxu0 %v1726
    %2059 = vmatpush1.bf16.msra.mxu0 %v1725
    %2060 = vmatprep.subr.bf16.mxu0 %v1730
    %2061 = vmatpush1.bf16.msra.mxu0 %v1729
    %2062 = vmatprep.subr.bf16.mxu0 %v1734
    %2063 = vmatpush1.bf16.msra.mxu0 %v1733
    %2064 = vmatprep.subr.bf16.mxu0 0
    %2065 = vmatpush1.bf16.msra.mxu0 0
    %2066 = vmatprep.subr.bf16.mxu0 0
    %2067 = vmatpush1.bf16.msra.mxu0 0
    %2068 = vmatprep.subr.bf16.mxu0 0
    %2069 = vmatpush1.bf16.msra.mxu0 0
    %2070 = vmatprep.subr.bf16.mxu0 0
    %2071 = vmatpush1.bf16.msra.mxu0 0
    %2072 = vmatprep.subr.bf16.mxu0 0
    %2073 = vmatpush1.bf16.msra.mxu0 0
    %2074 = vmatprep.subr.bf16.mxu0 0
    %2075 = vmatpush1.bf16.msra.mxu0 0
    %2076 = vmatprep.subr.bf16.mxu0 0
    %2077 = vmatpush1.bf16.msra.mxu0 0
    %2078 = vmatprep.subr.bf16.mxu0 0
    %2079 = vmatpush1.bf16.msra.mxu0 0
    %2080 = vmatprep.mubr.bf16.mxu0 0
    %2081 = vmatmul.mubr.bf16.gmra.mrb[0].mxu0 %v2005
    %v2082 = vpop.f32.mrb[0].mxu0
    %v2083 = vadd.f32 0.0, %v2082
    %v2084 = vpop.f32.mrb[0].mxu0
    %v2085 = vadd.f32 0.0, %v2084
    %v2086 = vpop.f32.mrb[0].mxu0
    %v2087 = vpop.f32.mrb[0].mxu0
    %2088 = vdwg.mxu0
    %v2093 = vrot.slane %v2042, 4
    %v2094 = vrot.slane %v2044, 4
    %v2095 = vrot.slane %v2083, 4
    %v2096 = vrot.slane %v2085, 4
    %v2101 = vadd.f32 %v1524, %v2093
    %v2102 = vadd.f32 %v1526, %v2094
    %v2103 = vadd.f32 %v1567, %v2095
    %v2104 = vadd.f32 %v1569, %v2096
    %v2105 = vxor.u32 %v2101, 2147483648
    %v2106 = vxor.u32 %v2102, 2147483648
    %v2107 = vxor.u32 %v2103, 2147483648
    %v2108 = vmul.f32 %v2105, 1.442695
    %v2109 = vpow.pop %v2108
    %v2110 = vmul.f32 %v2106, 1.442695
    %v2111 = vpow.pop %v2110
    %v2112 = vmul.f32 %v2107, 1.442695
    %v2113 = vpow.pop %v2112
    %v2114 = vadd.f32 %v2109, 1.0
    %v2115 = vadd.f32 %v2111, 1.0
    %v2116 = vadd.f32 %v2113, 1.0
    %v2117 = vrcp.pop %v2114
    %v2118 = vmul.f32 1.0, %v2117
    %v2119 = vrcp.pop %v2115
    %v2120 = vmul.f32 1.0, %v2119
    %v2121 = vrcp.pop %v2116
    %v2122 = vmul.f32 1.0, %v2121
    %v2123 = vtanh.pop %v2104
    %v2125 = vrot.slane %v2000, 6
    %v2127 = vmul.f32 %v2120, %v2125
    %v2128 = vmul.f32 %v2118, %v2123
    %v2129 = vadd.f32 %v2127, %v2128
    %v2130 = vtanh.pop %v2129
    %v2131 = vmul.f32 %v2122, %v2130
    %v2132 = vpack.c.bf16 %v2131, %v2131
    %v2134 = vrot.slane %v2132, 2
    %2136 = vmatprep.subr.bf16.mxu0 %v1704
    %2137 = vmatpush1.bf16.msra.mxu0 %v1703
    %2138 = vmatprep.subr.bf16.mxu0 %v1708
    %2139 = vmatpush1.bf16.msra.mxu0 %v1707
    %2140 = vmatprep.subr.bf16.mxu0 %v1712
    %2141 = vmatpush1.bf16.msra.mxu0 %v1711
    %2142 = vmatprep.subr.bf16.mxu0 %v1716
    %2143 = vmatpush1.bf16.msra.mxu0 %v1715
    %2144 = vmatprep.subr.bf16.mxu0 %v1720
    %2145 = vmatpush1.bf16.msra.mxu0 %v1719
    %2146 = vmatprep.subr.bf16.mxu0 %v1724
    %2147 = vmatpush1.bf16.msra.mxu0 %v1723
    %2148 = vmatprep.subr.bf16.mxu0 %v1728
    %2149 = vmatpush1.bf16.msra.mxu0 %v1727
    %2150 = vmatprep.subr.bf16.mxu0 %v1732
    %2151 = vmatpush1.bf16.msra.mxu0 %v1731
    %2152 = vmatprep.subr.bf16.mxu0 0
    %2153 = vmatpush1.bf16.msra.mxu0 0
    %2154 = vmatprep.subr.bf16.mxu0 0
    %2155 = vmatpush1.bf16.msra.mxu0 0
    %2156 = vmatprep.subr.bf16.mxu0 0
    %2157 = vmatpush1.bf16.msra.mxu0 0
    %2158 = vmatprep.subr.bf16.mxu0 0
    %2159 = vmatpush1.bf16.msra.mxu0 0
    %2160 = vmatprep.subr.bf16.mxu0 0
    %2161 = vmatpush1.bf16.msra.mxu0 0
    %2162 = vmatprep.subr.bf16.mxu0 0
    %2163 = vmatpush1.bf16.msra.mxu0 0
    %2164 = vmatprep.subr.bf16.mxu0 0
    %2165 = vmatpush1.bf16.msra.mxu0 0
    %2166 = vmatprep.subr.bf16.mxu0 0
    %2167 = vmatpush1.bf16.msra.mxu0 0
    %2168 = vmatprep.mubr.bf16.mxu0 0
    %2169 = vmatmul.mubr.bf16.gmra.mrb[0].mxu0 %v2134
    %v2170 = vpop.f32.mrb[0].mxu0
    %v2171 = vadd.f32 0.0, %v2170
    %v2172 = vpop.f32.mrb[0].mxu0
    %v2173 = vadd.f32 0.0, %v2172
    %v2174 = vpop.f32.mrb[0].mxu0
    %v2175 = vpop.f32.mrb[0].mxu0
    %2176 = vdwg.mxu0
    %2177 = vmatprep.subr.bf16.mxu0 %v1706
    %2178 = vmatpush1.bf16.msra.mxu0 %v1705
    %2179 = vmatprep.subr.bf16.mxu0 %v1710
    %2180 = vmatpush1.bf16.msra.mxu0 %v1709
    %2181 = vmatprep.subr.bf16.mxu0 %v1714
    %2182 = vmatpush1.bf16.msra.mxu0 %v1713
    %2183 = vmatprep.subr.bf16.mxu0 %v1718
    %2184 = vmatpush1.bf16.msra.mxu0 %v1717
    %2185 = vmatprep.subr.bf16.mxu0 %v1722
    %2186 = vmatpush1.bf16.msra.mxu0 %v1721
    %2187 = vmatprep.subr.bf16.mxu0 %v1726
    %2188 = vmatpush1.bf16.msra.mxu0 %v1725
    %2189 = vmatprep.subr.bf16.mxu0 %v1730
    %2190 = vmatpush1.bf16.msra.mxu0 %v1729
    %2191 = vmatprep.subr.bf16.mxu0 %v1734
    %2192 = vmatpush1.bf16.msra.mxu0 %v1733
    %2193 = vmatprep.subr.bf16.mxu0 0
    %2194 = vmatpush1.bf16.msra.mxu0 0
    %2195 = vmatprep.subr.bf16.mxu0 0
    %2196 = vmatpush1.bf16.msra.mxu0 0
    %2197 = vmatprep.subr.bf16.mxu0 0
    %2198 = vmatpush1.bf16.msra.mxu0 0
    %2199 = vmatprep.subr.bf16.mxu0 0
    %2200 = vmatpush1.bf16.msra.mxu0 0
    %2201 = vmatprep.subr.bf16.mxu0 0
    %2202 = vmatpush1.bf16.msra.mxu0 0
    %2203 = vmatprep.subr.bf16.mxu0 0
    %2204 = vmatpush1.bf16.msra.mxu0 0
    %2205 = vmatprep.subr.bf16.mxu0 0
    %2206 = vmatpush1.bf16.msra.mxu0 0
    %2207 = vmatprep.subr.bf16.mxu0 0
    %2208 = vmatpush1.bf16.msra.mxu0 0
    %2209 = vmatprep.mubr.bf16.mxu0 0
    %2210 = vmatmul.mubr.bf16.gmra.mrb[0].mxu0 %v2134
    %v2211 = vpop.f32.mrb[0].mxu0
    %v2212 = vadd.f32 0.0, %v2211
    %v2213 = vpop.f32.mrb[0].mxu0
    %v2214 = vadd.f32 0.0, %v2213
    %v2215 = vpop.f32.mrb[0].mxu0
    %v2216 = vpop.f32.mrb[0].mxu0
    %2217 = vdwg.mxu0
    %v2222 = vrot.slane %v2171, 2
    %v2223 = vrot.slane %v2173, 2
    %v2224 = vrot.slane %v2212, 2
    %v2225 = vrot.slane %v2214, 2
    %v2230 = vadd.f32 %v1524, %v2222
    %v2231 = vadd.f32 %v1526, %v2223
    %v2232 = vadd.f32 %v1567, %v2224
    %v2233 = vadd.f32 %v1569, %v2225
    %v2234 = vxor.u32 %v2230, 2147483648
    %v2235 = vxor.u32 %v2231, 2147483648
    %v2236 = vxor.u32 %v2232, 2147483648
    %v2237 = vmul.f32 %v2234, 1.442695
    %v2238 = vpow.pop %v2237
    %v2239 = vmul.f32 %v2235, 1.442695
    %v2240 = vpow.pop %v2239
    %v2241 = vmul.f32 %v2236, 1.442695
    %v2242 = vpow.pop %v2241
    %v2243 = vadd.f32 %v2238, 1.0
    %v2244 = vadd.f32 %v2240, 1.0
    %v2245 = vadd.f32 %v2242, 1.0
    %v2246 = vrcp.pop %v2243
    %v2247 = vmul.f32 1.0, %v2246
    %v2248 = vrcp.pop %v2244
    %v2249 = vmul.f32 1.0, %v2248
    %v2250 = vrcp.pop %v2245
    %v2251 = vmul.f32 1.0, %v2250
    %v2252 = vtanh.pop %v2233
    %v2254 = vrot.slane %v2129, 6
    %v2256 = vmul.f32 %v2249, %v2254
    %v2257 = vmul.f32 %v2247, %v2252
    %v2258 = vadd.f32 %v2256, %v2257
    %v2259 = vtanh.pop %v2258
    %v2260 = vmul.f32 %v2251, %v2259
    %v2261 = vpack.c.bf16 %v2260, %v2260
    %v2263 = vrot.slane %v2261, 3
    %2265 = vmatprep.subr.bf16.mxu0 %v1704
    %2266 = vmatpush1.bf16.msra.mxu0 %v1703
    %2267 = vmatprep.subr.bf16.mxu0 %v1708
    %2268 = vmatpush1.bf16.msra.mxu0 %v1707
    %2269 = vmatprep.subr.bf16.mxu0 %v1712
    %2270 = vmatpush1.bf16.msra.mxu0 %v1711
    %2271 = vmatprep.subr.bf16.mxu0 %v1716
    %2272 = vmatpush1.bf16.msra.mxu0 %v1715
    %2273 = vmatprep.subr.bf16.mxu0 %v1720
    %2274 = vmatpush1.bf16.msra.mxu0 %v1719
    %2275 = vmatprep.subr.bf16.mxu0 %v1724
    %2276 = vmatpush1.bf16.msra.mxu0 %v1723
    %2277 = vmatprep.subr.bf16.mxu0 %v1728
    %2278 = vmatpush1.bf16.msra.mxu0 %v1727
    %2279 = vmatprep.subr.bf16.mxu0 %v1732
    %2280 = vmatpush1.bf16.msra.mxu0 %v1731
    %2281 = vmatprep.subr.bf16.mxu0 0
    %2282 = vmatpush1.bf16.msra.mxu0 0
    %2283 = vmatprep.subr.bf16.mxu0 0
    %2284 = vmatpush1.bf16.msra.mxu0 0
    %2285 = vmatprep.subr.bf16.mxu0 0
    %2286 = vmatpush1.bf16.msra.mxu0 0
    %2287 = vmatprep.subr.bf16.mxu0 0
    %2288 = vmatpush1.bf16.msra.mxu0 0
    %2289 = vmatprep.subr.bf16.mxu0 0
    %2290 = vmatpush1.bf16.msra.mxu0 0
    %2291 = vmatprep.subr.bf16.mxu0 0
    %2292 = vmatpush1.bf16.msra.mxu0 0
    %2293 = vmatprep.subr.bf16.mxu0 0
    %2294 = vmatpush1.bf16.msra.mxu0 0
    %2295 = vmatprep.subr.bf16.mxu0 0
    %2296 = vmatpush1.bf16.msra.mxu0 0
    %2297 = vmatprep.mubr.bf16.mxu0 0
    %2298 = vmatmul.mubr.bf16.gmra.mrb[0].mxu0 %v2263
    %v2299 = vpop.f32.mrb[0].mxu0
    %v2300 = vadd.f32 0.0, %v2299
    %v2301 = vpop.f32.mrb[0].mxu0
    %v2302 = vadd.f32 0.0, %v2301
    %v2303 = vpop.f32.mrb[0].mxu0
    %v2304 = vpop.f32.mrb[0].mxu0
    %2305 = vdwg.mxu0
    %2306 = vmatprep.subr.bf16.mxu0 %v1706
    %2307 = vmatpush1.bf16.msra.mxu0 %v1705
    %2308 = vmatprep.subr.bf16.mxu0 %v1710
    %2309 = vmatpush1.bf16.msra.mxu0 %v1709
    %2310 = vmatprep.subr.bf16.mxu0 %v1714
    %2311 = vmatpush1.bf16.msra.mxu0 %v1713
    %2312 = vmatprep.subr.bf16.mxu0 %v1718
    %2313 = vmatpush1.bf16.msra.mxu0 %v1717
    %2314 = vmatprep.subr.bf16.mxu0 %v1722
    %2315 = vmatpush1.bf16.msra.mxu0 %v1721
    %2316 = vmatprep.subr.bf16.mxu0 %v1726
    %2317 = vmatpush1.bf16.msra.mxu0 %v1725
    %2318 = vmatprep.subr.bf16.mxu0 %v1730
    %2319 = vmatpush1.bf16.msra.mxu0 %v1729
    %2320 = vmatprep.subr.bf16.mxu0 %v1734
    %2321 = vmatpush1.bf16.msra.mxu0 %v1733
    %2322 = vmatprep.subr.bf16.mxu0 0
    %2323 = vmatpush1.bf16.msra.mxu0 0
    %2324 = vmatprep.subr.bf16.mxu0 0
    %2325 = vmatpush1.bf16.msra.mxu0 0
    %2326 = vmatprep.subr.bf16.mxu0 0
    %2327 = vmatpush1.bf16.msra.mxu0 0
    %2328 = vmatprep.subr.bf16.mxu0 0
    %2329 = vmatpush1.bf16.msra.mxu0 0
    %2330 = vmatprep.subr.bf16.mxu0 0
    %2331 = vmatpush1.bf16.msra.mxu0 0
    %2332 = vmatprep.subr.bf16.mxu0 0
    %2333 = vmatpush1.bf16.msra.mxu0 0
    %2334 = vmatprep.subr.bf16.mxu0 0
    %2335 = vmatpush1.bf16.msra.mxu0 0
    %2336 = vmatprep.subr.bf16.mxu0 0
    %2337 = vmatpush1.bf16.msra.mxu0 0
    %2338 = vmatprep.mubr.bf16.mxu0 0
    %2339 = vmatmul.mubr.bf16.gmra.mrb[0].mxu0 %v2263
    %v2340 = vpop.f32.mrb[0].mxu0
    %v2341 = vadd.f32 0.0, %v2340
    %v2342 = vpop.f32.mrb[0].mxu0
    %v2343 = vadd.f32 0.0, %v2342
    %v2344 = vpop.f32.mrb[0].mxu0
    %v2345 = vpop.f32.mrb[0].mxu0
    %2346 = vdwg.mxu0
    %v2347 = vadd.f32 %v1528, %v2300
    %v2348 = vadd.f32 %v1530, %v2302
    %v2349 = vadd.f32 %v1571, %v2341
    %v2350 = vadd.f32 %v1573, %v2343
    %v2351 = vxor.u32 %v2347, 2147483648
    %v2352 = vxor.u32 %v2348, 2147483648
    %v2353 = vxor.u32 %v2349, 2147483648
    %v2354 = vmul.f32 %v2351, 1.442695
    %v2355 = vpow.pop %v2354
    %v2356 = vmul.f32 %v2352, 1.442695
    %v2357 = vpow.pop %v2356
    %v2358 = vmul.f32 %v2353, 1.442695
    %v2359 = vpow.pop %v2358
    %v2360 = vadd.f32 %v2355, 1.0
    %v2361 = vadd.f32 %v2357, 1.0
    %v2362 = vadd.f32 %v2359, 1.0
    %v2363 = vrcp.pop %v2360
    %v2364 = vmul.f32 1.0, %v2363
    %v2365 = vrcp.pop %v2361
    %v2366 = vmul.f32 1.0, %v2365
    %v2367 = vrcp.pop %v2362
    %v2368 = vmul.f32 1.0, %v2367
    %v2369 = vtanh.pop %v2350
    %v2371 = vrot.slane %v2258, 6
    %v2373 = vmul.f32 %v2366, %v2371
    %v2374 = vmul.f32 %v2364, %v2369
    %v2375 = vadd.f32 %v2373, %v2374
    %v2376 = vtanh.pop %v2375
    %v2377 = vmul.f32 %v2368, %v2376
    %v2378 = vpack.c.bf16 %v2377, %v2377
    %2379 = vmatprep.subr.bf16.mxu0 %v1704
    %2380 = vmatpush1.bf16.msra.mxu0 %v1703
    %2381 = vmatprep.subr.bf16.mxu0 %v1708
    %2382 = vmatpush1.bf16.msra.mxu0 %v1707
    %2383 = vmatprep.subr.bf16.mxu0 %v1712
    %2384 = vmatpush1.bf16.msra.mxu0 %v1711
    %2385 = vmatprep.subr.bf16.mxu0 %v1716
    %2386 = vmatpush1.bf16.msra.mxu0 %v1715
    %2387 = vmatprep.subr.bf16.mxu0 %v1720
    %2388 = vmatpush1.bf16.msra.mxu0 %v1719
    %2389 = vmatprep.subr.bf16.mxu0 %v1724
    %2390 = vmatpush1.bf16.msra.mxu0 %v1723
    %2391 = vmatprep.subr.bf16.mxu0 %v1728
    %2392 = vmatpush1.bf16.msra.mxu0 %v1727
    %2393 = vmatprep.subr.bf16.mxu0 %v1732
    %2394 = vmatpush1.bf16.msra.mxu0 %v1731
    %2395 = vmatprep.subr.bf16.mxu0 0
    %2396 = vmatpush1.bf16.msra.mxu0 0
    %2397 = vmatprep.subr.bf16.mxu0 0
    %2398 = vmatpush1.bf16.msra.mxu0 0
    %2399 = vmatprep.subr.bf16.mxu0 0
    %2400 = vmatpush1.bf16.msra.mxu0 0
    %2401 = vmatprep.subr.bf16.mxu0 0
    %2402 = vmatpush1.bf16.msra.mxu0 0
    %2403 = vmatprep.subr.bf16.mxu0 0
    %2404 = vmatpush1.bf16.msra.mxu0 0
    %2405 = vmatprep.subr.bf16.mxu0 0
    %2406 = vmatpush1.bf16.msra.mxu0 0
    %2407 = vmatprep.subr.bf16.mxu0 0
    %2408 = vmatpush1.bf16.msra.mxu0 0
    %2409 = vmatprep.subr.bf16.mxu0 0
    %2410 = vmatpush1.bf16.msra.mxu0 0
    %2411 = vmatprep.mubr.bf16.mxu0 0
    %2412 = vmatmul.mubr.bf16.gmra.mrb[0].mxu0 %v2378
    %v2413 = vpop.f32.mrb[0].mxu0
    %v2414 = vadd.f32 0.0, %v2413
    %v2415 = vpop.f32.mrb[0].mxu0
    %v2416 = vadd.f32 0.0, %v2415
    %v2417 = vpop.f32.mrb[0].mxu0
    %v2418 = vpop.f32.mrb[0].mxu0
    %2419 = vdwg.mxu0
    %2420 = vmatprep.subr.bf16.mxu0 %v1706
    %2421 = vmatpush1.bf16.msra.mxu0 %v1705
    %2422 = vmatprep.subr.bf16.mxu0 %v1710
    %2423 = vmatpush1.bf16.msra.mxu0 %v1709
    %2424 = vmatprep.subr.bf16.mxu0 %v1714
    %2425 = vmatpush1.bf16.msra.mxu0 %v1713
    %2426 = vmatprep.subr.bf16.mxu0 %v1718
    %2427 = vmatpush1.bf16.msra.mxu0 %v1717
    %2428 = vmatprep.subr.bf16.mxu0 %v1722
    %2429 = vmatpush1.bf16.msra.mxu0 %v1721
    %2430 = vmatprep.subr.bf16.mxu0 %v1726
    %2431 = vmatpush1.bf16.msra.mxu0 %v1725
    %2432 = vmatprep.subr.bf16.mxu0 %v1730
    %2433 = vmatpush1.bf16.msra.mxu0 %v1729
    %2434 = vmatprep.subr.bf16.mxu0 %v1734
    %2435 = vmatpush1.bf16.msra.mxu0 %v1733
    %2436 = vmatprep.subr.bf16.mxu0 0
    %2437 = vmatpush1.bf16.msra.mxu0 0
    %2438 = vmatprep.subr.bf16.mxu0 0
    %2439 = vmatpush1.bf16.msra.mxu0 0
    %2440 = vmatprep.subr.bf16.mxu0 0
    %2441 = vmatpush1.bf16.msra.mxu0 0
    %2442 = vmatprep.subr.bf16.mxu0 0
    %2443 = vmatpush1.bf16.msra.mxu0 0
    %2444 = vmatprep.subr.bf16.mxu0 0
    %2445 = vmatpush1.bf16.msra.mxu0 0
    %2446 = vmatprep.subr.bf16.mxu0 0
    %2447 = vmatpush1.bf16.msra.mxu0 0
    %2448 = vmatprep.subr.bf16.mxu0 0
    %2449 = vmatpush1.bf16.msra.mxu0 0
    %2450 = vmatprep.subr.bf16.mxu0 0
    %2451 = vmatpush1.bf16.msra.mxu0 0
    %2452 = vmatprep.mubr.bf16.mxu0 0
    %2453 = vmatmul.mubr.bf16.gmra.mrb[0].mxu0 %v2378
    %v2454 = vpop.f32.mrb[0].mxu0
    %v2455 = vadd.f32 0.0, %v2454
    %v2456 = vpop.f32.mrb[0].mxu0
    %v2457 = vadd.f32 0.0, %v2456
    %v2458 = vpop.f32.mrb[0].mxu0
    %v2459 = vpop.f32.mrb[0].mxu0
    %2460 = vdwg.mxu0
    %v2465 = vrot.slane %v2414, 6
    %v2466 = vrot.slane %v2416, 6
    %v2467 = vrot.slane %v2455, 6
    %v2468 = vrot.slane %v2457, 6
    %v2473 = vadd.f32 %v1528, %v2465
    %v2474 = vadd.f32 %v1530, %v2466
    %v2475 = vadd.f32 %v1571, %v2467
    %v2476 = vadd.f32 %v1573, %v2468
    %v2477 = vxor.u32 %v2473, 2147483648
    %v2478 = vxor.u32 %v2474, 2147483648
    %v2479 = vxor.u32 %v2475, 2147483648
    %v2480 = vmul.f32 %v2477, 1.442695
    %v2481 = vpow.pop %v2480
    %v2482 = vmul.f32 %v2478, 1.442695
    %v2483 = vpow.pop %v2482
    %v2484 = vmul.f32 %v2479, 1.442695
    %v2485 = vpow.pop %v2484
    %v2486 = vadd.f32 %v2481, 1.0
    %v2487 = vadd.f32 %v2483, 1.0
    %v2488 = vadd.f32 %v2485, 1.0
    %v2489 = vrcp.pop %v2486
    %v2490 = vmul.f32 1.0, %v2489
    %v2491 = vrcp.pop %v2487
    %v2492 = vmul.f32 1.0, %v2491
    %v2493 = vrcp.pop %v2488
    %v2494 = vmul.f32 1.0, %v2493
    %v2495 = vtanh.pop %v2476
    %v2497 = vrot.slane %v2375, 6
    %v2499 = vmul.f32 %v2492, %v2497
    %v2500 = vmul.f32 %v2490, %v2495
    %v2501 = vadd.f32 %v2499, %v2500
    %v2502 = vtanh.pop %v2501
    %v2503 = vmul.f32 %v2494, %v2502
    %v2504 = vpack.c.bf16 %v2503, %v2503
    %v2506 = vrot.slane %v2504, 1
    %2508 = vmatprep.subr.bf16.mxu0 %v1704
    %2509 = vmatpush1.bf16.msra.mxu0 %v1703
    %2510 = vmatprep.subr.bf16.mxu0 %v1708
    %2511 = vmatpush1.bf16.msra.mxu0 %v1707
    %2512 = vmatprep.subr.bf16.mxu0 %v1712
    %2513 = vmatpush1.bf16.msra.mxu0 %v1711
    %2514 = vmatprep.subr.bf16.mxu0 %v1716
    %2515 = vmatpush1.bf16.msra.mxu0 %v1715
    %2516 = vmatprep.subr.bf16.mxu0 %v1720
    %2517 = vmatpush1.bf16.msra.mxu0 %v1719
    %2518 = vmatprep.subr.bf16.mxu0 %v1724
    %2519 = vmatpush1.bf16.msra.mxu0 %v1723
    %2520 = vmatprep.subr.bf16.mxu0 %v1728
    %2521 = vmatpush1.bf16.msra.mxu0 %v1727
    %2522 = vmatprep.subr.bf16.mxu0 %v1732
    %2523 = vmatpush1.bf16.msra.mxu0 %v1731
    %2524 = vmatprep.subr.bf16.mxu0 0
    %2525 = vmatpush1.bf16.msra.mxu0 0
    %2526 = vmatprep.subr.bf16.mxu0 0
    %2527 = vmatpush1.bf16.msra.mxu0 0
    %2528 = vmatprep.subr.bf16.mxu0 0
    %2529 = vmatpush1.bf16.msra.mxu0 0
    %2530 = vmatprep.subr.bf16.mxu0 0
    %2531 = vmatpush1.bf16.msra.mxu0 0
    %2532 = vmatprep.subr.bf16.mxu0 0
    %2533 = vmatpush1.bf16.msra.mxu0 0
    %2534 = vmatprep.subr.bf16.mxu0 0
    %2535 = vmatpush1.bf16.msra.mxu0 0
    %2536 = vmatprep.subr.bf16.mxu0 0
    %2537 = vmatpush1.bf16.msra.mxu0 0
    %2538 = vmatprep.subr.bf16.mxu0 0
    %2539 = vmatpush1.bf16.msra.mxu0 0
    %2540 = vmatprep.mubr.bf16.mxu0 0
    %2541 = vmatmul.mubr.bf16.gmra.mrb[0].mxu0 %v2506
    %v2542 = vpop.f32.mrb[0].mxu0
    %v2543 = vadd.f32 0.0, %v2542
    %v2544 = vpop.f32.mrb[0].mxu0
    %v2545 = vadd.f32 0.0, %v2544
    %v2546 = vpop.f32.mrb[0].mxu0
    %v2547 = vpop.f32.mrb[0].mxu0
    %2548 = vdwg.mxu0
    %2549 = vmatprep.subr.bf16.mxu0 %v1706
    %2550 = vmatpush1.bf16.msra.mxu0 %v1705
    %2551 = vmatprep.subr.bf16.mxu0 %v1710
    %2552 = vmatpush1.bf16.msra.mxu0 %v1709
    %2553 = vmatprep.subr.bf16.mxu0 %v1714
    %2554 = vmatpush1.bf16.msra.mxu0 %v1713
    %2555 = vmatprep.subr.bf16.mxu0 %v1718
    %2556 = vmatpush1.bf16.msra.mxu0 %v1717
    %2557 = vmatprep.subr.bf16.mxu0 %v1722
    %2558 = vmatpush1.bf16.msra.mxu0 %v1721
    %2559 = vmatprep.subr.bf16.mxu0 %v1726
    %2560 = vmatpush1.bf16.msra.mxu0 %v1725
    %2561 = vmatprep.subr.bf16.mxu0 %v1730
    %2562 = vmatpush1.bf16.msra.mxu0 %v1729
    %2563 = vmatprep.subr.bf16.mxu0 %v1734
    %2564 = vmatpush1.bf16.msra.mxu0 %v1733
    %2565 = vmatprep.subr.bf16.mxu0 0
    %2566 = vmatpush1.bf16.msra.mxu0 0
    %2567 = vmatprep.subr.bf16.mxu0 0
    %2568 = vmatpush1.bf16.msra.mxu0 0
    %2569 = vmatprep.subr.bf16.mxu0 0
    %2570 = vmatpush1.bf16.msra.mxu0 0
    %2571 = vmatprep.subr.bf16.mxu0 0
    %2572 = vmatpush1.bf16.msra.mxu0 0
    %2573 = vmatprep.subr.bf16.mxu0 0
    %2574 = vmatpush1.bf16.msra.mxu0 0
    %2575 = vmatprep.subr.bf16.mxu0 0
    %2576 = vmatpush1.bf16.msra.mxu0 0
    %2577 = vmatprep.subr.bf16.mxu0 0
    %2578 = vmatpush1.bf16.msra.mxu0 0
    %2579 = vmatprep.subr.bf16.mxu0 0
    %2580 = vmatpush1.bf16.msra.mxu0 0
    %2581 = vmatprep.mubr.bf16.mxu0 0
    %2582 = vmatmul.mubr.bf16.gmra.mrb[0].mxu0 %v2506
    %v2583 = vpop.f32.mrb[0].mxu0
    %v2584 = vadd.f32 0.0, %v2583
    %v2585 = vpop.f32.mrb[0].mxu0
    %v2586 = vadd.f32 0.0, %v2585
    %v2587 = vpop.f32.mrb[0].mxu0
    %v2588 = vpop.f32.mrb[0].mxu0
    %2589 = vdwg.mxu0
    %v2594 = vrot.slane %v2543, 4
    %v2595 = vrot.slane %v2545, 4
    %v2596 = vrot.slane %v2584, 4
    %v2597 = vrot.slane %v2586, 4
    %v2602 = vadd.f32 %v1528, %v2594
    %v2603 = vadd.f32 %v1530, %v2595
    %v2604 = vadd.f32 %v1571, %v2596
    %v2605 = vadd.f32 %v1573, %v2597
    %v2606 = vxor.u32 %v2602, 2147483648
    %v2607 = vxor.u32 %v2603, 2147483648
    %v2608 = vxor.u32 %v2604, 2147483648
    %v2609 = vmul.f32 %v2606, 1.442695
    %v2610 = vpow.pop %v2609
    %v2611 = vmul.f32 %v2607, 1.442695
    %v2612 = vpow.pop %v2611
    %v2613 = vmul.f32 %v2608, 1.442695
    %v2614 = vpow.pop %v2613
    %v2615 = vadd.f32 %v2610, 1.0
    %v2616 = vadd.f32 %v2612, 1.0
    %v2617 = vadd.f32 %v2614, 1.0
    %v2618 = vrcp.pop %v2615
    %v2619 = vmul.f32 1.0, %v2618
    %v2620 = vrcp.pop %v2616
    %v2621 = vmul.f32 1.0, %v2620
    %v2622 = vrcp.pop %v2617
    %v2623 = vmul.f32 1.0, %v2622
    %v2624 = vtanh.pop %v2605
    %v2626 = vrot.slane %v2501, 6
    %v2628 = vmul.f32 %v2621, %v2626
    %v2629 = vmul.f32 %v2619, %v2624
    %v2630 = vadd.f32 %v2628, %v2629
    %v2631 = vtanh.pop %v2630
    %v2632 = vmul.f32 %v2623, %v2631
    %v2633 = vpack.c.bf16 %v2632, %v2632
    %v2635 = vrot.slane %v2633, 2
    %2637 = vmatprep.subr.bf16.mxu0 %v1704
    %2638 = vmatpush1.bf16.msra.mxu0 %v1703
    %2639 = vmatprep.subr.bf16.mxu0 %v1708
    %2640 = vmatpush1.bf16.msra.mxu0 %v1707
    %2641 = vmatprep.subr.bf16.mxu0 %v1712
    %2642 = vmatpush1.bf16.msra.mxu0 %v1711
    %2643 = vmatprep.subr.bf16.mxu0 %v1716
    %2644 = vmatpush1.bf16.msra.mxu0 %v1715
    %2645 = vmatprep.subr.bf16.mxu0 %v1720
    %2646 = vmatpush1.bf16.msra.mxu0 %v1719
    %2647 = vmatprep.subr.bf16.mxu0 %v1724
    %2648 = vmatpush1.bf16.msra.mxu0 %v1723
    %2649 = vmatprep.subr.bf16.mxu0 %v1728
    %2650 = vmatpush1.bf16.msra.mxu0 %v1727
    %2651 = vmatprep.subr.bf16.mxu0 %v1732
    %2652 = vmatpush1.bf16.msra.mxu0 %v1731
    %2653 = vmatprep.subr.bf16.mxu0 0
    %2654 = vmatpush1.bf16.msra.mxu0 0
    %2655 = vmatprep.subr.bf16.mxu0 0
    %2656 = vmatpush1.bf16.msra.mxu0 0
    %2657 = vmatprep.subr.bf16.mxu0 0
    %2658 = vmatpush1.bf16.msra.mxu0 0
    %2659 = vmatprep.subr.bf16.mxu0 0
    %2660 = vmatpush1.bf16.msra.mxu0 0
    %2661 = vmatprep.subr.bf16.mxu0 0
    %2662 = vmatpush1.bf16.msra.mxu0 0
    %2663 = vmatprep.subr.bf16.mxu0 0
    %2664 = vmatpush1.bf16.msra.mxu0 0
    %2665 = vmatprep.subr.bf16.mxu0 0
    %2666 = vmatpush1.bf16.msra.mxu0 0
    %2667 = vmatprep.subr.bf16.mxu0 0
    %2668 = vmatpush1.bf16.msra.mxu0 0
    %2669 = vmatprep.mubr.bf16.mxu0 0
    %2670 = vmatmul.mubr.bf16.gmra.mrb[0].mxu0 %v2635
    %v2671 = vpop.f32.mrb[0].mxu0
    %v2672 = vadd.f32 0.0, %v2671
    %v2673 = vpop.f32.mrb[0].mxu0
    %v2674 = vadd.f32 0.0, %v2673
    %v2675 = vpop.f32.mrb[0].mxu0
    %v2676 = vpop.f32.mrb[0].mxu0
    %2677 = vdwg.mxu0
    %2678 = vmatprep.subr.bf16.mxu0 %v1706
    %2679 = vmatpush1.bf16.msra.mxu0 %v1705
    %2680 = vmatprep.subr.bf16.mxu0 %v1710
    %2681 = vmatpush1.bf16.msra.mxu0 %v1709
    %2682 = vmatprep.subr.bf16.mxu0 %v1714
    %2683 = vmatpush1.bf16.msra.mxu0 %v1713
    %2684 = vmatprep.subr.bf16.mxu0 %v1718
    %2685 = vmatpush1.bf16.msra.mxu0 %v1717
    %2686 = vmatprep.subr.bf16.mxu0 %v1722
    %2687 = vmatpush1.bf16.msra.mxu0 %v1721
    %2688 = vmatprep.subr.bf16.mxu0 %v1726
    %2689 = vmatpush1.bf16.msra.mxu0 %v1725
    %2690 = vmatprep.subr.bf16.mxu0 %v1730
    %2691 = vmatpush1.bf16.msra.mxu0 %v1729
    %2692 = vmatprep.subr.bf16.mxu0 %v1734
    %2693 = vmatpush1.bf16.msra.mxu0 %v1733
    %2694 = vmatprep.subr.bf16.mxu0 0
    %2695 = vmatpush1.bf16.msra.mxu0 0
    %2696 = vmatprep.subr.bf16.mxu0 0
    %2697 = vmatpush1.bf16.msra.mxu0 0
    %2698 = vmatprep.subr.bf16.mxu0 0
    %2699 = vmatpush1.bf16.msra.mxu0 0
    %2700 = vmatprep.subr.bf16.mxu0 0
    %2701 = vmatpush1.bf16.msra.mxu0 0
    %2702 = vmatprep.subr.bf16.mxu0 0
    %2703 = vmatpush1.bf16.msra.mxu0 0
    %2704 = vmatprep.subr.bf16.mxu0 0
    %2705 = vmatpush1.bf16.msra.mxu0 0
    %2706 = vmatprep.subr.bf16.mxu0 0
    %2707 = vmatpush1.bf16.msra.mxu0 0
    %2708 = vmatprep.subr.bf16.mxu0 0
    %2709 = vmatpush1.bf16.msra.mxu0 0
    %2710 = vmatprep.mubr.bf16.mxu0 0
    %2711 = vmatmul.mubr.bf16.gmra.mrb[0].mxu0 %v2635
    %v2712 = vpop.f32.mrb[0].mxu0
    %v2713 = vadd.f32 0.0, %v2712
    %v2714 = vpop.f32.mrb[0].mxu0
    %v2715 = vadd.f32 0.0, %v2714
    %v2716 = vpop.f32.mrb[0].mxu0
    %v2717 = vpop.f32.mrb[0].mxu0
    %2718 = vdwg.mxu0
    %v2723 = vrot.slane %v2672, 2
    %v2724 = vrot.slane %v2674, 2
    %v2725 = vrot.slane %v2713, 2
    %v2726 = vrot.slane %v2715, 2
    %v2731 = vadd.f32 %v1528, %v2723
    %v2732 = vadd.f32 %v1530, %v2724
    %v2733 = vadd.f32 %v1571, %v2725
    %v2734 = vadd.f32 %v1573, %v2726
    %v2735 = vxor.u32 %v2731, 2147483648
    %v2736 = vxor.u32 %v2732, 2147483648
    %v2737 = vxor.u32 %v2733, 2147483648
    %v2738 = vmul.f32 %v2735, 1.442695
    %v2739 = vpow.pop %v2738
    %v2740 = vmul.f32 %v2736, 1.442695
    %v2741 = vpow.pop %v2740
    %v2742 = vmul.f32 %v2737, 1.442695
    %v2743 = vpow.pop %v2742
    %v2744 = vadd.f32 %v2739, 1.0
    %v2745 = vadd.f32 %v2741, 1.0
    %v2746 = vadd.f32 %v2743, 1.0
    %v2747 = vrcp.pop %v2744
    %v2748 = vmul.f32 1.0, %v2747
    %v2749 = vrcp.pop %v2745
    %v2750 = vmul.f32 1.0, %v2749
    %v2751 = vrcp.pop %v2746
    %v2752 = vmul.f32 1.0, %v2751
    %v2753 = vtanh.pop %v2734
    %v2755 = vrot.slane %v2630, 6
    %v2757 = vmul.f32 %v2750, %v2755
    %v2758 = vmul.f32 %v2748, %v2753
    %v2759 = vadd.f32 %v2757, %v2758
    %v2760 = vtanh.pop %v2759
    %v2761 = vmul.f32 %v2752, %v2760
    %v2762 = vld [vmem:[%s5] sm:$0x1]
    %v2764 = vlaneseq
    %v2765 = vshrl.u32 %v2764, 7
    %v2766 = vsub.s32 0, %v2765
    %v2767 = vrot.slane %v2762, %v2766
    %v2769 = vmul.f32 %v2761, %v2767
    %vm2770 = vcmask 1047558
    %v2771 = vsel %vm2770, %v2769, 0.0
    %2772 = vadd.xlane.f32.xlu0 %v2771
    %v2773 = vpop.xlane.xlu0 %2772
    %v2774 = vld [vmem:[#allocation2] sm:$0x1]
    %v2776 = vlaneseq
    %v2777 = vshrl.u32 %v2776, 7
    %v2778 = vsub.s32 0, %v2777
    %v2779 = vrot.slane %v2774, %v2778
    %v2781 = vadd.f32 %v2773, %v2779
    %vm2782 = vcmask 7174
    %2783 = vst.msk [vmem:[%s7 - $0x6] sm:$0xc0] %vm2782, %v2781
    // Predicated region
    $region42: #{lstm_model_forward.1} parent=1 // pred_check
      _
    $region43: #{lstm_model_forward.1} parent=1 // pred_check_branch
      %2785 = sbr.rel (0) target = $region45
    $region44: #{lstm_model_forward.1} parent=1 // pred_region
      _
    $region45: #{lstm_model_forward.1} parent=1 // pred_fallthru
      _
    // Predicated region
    $region46: #{lstm_model_forward.1} parent=1 // pred_check
      _
    $region47: #{lstm_model_forward.1} parent=1 // pred_check_branch
      %2787 = sbr.rel (0) target = $region49
    $region48: #{lstm_model_forward.1} parent=1 // pred_region
      _
    $region49: #{lstm_model_forward.1} parent=1 // pred_fallthru
      _
    %2788 = vsyncpa [#allocation4], 1
    %2789 = vsyncpa [#allocation6], 1

</llo_original>
